<compile_context>
chip_gen: v7x
topology: tpu7x:2x2x1
jax: 0.10.0
libtpu: 0.0.40
codegen_flags: <defaults>
</compile_context>

<pallas_src>
import functools

import jax
import jax.numpy as jnp
from jax.experimental import pallas as pl
from jax.experimental.pallas import tpu as pltpu

EPS = 1e-5        # nn.BatchNorm2d default eps
LANES = 128       # TPU lane width; channel padding target


def _round_up(a, b):
    return (a + b - 1) // b * b


@functools.lru_cache(maxsize=None)
def _vmem_limit_bytes():
    """Per-generation scoped-VMEM budget: ~3/4 of physical, capped at 96 MiB
    (~96 MiB on 128 MiB v5e/v6e parts, ~48 MiB on 64 MiB v7x parts)."""
    cap = 64 * 1024 * 1024              # conservative fallback if query fails
    try:
        cap = int(pltpu.get_tpu_info().vmem_capacity_bytes)
    except Exception:
        pass
    return int(min(96 * 1024 * 1024, max(32 * 1024 * 1024, cap * 3 // 4)))


# ------------------------------ Pallas kernels ------------------------------ #

def _conv3x3_one_image(x_ref, w_ref, patch_ref, *, k, stride, Ho, Wo, Hn):
    """k x k conv for one image over a phase-packed, zero-padded NHWC block.

    x_ref block: (1, stride*stride*Hn, Wn, Cin) bf16.
    w_ref block: (k*k*Cin, Cout) bf16, tap-major, resident across the grid.
    If patch_ref is given (Cin lane-aligned), all taps are gathered into a
    (Ho*Wo, k*k*Cin) VMEM scratch (lane-aligned stores) and contracted with a
    single deep-K MXU matmul; otherwise fall back to per-tap matmuls with f32
    accumulation.  Returns an (Ho*Wo, Cout) f32 accumulator.
    """
    cin = x_ref.shape[-1]

    def tap_window(t):
        dh, dw = divmod(t, k)
        phase = (dh % stride) * stride + (dw % stride)
        oh, ow = dh // stride, dw // stride
        r0 = phase * Hn + oh
        return x_ref[0, r0:r0 + Ho, ow:ow + Wo, :].reshape(Ho * Wo, cin)

    if patch_ref is not None:
        for t in range(k * k):                         # static unroll (9 taps)
            patch_ref[:, t * cin:(t + 1) * cin] = tap_window(t)
        return jnp.dot(patch_ref[...], w_ref[...],
                       preferred_element_type=jnp.float32)

    # TODO(synk): for tiny-Cin stems, deepen K via space-to-depth instead of
    # these shallow per-tap contractions (MXU underfill at K=Cin).
    cout = w_ref.shape[-1]
    acc = jnp.zeros((Ho * Wo, cout), jnp.float32)
    for t in range(k * k):
        acc = acc + jnp.dot(tap_window(t), w_ref[t * cin:(t + 1) * cin, :],
                            preferred_element_type=jnp.float32)
    return acc


def _conv_stats_kernel(x_ref, w_ref, y_ref, sum_ref, sq_ref, *scratch,
                       k, stride, Ho, Wo, Hn):
    """Pass 1: conv (bf16 MXU, f32 acc) + per-image BN sum/sumsq partials."""
    patch_ref = scratch[0] if scratch else None
    acc = _conv3x3_one_image(x_ref, w_ref, patch_ref, k=k, stride=stride,
                             Ho=Ho, Wo=Wo, Hn=Hn)
    y_ref[0] = acc.astype(y_ref.dtype)            # bf16 store: halves HBM traffic
    sum_ref[0] = jnp.sum(acc, axis=0, keepdims=True)        # stats from f32 acc
    sq_ref[0] = jnp.sum(acc * acc, axis=0, keepdims=True)


def _conv_sc_stats_kernel(x_ref, w_ref, xs_ref, ws_ref,
                          y_ref, ysc_ref, sum_ref, sq_ref, ssum_ref, ssq_ref,
                          *scratch, k, stride, Ho, Wo, Hn):
    """Pass 1 for conv2 with the 1x1 downsample shortcut fused on the same tile."""
    patch_ref = scratch[0] if scratch else None
    acc = _conv3x3_one_image(x_ref, w_ref, patch_ref, k=k, stride=stride,
                             Ho=Ho, Wo=Wo, Hn=Hn)
    ysc = jnp.dot(xs_ref[0], ws_ref[...], preferred_element_type=jnp.float32)
    y_ref[0] = acc.astype(y_ref.dtype)
    ysc_ref[0] = ysc.astype(ysc_ref.dtype)
    sum_ref[0] = jnp.sum(acc, axis=0, keepdims=True)
    sq_ref[0] = jnp.sum(acc * acc, axis=0, keepdims=True)
    ssum_ref[0] = jnp.sum(ysc, axis=0, keepdims=True)
    ssq_ref[0] = jnp.sum(ysc * ysc, axis=0, keepdims=True)


def _bn_act_kernel(y_ref, s_ref, t_ref, o_ref):
    """Pass 2: relu(y * scale + shift), lane-dense M-tiled elementwise."""
    o_ref[...] = jnp.maximum(
        y_ref[...].astype(jnp.float32) * s_ref[...] + t_ref[...],
        0.0).astype(o_ref.dtype)


def _bn_add_act_kernel(y_ref, s_ref, t_ref, r_ref, sr_ref, tr_ref, o_ref):
    """Pass 2: relu(BN(y) + BN_or_identity(residual)), fused."""
    o_ref[...] = jnp.maximum(
        y_ref[...].astype(jnp.float32) * s_ref[...] + t_ref[...]
        + r_ref[...].astype(jnp.float32) * sr_ref[...] + tr_ref[...],
        0.0).astype(o_ref.dtype)


# ------------------------------ kernel launchers ----------------------------- #

def _conv_bn_stats(xpk, wm, *, k, stride, Ho, Wo, Hn, Cp):
    N = xpk.shape[0]
    cin = xpk.shape[-1]
    use_patch = (cin % LANES == 0)
    scratch = ([pltpu.VMEM((Ho * Wo, k * k * cin), jnp.bfloat16)]
               if use_patch else [])
    kern = functools.partial(_conv_stats_kernel, k=k, stride=stride,
                             Ho=Ho, Wo=Wo, Hn=Hn)
    flops = 2 * N * Ho * Wo * (k * k * cin) * Cp
    bytes_acc = (xpk.size * 2 + wm.size * 2
                 + N * Ho * Wo * Cp * 2 + 2 * N * Cp * 4)
    # TODO(synk): for large images (e.g. 56x56+ feature maps) add an output-row
    # grid axis so the per-step VMEM footprint stays bounded on 64 MiB v7x.
    return pl.pallas_call(
        kern,
        grid=(N,),
        in_specs=[
            pl.BlockSpec((1,) + tuple(xpk.shape[1:]), lambda n: (n, 0, 0, 0)),
            pl.BlockSpec(tuple(wm.shape), lambda n: (0, 0)),   # resident weights
        ],
        out_specs=(
            pl.BlockSpec((1, Ho * Wo, Cp), lambda n: (n, 0, 0)),  # bf16 conv out
            pl.BlockSpec((1, 1, Cp), lambda n: (n, 0, 0)),        # per-image sum
            pl.BlockSpec((1, 1, Cp), lambda n: (n, 0, 0)),        # per-image sumsq
        ),
        out_shape=(
            jax.ShapeDtypeStruct((N, Ho * Wo, Cp), jnp.bfloat16),
            jax.ShapeDtypeStruct((N, 1, Cp), jnp.float32),
            jax.ShapeDtypeStruct((N, 1, Cp), jnp.float32),
        ),
        scratch_shapes=scratch,
        cost_estimate=pl.CostEstimate(flops=flops, transcendentals=0,
                                      bytes_accessed=bytes_acc),
        compiler_params=pltpu.CompilerParams(
            dimension_semantics=("parallel",),      # megacore-capable (v7x)
            vmem_limit_bytes=_vmem_limit_bytes()),
    )(xpk, wm)


def _conv_sc_bn_stats(xpk, wm, xs, wsm, *, k, stride, Ho, Wo, Hn, Cp):
    N = xpk.shape[0]
    cin = xpk.shape[-1]
    cin_sc = xs.shape[-1]
    use_patch = (cin % LANES == 0)
    scratch = ([pltpu.VMEM((Ho * Wo, k * k * cin), jnp.bfloat16)]
               if use_patch else [])
    kern = functools.partial(_conv_sc_stats_kernel, k=k, stride=stride,
                             Ho=Ho, Wo=Wo, Hn=Hn)
    flops = 2 * N * Ho * Wo * (k * k * cin + cin_sc) * Cp
    bytes_acc = (xpk.size * 2 + wm.size * 2 + xs.size * 2 + wsm.size * 2
                 + 2 * N * Ho * Wo * Cp * 2 + 4 * N * Cp * 4)
    return pl.pallas_call(
        kern,
        grid=(N,),
        in_specs=[
            pl.BlockSpec((1,) + tuple(xpk.shape[1:]), lambda n: (n, 0, 0, 0)),
            pl.BlockSpec(tuple(wm.shape), lambda n: (0, 0)),
            pl.BlockSpec((1,) + tuple(xs.shape[1:]), lambda n: (n, 0, 0)),
            pl.BlockSpec(tuple(wsm.shape), lambda n: (0, 0)),
        ],
        out_specs=(
            pl.BlockSpec((1, Ho * Wo, Cp), lambda n: (n, 0, 0)),
            pl.BlockSpec((1, Ho * Wo, Cp), lambda n: (n, 0, 0)),
            pl.BlockSpec((1, 1, Cp), lambda n: (n, 0, 0)),
            pl.BlockSpec((1, 1, Cp), lambda n: (n, 0, 0)),
            pl.BlockSpec((1, 1, Cp), lambda n: (n, 0, 0)),
            pl.BlockSpec((1, 1, Cp), lambda n: (n, 0, 0)),
        ),
        out_shape=(
            jax.ShapeDtypeStruct((N, Ho * Wo, Cp), jnp.bfloat16),
            jax.ShapeDtypeStruct((N, Ho * Wo, Cp), jnp.bfloat16),
            jax.ShapeDtypeStruct((N, 1, Cp), jnp.float32),
            jax.ShapeDtypeStruct((N, 1, Cp), jnp.float32),
            jax.ShapeDtypeStruct((N, 1, Cp), jnp.float32),
            jax.ShapeDtypeStruct((N, 1, Cp), jnp.float32),
        ),
        scratch_shapes=scratch,
        cost_estimate=pl.CostEstimate(flops=flops, transcendentals=0,
                                      bytes_accessed=bytes_acc),
        compiler_params=pltpu.CompilerParams(
            dimension_semantics=("parallel",),
            vmem_limit_bytes=_vmem_limit_bytes()),
    )(xpk, wm, xs, wsm)


def _bn_act(y, scale, shift, out_dtype, tm=1024):
    """relu(y * scale + shift), M-tiled, lane-dense, 'parallel' grid axis."""
    M, C = y.shape
    Mp = _round_up(M, 8)
    tm = min(tm, Mp)
    Mp = _round_up(Mp, tm)
    if Mp != M:
        y = jnp.pad(y, ((0, Mp - M), (0, 0)))
    out = pl.pallas_call(
        _bn_act_kernel,
        grid=(Mp // tm,),
        in_specs=[
            pl.BlockSpec((tm, C), lambda i: (i, 0)),
            pl.BlockSpec((1, C), lambda i: (0, 0)),
            pl.BlockSpec((1, C), lambda i: (0, 0)),
        ],
        out_specs=pl.BlockSpec((tm, C), lambda i: (i, 0)),
        out_shape=jax.ShapeDtypeStruct((Mp, C), out_dtype),
        compiler_params=pltpu.CompilerParams(
            dimension_semantics=("parallel",),
            vmem_limit_bytes=_vmem_limit_bytes()),
    )(y, scale, shift)
    return out[:M]


def _bn_add_act(y, sy, ty, r, sr, tr, out_dtype, tm=1024):
    M, C = y.shape
    Mp = _round_up(M, 8)
    tm = min(tm, Mp)
    Mp = _round_up(Mp, tm)
    if Mp != M:
        y = jnp.pad(y, ((0, Mp - M), (0, 0)))
        r = jnp.pad(r, ((0, Mp - M), (0, 0)))
    out = pl.pallas_call(
        _bn_add_act_kernel,
        grid=(Mp // tm,),
        in_specs=[
            pl.BlockSpec((tm, C), lambda i: (i, 0)),
            pl.BlockSpec((1, C), lambda i: (0, 0)),
            pl.BlockSpec((1, C), lambda i: (0, 0)),
            pl.BlockSpec((tm, C), lambda i: (i, 0)),
            pl.BlockSpec((1, C), lambda i: (0, 0)),
            pl.BlockSpec((1, C), lambda i: (0, 0)),
        ],
        out_specs=pl.BlockSpec((tm, C), lambda i: (i, 0)),
        out_shape=jax.ShapeDtypeStruct((Mp, C), out_dtype),
        compiler_params=pltpu.CompilerParams(
            dimension_semantics=("parallel",),
            vmem_limit_bytes=_vmem_limit_bytes()),
    )(y, sy, ty, r, sr, tr)
    return out[:M]


# --------------------------------- glue (JAX) -------------------------------- #

def _phase_pack(x, k, stride, pad):
    """Zero-pad spatially and split into stride*stride phase planes (stacked
    along H) so every conv tap becomes an *unstrided* static slice in-kernel.
    Total size ~1x the padded input — no im2col blowup."""
    N, H, W, C = x.shape
    xp = jnp.pad(x, ((0, 0), (pad, pad), (pad, pad), (0, 0)))
    Hp, Wp = H + 2 * pad, W + 2 * pad
    Ho = (Hp - k) // stride + 1
    Wo = (Wp - k) // stride + 1
    ext = (k - 1) // stride
    Hn, Wn = Ho + ext, Wo + ext
    phase_planes = []
    for ph in range(stride):
        for pw in range(stride):
            pp = xp[:, ph::stride, pw::stride, :][:, :Hn, :Wn, :]
            pp = jnp.pad(pp, ((0, 0), (0, Hn - pp.shape[1]),
                              (0, Wn - pp.shape[2]), (0, 0)))
            phase_planes.append(pp)
    packed = jnp.concatenate(phase_planes, axis=1)   # (N, s*s*Hn, Wn, C)
    return packed, Ho, Wo, Hn


def _pack_w3x3(w, cin_pad, cout_pad):
    """(O, I, kh, kw) OIHW -> (kh*kw*cin_pad, cout_pad) tap-major bf16, padded."""
    O, I, kh, kw = w.shape
    wm = jnp.transpose(w, (2, 3, 1, 0))                    # (kh, kw, I, O)
    wm = jnp.pad(wm, ((0, 0), (0, 0), (0, cin_pad - I), (0, cout_pad - O)))
    return wm.reshape(kh * kw * cin_pad, cout_pad).astype(jnp.bfloat16)


def _pad_ch(v, cout_pad):
    return jnp.pad(v.astype(jnp.float32), (0, cout_pad - v.shape[0]))


def _bn_affine(s_sum, s_sq, count, gamma_p, beta_p):
    """Fold batch stats (sum, sumsq) + gamma/beta into per-channel scale/shift."""
    # TODO(synk): for production-scale N*H*W per channel, switch to a
    # Welford/centered merge — sumsq/M - mean^2 in f32 can cancel badly.
    mean = s_sum / count
    var = s_sq / count - mean * mean              # biased batch variance
    scale = gamma_p * jax.lax.rsqrt(var + EPS)
    shift = beta_p - mean * scale
    return scale[None, :], shift[None, :]


def basic_block_forward(x_nchw, params, stride):
    """Pallas BasicBlock forward (training-mode BN), NCHW in / NCHW out."""
    N, Cin, H, W = x_nchw.shape
    planes = params["w1"].shape[0]
    Cp = _round_up(planes, LANES)                 # lane-dense channel padding

    # TODO(synk): in a full network, keep activations Cp-padded NHWC bf16
    # across blocks (and let pass 2 write straight into a zero-padded conv2
    # input buffer) so the transpose / pad / slice XLA passes below are done
    # once at the network edges instead of per block.
    x = jnp.transpose(x_nchw, (0, 2, 3, 1)).astype(jnp.float32)   # NHWC

    # ---- conv1 (3x3 / stride, pad 1): pass 1 = conv + BN1 batch-stats ----
    xpk, Ho, Wo, Hn = _phase_pack(x.astype(jnp.bfloat16), 3, stride, 1)
    w1m = _pack_w3x3(params["w1"], Cin, Cp)
    y1, s1sum, s1sq = _conv_bn_stats(xpk, w1m, k=3, stride=stride,
                                     Ho=Ho, Wo=Wo, Hn=Hn, Cp=Cp)
    M = N * Ho * Wo

    # ---- pass 2: BN1 + ReLU (bf16 out: feeds conv2's MXU) ----
    s1, t1 = _bn_affine(jnp.sum(s1sum, axis=(0, 1)), jnp.sum(s1sq, axis=(0, 1)),
                        M, _pad_ch(params["g1"], Cp), _pad_ch(params["b1"], Cp))
    out1 = _bn_act(y1.reshape(M, Cp), s1, t1, jnp.bfloat16)

    # ---- conv2 (3x3 / 1, pad 1) [+ fused 1x1 shortcut conv]: pass 1 ----
    xpk2, _, _, Hn2 = _phase_pack(out1.reshape(N, Ho, Wo, Cp), 3, 1, 1)
    w2m = _pack_w3x3(params["w2"], Cp, Cp)
    downsample = (stride != 1) or (Cin != planes)
    if downsample:
        xs = x[:, ::stride, ::stride, :].reshape(N, Ho * Wo, Cin).astype(jnp.bfloat16)
        wsm = jnp.pad(params["ws"].reshape(planes, Cin).T,
                      ((0, 0), (0, Cp - planes))).astype(jnp.bfloat16)
        y2, ysc, s2sum, s2sq, scsum, scsq = _conv_sc_bn_stats(
            xpk2, w2m, xs, wsm, k=3, stride=1, Ho=Ho, Wo=Wo, Hn=Hn2, Cp=Cp)
        s2, t2 = _bn_affine(jnp.sum(s2sum, axis=(0, 1)), jnp.sum(s2sq, axis=(0, 1)),
                            M, _pad_ch(params["g2"], Cp), _pad_ch(params["b2"], Cp))
        ss, ts = _bn_affine(jnp.sum(scsum, axis=(0, 1)), jnp.sum(scsq, axis=(0, 1)),
                            M, _pad_ch(params["gs"], Cp), _pad_ch(params["bs"], Cp))
        res = ysc.reshape(M, Cp)
    else:
        y2, s2sum, s2sq = _conv_bn_stats(xpk2, w2m, k=3, stride=1,
                                         Ho=Ho, Wo=Wo, Hn=Hn2, Cp=Cp)
        s2, t2 = _bn_affine(jnp.sum(s2sum, axis=(0, 1)), jnp.sum(s2sq, axis=(0, 1)),
                            M, _pad_ch(params["g2"], Cp), _pad_ch(params["b2"], Cp))
        res = jnp.pad(x.reshape(M, Cin),
                      ((0, 0), (0, Cp - Cin))).astype(jnp.bfloat16)   # identity
        ss = jnp.ones((1, Cp), jnp.float32)
        ts = jnp.zeros((1, Cp), jnp.float32)

    # ---- pass 2: BN2 (+ BN_shortcut) + residual add + ReLU (fused) ----
    out = _bn_add_act(y2.reshape(M, Cp), s2, t2, res, ss, ts, jnp.float32)

    out = out[:, :planes].reshape(N, Ho, Wo, planes)
    return jnp.transpose(out, (0, 3, 1, 2))


# ----------------------------- pure-JAX reference ----------------------------- #

def reference_forward(x, params, stride):
    def conv(x, w, s, p):
        return jax.lax.conv_general_dilated(
            x, w, (s, s), [(p, p), (p, p)],
            dimension_numbers=("NCHW", "OIHW", "NCHW"))

    def bn(y, g, b):
        mean = jnp.mean(y, axis=(0, 2, 3), keepdims=True)
        var = jnp.mean(jnp.square(y - mean), axis=(0, 2, 3), keepdims=True)
        return ((y - mean) * jax.lax.rsqrt(var + EPS)
                * g[None, :, None, None] + b[None, :, None, None])

    planes = params["w1"].shape[0]
    out = jax.nn.relu(bn(conv(x, params["w1"], stride, 1),
                         params["g1"], params["b1"]))
    out = bn(conv(out, params["w2"], 1, 1), params["g2"], params["b2"])
    if stride != 1 or x.shape[1] != planes:
        sc = bn(conv(x, params["ws"], stride, 0), params["gs"], params["bs"])
    else:
        sc = x
    return jax.nn.relu(out + sc)


# ------------------------------------ main ------------------------------------ #

if __name__ == "__main__":
    key = jax.random.PRNGKey(0)

    def make_params(k, in_planes, planes, with_shortcut):
        ks = jax.random.split(k, 9)
        p = {
            "w1": 0.1 * jax.random.normal(ks[0], (planes, in_planes, 3, 3), jnp.float32),
            "w2": 0.1 * jax.random.normal(ks[1], (planes, planes, 3, 3), jnp.float32),
            "g1": 1.0 + 0.1 * jax.random.normal(ks[2], (planes,), jnp.float32),
            "b1": 0.1 * jax.random.normal(ks[3], (planes,), jnp.float32),
            "g2": 1.0 + 0.1 * jax.random.normal(ks[4], (planes,), jnp.float32),
            "b2": 0.1 * jax.random.normal(ks[5], (planes,), jnp.float32),
        }
        if with_shortcut:
            p["ws"] = 0.1 * jax.random.normal(ks[6], (planes, in_planes, 1, 1), jnp.float32)
            p["gs"] = 1.0 + 0.1 * jax.random.normal(ks[7], (planes,), jnp.float32)
            p["bs"] = 0.1 * jax.random.normal(ks[8], (planes,), jnp.float32)
        return p

    k1, k2, k3, k4 = jax.random.split(key, 4)

    # Case 1: downsample block (stride 2, channel change) — exercises the fused
    # conv2 + 1x1-shortcut stats kernel and the deep-K gathered matmul path.
    x = jax.random.normal(k1, (2, 4, 16, 16), jnp.float32)
    params = make_params(k2, 4, 8, True)
    out = jax.block_until_ready(
        jax.jit(functools.partial(basic_block_forward, stride=2))(x, params))
    ref = jax.block_until_ready(reference_forward(x, params, 2))
    assert out.shape == (2, 8, 8, 8), out.shape
    err = float(jnp.max(jnp.abs(out - ref)))
    rel = float(jnp.linalg.norm(out - ref) / (jnp.linalg.norm(ref) + 1e-12))
    # bf16 MXU operands + bf16 storage of conv intermediates -> relaxed tolerance.
    assert err < 1e-1 and rel < 3e-2, f"downsample block err={err} rel={rel}"

    # Case 2: identity-shortcut block (stride 1, same planes).
    x2 = jax.random.normal(k3, (2, 8, 16, 16), jnp.float32)
    params2 = make_params(k4, 8, 8, False)
    out2 = jax.block_until_ready(
        jax.jit(functools.partial(basic_block_forward, stride=1))(x2, params2))
    ref2 = jax.block_until_ready(reference_forward(x2, params2, 1))
    assert out2.shape == (2, 8, 16, 16), out2.shape
    err2 = float(jnp.max(jnp.abs(out2 - ref2)))
    rel2 = float(jnp.linalg.norm(out2 - ref2) / (jnp.linalg.norm(ref2) + 1e-12))
    assert err2 < 1e-1 and rel2 < 3e-2, f"identity block err={err2} rel={rel2}"

    print("KERNEL_OK")
</pallas_src>

<mosaic_0001>
module attributes {stable_mosaic.version = 11 : i64} {
  func.func @_conv_stats_kernel(%arg0: i32, %arg1: memref<1x36x9x4xbf16, #tpu.memory_space<vmem>>, %arg2: memref<36x128xbf16, #tpu.memory_space<vmem>>, %arg3: memref<1x64x128xbf16, #tpu.memory_space<vmem>>, %arg4: memref<1x1x128xf32, #tpu.memory_space<vmem>>, %arg5: memref<1x1x128xf32, #tpu.memory_space<vmem>>) attributes {dimension_semantics = [#tpu.dimension_semantics<parallel>], iteration_bounds = array<i64: 2>, scalar_prefetch = 0 : i64, scratch_operands = 0 : i64, tpu.core_type = #tpu.core_type<tc>, window_params = [{transform_indices = @transform_0, window_bounds = array<i64: 1, 36, 9, 4>}, {pipeline_mode = #tpu.pipeline_mode<synchronous>, transform_indices = @transform_1, window_bounds = array<i64: 36, 128>}, {transform_indices = @transform_2, window_bounds = array<i64: 1, 64, 128>}, {transform_indices = @transform_3, window_bounds = array<i64: 1, 1, 128>}, {transform_indices = @transform_4, window_bounds = array<i64: 1, 1, 128>}]} {
    %cst = arith.constant 0.000000e+00 : f32
    %0 = vector.broadcast %cst : f32 to vector<64x128xf32>
    %c0 = arith.constant 0 : index
    %c0_0 = arith.constant 0 : index
    %c0_1 = arith.constant 0 : index
    %c0_2 = arith.constant 0 : index
    %1 = vector.load %arg1[%c0, %c0_0, %c0_1, %c0_2] : memref<1x36x9x4xbf16, #tpu.memory_space<vmem>>, vector<1x8x8x4xbf16>
    %2 = vector.shape_cast %1 : vector<1x8x8x4xbf16> to vector<8x8x4xbf16>
    %3 = vector.shape_cast %2 : vector<8x8x4xbf16> to vector<64x4xbf16>
    %c0_3 = arith.constant 0 : index
    %c0_4 = arith.constant 0 : index
    %4 = vector.load %arg2[%c0_3, %c0_4] : memref<36x128xbf16, #tpu.memory_space<vmem>>, vector<4x128xbf16>
    %cst_5 = arith.constant dense<0.000000e+00> : vector<64x128xf32>
    %5 = tpu.matmul %3, %4, %cst_5 {dimension_numbers = #tpu.dot_dimension_numbers<[1], [0], [0], [1], [0, 0, 1, 1], [], []>} : vector<64x4xbf16>, vector<4x128xbf16>, vector<64x128xf32> -> vector<64x128xf32>
    %6 = arith.addf %0, %5 : vector<64x128xf32>
    %c0_6 = arith.constant 0 : index
    %c9 = arith.constant 9 : index
    %c0_7 = arith.constant 0 : index
    %c0_8 = arith.constant 0 : index
    %7 = vector.load %arg1[%c0_6, %c9, %c0_7, %c0_8] : memref<1x36x9x4xbf16, #tpu.memory_space<vmem>>, vector<1x8x8x4xbf16>
    %8 = vector.shape_cast %7 : vector<1x8x8x4xbf16> to vector<8x8x4xbf16>
    %9 = vector.shape_cast %8 : vector<8x8x4xbf16> to vector<64x4xbf16>
    %c4 = arith.constant 4 : index
    %c0_9 = arith.constant 0 : index
    %10 = vector.load %arg2[%c4, %c0_9] : memref<36x128xbf16, #tpu.memory_space<vmem>>, vector<4x128xbf16>
    %cst_10 = arith.constant dense<0.000000e+00> : vector<64x128xf32>
    %11 = tpu.matmul %9, %10, %cst_10 {dimension_numbers = #tpu.dot_dimension_numbers<[1], [0], [0], [1], [0, 0, 1, 1], [], []>} : vector<64x4xbf16>, vector<4x128xbf16>, vector<64x128xf32> -> vector<64x128xf32>
    %12 = arith.addf %6, %11 : vector<64x128xf32>
    %c0_11 = arith.constant 0 : index
    %c0_12 = arith.constant 0 : index
    %c1 = arith.constant 1 : index
    %c0_13 = arith.constant 0 : index
    %13 = vector.load %arg1[%c0_11, %c0_12, %c1, %c0_13] : memref<1x36x9x4xbf16, #tpu.memory_space<vmem>>, vector<1x8x8x4xbf16>
    %14 = vector.shape_cast %13 : vector<1x8x8x4xbf16> to vector<8x8x4xbf16>
    %15 = vector.shape_cast %14 : vector<8x8x4xbf16> to vector<64x4xbf16>
    %c8 = arith.constant 8 : index
    %c0_14 = arith.constant 0 : index
    %16 = vector.load %arg2[%c8, %c0_14] : memref<36x128xbf16, #tpu.memory_space<vmem>>, vector<4x128xbf16>
    %cst_15 = arith.constant dense<0.000000e+00> : vector<64x128xf32>
    %17 = tpu.matmul %15, %16, %cst_15 {dimension_numbers = #tpu.dot_dimension_numbers<[1], [0], [0], [1], [0, 0, 1, 1], [], []>} : vector<64x4xbf16>, vector<4x128xbf16>, vector<64x128xf32> -> vector<64x128xf32>
    %18 = arith.addf %12, %17 : vector<64x128xf32>
    %c0_16 = arith.constant 0 : index
    %c18 = arith.constant 18 : index
    %c0_17 = arith.constant 0 : index
    %c0_18 = arith.constant 0 : index
    %19 = vector.load %arg1[%c0_16, %c18, %c0_17, %c0_18] : memref<1x36x9x4xbf16, #tpu.memory_space<vmem>>, vector<1x8x8x4xbf16>
    %20 = vector.shape_cast %19 : vector<1x8x8x4xbf16> to vector<8x8x4xbf16>
    %21 = vector.shape_cast %20 : vector<8x8x4xbf16> to vector<64x4xbf16>
    %c12 = arith.constant 12 : index
    %c0_19 = arith.constant 0 : index
    %22 = vector.load %arg2[%c12, %c0_19] : memref<36x128xbf16, #tpu.memory_space<vmem>>, vector<4x128xbf16>
    %cst_20 = arith.constant dense<0.000000e+00> : vector<64x128xf32>
    %23 = tpu.matmul %21, %22, %cst_20 {dimension_numbers = #tpu.dot_dimension_numbers<[1], [0], [0], [1], [0, 0, 1, 1], [], []>} : vector<64x4xbf16>, vector<4x128xbf16>, vector<64x128xf32> -> vector<64x128xf32>
    %24 = arith.addf %18, %23 : vector<64x128xf32>
    %c0_21 = arith.constant 0 : index
    %c27 = arith.constant 27 : index
    %c0_22 = arith.constant 0 : index
    %c0_23 = arith.constant 0 : index
    %25 = vector.load %arg1[%c0_21, %c27, %c0_22, %c0_23] : memref<1x36x9x4xbf16, #tpu.memory_space<vmem>>, vector<1x8x8x4xbf16>
    %26 = vector.shape_cast %25 : vector<1x8x8x4xbf16> to vector<8x8x4xbf16>
    %27 = vector.shape_cast %26 : vector<8x8x4xbf16> to vector<64x4xbf16>
    %c16 = arith.constant 16 : index
    %c0_24 = arith.constant 0 : index
    %28 = vector.load %arg2[%c16, %c0_24] : memref<36x128xbf16, #tpu.memory_space<vmem>>, vector<4x128xbf16>
    %cst_25 = arith.constant dense<0.000000e+00> : vector<64x128xf32>
    %29 = tpu.matmul %27, %28, %cst_25 {dimension_numbers = #tpu.dot_dimension_numbers<[1], [0], [0], [1], [0, 0, 1, 1], [], []>} : vector<64x4xbf16>, vector<4x128xbf16>, vector<64x128xf32> -> vector<64x128xf32>
    %30 = arith.addf %24, %29 : vector<64x128xf32>
    %c0_26 = arith.constant 0 : index
    %c18_27 = arith.constant 18 : index
    %c1_28 = arith.constant 1 : index
    %c0_29 = arith.constant 0 : index
    %31 = vector.load %arg1[%c0_26, %c18_27, %c1_28, %c0_29] : memref<1x36x9x4xbf16, #tpu.memory_space<vmem>>, vector<1x8x8x4xbf16>
    %32 = vector.shape_cast %31 : vector<1x8x8x4xbf16> to vector<8x8x4xbf16>
    %33 = vector.shape_cast %32 : vector<8x8x4xbf16> to vector<64x4xbf16>
    %c20 = arith.constant 20 : index
    %c0_30 = arith.constant 0 : index
    %34 = vector.load %arg2[%c20, %c0_30] : memref<36x128xbf16, #tpu.memory_space<vmem>>, vector<4x128xbf16>
    %cst_31 = arith.constant dense<0.000000e+00> : vector<64x128xf32>
    %35 = tpu.matmul %33, %34, %cst_31 {dimension_numbers = #tpu.dot_dimension_numbers<[1], [0], [0], [1], [0, 0, 1, 1], [], []>} : vector<64x4xbf16>, vector<4x128xbf16>, vector<64x128xf32> -> vector<64x128xf32>
    %36 = arith.addf %30, %35 : vector<64x128xf32>
    %c0_32 = arith.constant 0 : index
    %c1_33 = arith.constant 1 : index
    %c0_34 = arith.constant 0 : index
    %c0_35 = arith.constant 0 : index
    %37 = vector.load %arg1[%c0_32, %c1_33, %c0_34, %c0_35] : memref<1x36x9x4xbf16, #tpu.memory_space<vmem>>, vector<1x8x8x4xbf16>
    %38 = vector.shape_cast %37 : vector<1x8x8x4xbf16> to vector<8x8x4xbf16>
    %39 = vector.shape_cast %38 : vector<8x8x4xbf16> to vector<64x4xbf16>
    %c24 = arith.constant 24 : index
    %c0_36 = arith.constant 0 : index
    %40 = vector.load %arg2[%c24, %c0_36] : memref<36x128xbf16, #tpu.memory_space<vmem>>, vector<4x128xbf16>
    %cst_37 = arith.constant dense<0.000000e+00> : vector<64x128xf32>
    %41 = tpu.matmul %39, %40, %cst_37 {dimension_numbers = #tpu.dot_dimension_numbers<[1], [0], [0], [1], [0, 0, 1, 1], [], []>} : vector<64x4xbf16>, vector<4x128xbf16>, vector<64x128xf32> -> vector<64x128xf32>
    %42 = arith.addf %36, %41 : vector<64x128xf32>
    %c0_38 = arith.constant 0 : index
    %c10 = arith.constant 10 : index
    %c0_39 = arith.constant 0 : index
    %c0_40 = arith.constant 0 : index
    %43 = vector.load %arg1[%c0_38, %c10, %c0_39, %c0_40] : memref<1x36x9x4xbf16, #tpu.memory_space<vmem>>, vector<1x8x8x4xbf16>
    %44 = vector.shape_cast %43 : vector<1x8x8x4xbf16> to vector<8x8x4xbf16>
    %45 = vector.shape_cast %44 : vector<8x8x4xbf16> to vector<64x4xbf16>
    %c28 = arith.constant 28 : index
    %c0_41 = arith.constant 0 : index
    %46 = vector.load %arg2[%c28, %c0_41] : memref<36x128xbf16, #tpu.memory_space<vmem>>, vector<4x128xbf16>
    %cst_42 = arith.constant dense<0.000000e+00> : vector<64x128xf32>
    %47 = tpu.matmul %45, %46, %cst_42 {dimension_numbers = #tpu.dot_dimension_numbers<[1], [0], [0], [1], [0, 0, 1, 1], [], []>} : vector<64x4xbf16>, vector<4x128xbf16>, vector<64x128xf32> -> vector<64x128xf32>
    %48 = arith.addf %42, %47 : vector<64x128xf32>
    %c0_43 = arith.constant 0 : index
    %c1_44 = arith.constant 1 : index
    %c1_45 = arith.constant 1 : index
    %c0_46 = arith.constant 0 : index
    %49 = vector.load %arg1[%c0_43, %c1_44, %c1_45, %c0_46] : memref<1x36x9x4xbf16, #tpu.memory_space<vmem>>, vector<1x8x8x4xbf16>
    %50 = vector.shape_cast %49 : vector<1x8x8x4xbf16> to vector<8x8x4xbf16>
    %51 = vector.shape_cast %50 : vector<8x8x4xbf16> to vector<64x4xbf16>
    %c32 = arith.constant 32 : index
    %c0_47 = arith.constant 0 : index
    %52 = vector.load %arg2[%c32, %c0_47] : memref<36x128xbf16, #tpu.memory_space<vmem>>, vector<4x128xbf16>
    %cst_48 = arith.constant dense<0.000000e+00> : vector<64x128xf32>
    %53 = tpu.matmul %51, %52, %cst_48 {dimension_numbers = #tpu.dot_dimension_numbers<[1], [0], [0], [1], [0, 0, 1, 1], [], []>} : vector<64x4xbf16>, vector<4x128xbf16>, vector<64x128xf32> -> vector<64x128xf32>
    %54 = arith.addf %48, %53 : vector<64x128xf32>
    %55 = arith.truncf %54 : vector<64x128xf32> to vector<64x128xbf16>
    %c0_49 = arith.constant 0 : index
    %c0_50 = arith.constant 0 : index
    %c0_51 = arith.constant 0 : index
    %56 = vector.load %arg3[%c0_49, %c0_50, %c0_51] : memref<1x64x128xbf16, #tpu.memory_space<vmem>>, vector<1x64x128xbf16>
    %57 = vector.shape_cast %56 : vector<1x64x128xbf16> to vector<64x128xbf16>
    %58 = vector.shape_cast %55 : vector<64x128xbf16> to vector<1x64x128xbf16>
    tpu.vector_store %arg3[%c0_49, %c0_50, %c0_51], %58 {strides = array<i32>} : memref<1x64x128xbf16, #tpu.memory_space<vmem>>, vector<1x64x128xbf16>,
    %cst_52 = arith.constant dense<0.000000e+00> : vector<128xf32>
    %59 = vector.multi_reduction <add>, %54, %cst_52 [0] : vector<64x128xf32> to vector<128xf32>
    %60 = vector.shape_cast %59 : vector<128xf32> to vector<1x128xf32>
    %c0_53 = arith.constant 0 : index
    %c0_54 = arith.constant 0 : index
    %c0_55 = arith.constant 0 : index
    %61 = vector.load %arg4[%c0_53, %c0_54, %c0_55] : memref<1x1x128xf32, #tpu.memory_space<vmem>>, vector<1x1x128xf32>
    %62 = vector.shape_cast %61 : vector<1x1x128xf32> to vector<1x128xf32>
    %63 = vector.shape_cast %60 : vector<1x128xf32> to vector<1x1x128xf32>
    tpu.vector_store %arg4[%c0_53, %c0_54, %c0_55], %63 {strides = array<i32>} : memref<1x1x128xf32, #tpu.memory_space<vmem>>, vector<1x1x128xf32>,
    %64 = arith.mulf %54, %54 : vector<64x128xf32>
    %cst_56 = arith.constant dense<0.000000e+00> : vector<128xf32>
    %65 = vector.multi_reduction <add>, %64, %cst_56 [0] : vector<64x128xf32> to vector<128xf32>
    %66 = vector.shape_cast %65 : vector<128xf32> to vector<1x128xf32>
    %c0_57 = arith.constant 0 : index
    %c0_58 = arith.constant 0 : index
    %c0_59 = arith.constant 0 : index
    %67 = vector.load %arg5[%c0_57, %c0_58, %c0_59] : memref<1x1x128xf32, #tpu.memory_space<vmem>>, vector<1x1x128xf32>
    %68 = vector.shape_cast %67 : vector<1x1x128xf32> to vector<1x128xf32>
    %69 = vector.shape_cast %66 : vector<1x128xf32> to vector<1x1x128xf32>
    tpu.vector_store %arg5[%c0_57, %c0_58, %c0_59], %69 {strides = array<i32>} : memref<1x1x128xf32, #tpu.memory_space<vmem>>, vector<1x1x128xf32>,
    return
  }
  func.func @transform_0(%arg0: i32) -> (i32, i32, i32, i32) {
    %c0_i32 = arith.constant 0 : i32
    %c0_i32_0 = arith.constant 0 : i32
    %c0_i32_1 = arith.constant 0 : i32
    %c0_i32_2 = arith.constant 0 : i32
    return %arg0, %c0_i32, %c0_i32_0, %c0_i32_1 : i32, i32, i32, i32
  }
  func.func @transform_1(%arg0: i32) -> (i32, i32) {
    %c0_i32 = arith.constant 0 : i32
    %c0_i32_0 = arith.constant 0 : i32
    %c0_i32_1 = arith.constant 0 : i32
    return %c0_i32, %c0_i32_0 : i32, i32
  }
  func.func @transform_2(%arg0: i32) -> (i32, i32, i32) {
    %c0_i32 = arith.constant 0 : i32
    %c0_i32_0 = arith.constant 0 : i32
    %c0_i32_1 = arith.constant 0 : i32
    return %arg0, %c0_i32, %c0_i32_0 : i32, i32, i32
  }
  func.func @transform_3(%arg0: i32) -> (i32, i32, i32) {
    %c0_i32 = arith.constant 0 : i32
    %c0_i32_0 = arith.constant 0 : i32
    %c0_i32_1 = arith.constant 0 : i32
    return %arg0, %c0_i32, %c0_i32_0 : i32, i32, i32
  }
  func.func @transform_4(%arg0: i32) -> (i32, i32, i32) {
    %c0_i32 = arith.constant 0 : i32
    %c0_i32_0 = arith.constant 0 : i32
    %c0_i32_1 = arith.constant 0 : i32
    return %arg0, %c0_i32, %c0_i32_0 : i32, i32, i32
  }
}

module attributes {stable_mosaic.version = 11 : i64} {
  func.func @_bn_act_kernel(%arg0: i32, %arg1: memref<128x128xbf16, #tpu.memory_space<vmem>>, %arg2: memref<1x128xf32, #tpu.memory_space<vmem>>, %arg3: memref<1x128xf32, #tpu.memory_space<vmem>>, %arg4: memref<128x128xbf16, #tpu.memory_space<vmem>>) attributes {dimension_semantics = [#tpu.dimension_semantics<parallel>], iteration_bounds = array<i64: 1>, scalar_prefetch = 0 : i64, scratch_operands = 0 : i64, tpu.core_type = #tpu.core_type<tc>, window_params = [{transform_indices = @transform_0, window_bounds = array<i64: 128, 128>}, {pipeline_mode = #tpu.pipeline_mode<synchronous>, transform_indices = @transform_1, window_bounds = array<i64: 1, 128>}, {pipeline_mode = #tpu.pipeline_mode<synchronous>, transform_indices = @transform_2, window_bounds = array<i64: 1, 128>}, {transform_indices = @transform_3, window_bounds = array<i64: 128, 128>}]} {
    %c0 = arith.constant 0 : index
    %c0_0 = arith.constant 0 : index
    %0 = vector.load %arg1[%c0, %c0_0] : memref<128x128xbf16, #tpu.memory_space<vmem>>, vector<128x128xbf16>
    %1 = arith.extf %0 : vector<128x128xbf16> to vector<128x128xf32>
    %c0_1 = arith.constant 0 : index
    %c0_2 = arith.constant 0 : index
    %2 = vector.load %arg2[%c0_1, %c0_2] : memref<1x128xf32, #tpu.memory_space<vmem>>, vector<1x128xf32>
    %3 = vector.broadcast %2 : vector<1x128xf32> to vector<128x128xf32>
    %4 = arith.mulf %1, %3 : vector<128x128xf32>
    %c0_3 = arith.constant 0 : index
    %c0_4 = arith.constant 0 : index
    %5 = vector.load %arg3[%c0_3, %c0_4] : memref<1x128xf32, #tpu.memory_space<vmem>>, vector<1x128xf32>
    %6 = vector.broadcast %5 : vector<1x128xf32> to vector<128x128xf32>
    %7 = arith.addf %4, %6 : vector<128x128xf32>
    %cst = arith.constant 0.000000e+00 : f32
    %8 = vector.broadcast %cst : f32 to vector<128x128xf32>
    %9 = arith.maximumf %7, %8 : vector<128x128xf32>
    %10 = arith.truncf %9 : vector<128x128xf32> to vector<128x128xbf16>
    %c0_5 = arith.constant 0 : index
    %c0_6 = arith.constant 0 : index
    %11 = vector.load %arg4[%c0_5, %c0_6] : memref<128x128xbf16, #tpu.memory_space<vmem>>, vector<128x128xbf16>
    tpu.vector_store %arg4[%c0_5, %c0_6], %10 {strides = array<i32>} : memref<128x128xbf16, #tpu.memory_space<vmem>>, vector<128x128xbf16>,
    return
  }
  func.func @transform_0(%arg0: i32) -> (i32, i32) {
    %c0_i32 = arith.constant 0 : i32
    %c0_i32_0 = arith.constant 0 : i32
    return %arg0, %c0_i32 : i32, i32
  }
  func.func @transform_1(%arg0: i32) -> (i32, i32) {
    %c0_i32 = arith.constant 0 : i32
    %c0_i32_0 = arith.constant 0 : i32
    %c0_i32_1 = arith.constant 0 : i32
    return %c0_i32, %c0_i32_0 : i32, i32
  }
  func.func @transform_2(%arg0: i32) -> (i32, i32) {
    %c0_i32 = arith.constant 0 : i32
    %c0_i32_0 = arith.constant 0 : i32
    %c0_i32_1 = arith.constant 0 : i32
    return %c0_i32, %c0_i32_0 : i32, i32
  }
  func.func @transform_3(%arg0: i32) -> (i32, i32) {
    %c0_i32 = arith.constant 0 : i32
    %c0_i32_0 = arith.constant 0 : i32
    return %arg0, %c0_i32 : i32, i32
  }
}

module attributes {stable_mosaic.version = 11 : i64} {
  func.func @_conv_sc_stats_kernel(%arg0: i32, %arg1: memref<1x10x10x128xbf16, #tpu.memory_space<vmem>>, %arg2: memref<1152x128xbf16, #tpu.memory_space<vmem>>, %arg3: memref<1x64x4xbf16, #tpu.memory_space<vmem>>, %arg4: memref<4x128xbf16, #tpu.memory_space<vmem>>, %arg5: memref<1x64x128xbf16, #tpu.memory_space<vmem>>, %arg6: memref<1x64x128xbf16, #tpu.memory_space<vmem>>, %arg7: memref<1x1x128xf32, #tpu.memory_space<vmem>>, %arg8: memref<1x1x128xf32, #tpu.memory_space<vmem>>, %arg9: memref<1x1x128xf32, #tpu.memory_space<vmem>>, %arg10: memref<1x1x128xf32, #tpu.memory_space<vmem>>, %arg11: memref<64x1152xbf16, #tpu.memory_space<vmem>>) attributes {dimension_semantics = [#tpu.dimension_semantics<parallel>], iteration_bounds = array<i64: 2>, scalar_prefetch = 0 : i64, scratch_operands = 1 : i64, tpu.core_type = #tpu.core_type<tc>, window_params = [{transform_indices = @transform_0, window_bounds = array<i64: 1, 10, 10, 128>}, {pipeline_mode = #tpu.pipeline_mode<synchronous>, transform_indices = @transform_1, window_bounds = array<i64: 1152, 128>}, {transform_indices = @transform_2, window_bounds = array<i64: 1, 64, 4>}, {pipeline_mode = #tpu.pipeline_mode<synchronous>, transform_indices = @transform_3, window_bounds = array<i64: 4, 128>}, {transform_indices = @transform_4, window_bounds = array<i64: 1, 64, 128>}, {transform_indices = @transform_5, window_bounds = array<i64: 1, 64, 128>}, {transform_indices = @transform_6, window_bounds = array<i64: 1, 1, 128>}, {transform_indices = @transform_7, window_bounds = array<i64: 1, 1, 128>}, {transform_indices = @transform_8, window_bounds = array<i64: 1, 1, 128>}, {transform_indices = @transform_9, window_bounds = array<i64: 1, 1, 128>}]} {
    %c0 = arith.constant 0 : index
    %c0_0 = arith.constant 0 : index
    %c0_1 = arith.constant 0 : index
    %c0_2 = arith.constant 0 : index
    %0 = vector.load %arg1[%c0, %c0_0, %c0_1, %c0_2] : memref<1x10x10x128xbf16, #tpu.memory_space<vmem>>, vector<1x8x8x128xbf16>
    %1 = vector.shape_cast %0 : vector<1x8x8x128xbf16> to vector<8x8x128xbf16>
    %2 = vector.shape_cast %1 : vector<8x8x128xbf16> to vector<64x128xbf16>
    %c0_3 = arith.constant 0 : index
    %c0_4 = arith.constant 0 : index
    %3 = vector.load %arg11[%c0_3, %c0_4] : memref<64x1152xbf16, #tpu.memory_space<vmem>>, vector<64x128xbf16>
    tpu.vector_store %arg11[%c0_3, %c0_4], %2 {strides = array<i32>} : memref<64x1152xbf16, #tpu.memory_space<vmem>>, vector<64x128xbf16>,
    %c0_5 = arith.constant 0 : index
    %c0_6 = arith.constant 0 : index
    %c1 = arith.constant 1 : index
    %c0_7 = arith.constant 0 : index
    %4 = vector.load %arg1[%c0_5, %c0_6, %c1, %c0_7] : memref<1x10x10x128xbf16, #tpu.memory_space<vmem>>, vector<1x8x8x128xbf16>
    %5 = vector.shape_cast %4 : vector<1x8x8x128xbf16> to vector<8x8x128xbf16>
    %6 = vector.shape_cast %5 : vector<8x8x128xbf16> to vector<64x128xbf16>
    %c0_8 = arith.constant 0 : index
    %c128 = arith.constant 128 : index
    %7 = vector.load %arg11[%c0_8, %c128] : memref<64x1152xbf16, #tpu.memory_space<vmem>>, vector<64x128xbf16>
    tpu.vector_store %arg11[%c0_8, %c128], %6 {strides = array<i32>} : memref<64x1152xbf16, #tpu.memory_space<vmem>>, vector<64x128xbf16>,
    %c0_9 = arith.constant 0 : index
    %c0_10 = arith.constant 0 : index
    %c2 = arith.constant 2 : index
    %c0_11 = arith.constant 0 : index
    %8 = vector.load %arg1[%c0_9, %c0_10, %c2, %c0_11] : memref<1x10x10x128xbf16, #tpu.memory_space<vmem>>, vector<1x8x8x128xbf16>
    %9 = vector.shape_cast %8 : vector<1x8x8x128xbf16> to vector<8x8x128xbf16>
    %10 = vector.shape_cast %9 : vector<8x8x128xbf16> to vector<64x128xbf16>
    %c0_12 = arith.constant 0 : index
    %c256 = arith.constant 256 : index
    %11 = vector.load %arg11[%c0_12, %c256] : memref<64x1152xbf16, #tpu.memory_space<vmem>>, vector<64x128xbf16>
    tpu.vector_store %arg11[%c0_12, %c256], %10 {strides = array<i32>} : memref<64x1152xbf16, #tpu.memory_space<vmem>>, vector<64x128xbf16>,
    %c0_13 = arith.constant 0 : index
    %c1_14 = arith.constant 1 : index
    %c0_15 = arith.constant 0 : index
    %c0_16 = arith.constant 0 : index
    %12 = vector.load %arg1[%c0_13, %c1_14, %c0_15, %c0_16] : memref<1x10x10x128xbf16, #tpu.memory_space<vmem>>, vector<1x8x8x128xbf16>
    %13 = vector.shape_cast %12 : vector<1x8x8x128xbf16> to vector<8x8x128xbf16>
    %14 = vector.shape_cast %13 : vector<8x8x128xbf16> to vector<64x128xbf16>
    %c0_17 = arith.constant 0 : index
    %c384 = arith.constant 384 : index
    %15 = vector.load %arg11[%c0_17, %c384] : memref<64x1152xbf16, #tpu.memory_space<vmem>>, vector<64x128xbf16>
    tpu.vector_store %arg11[%c0_17, %c384], %14 {strides = array<i32>} : memref<64x1152xbf16, #tpu.memory_space<vmem>>, vector<64x128xbf16>,
    %c0_18 = arith.constant 0 : index
    %c1_19 = arith.constant 1 : index
    %c1_20 = arith.constant 1 : index
    %c0_21 = arith.constant 0 : index
    %16 = vector.load %arg1[%c0_18, %c1_19, %c1_20, %c0_21] : memref<1x10x10x128xbf16, #tpu.memory_space<vmem>>, vector<1x8x8x128xbf16>
    %17 = vector.shape_cast %16 : vector<1x8x8x128xbf16> to vector<8x8x128xbf16>
    %18 = vector.shape_cast %17 : vector<8x8x128xbf16> to vector<64x128xbf16>
    %c0_22 = arith.constant 0 : index
    %c512 = arith.constant 512 : index
    %19 = vector.load %arg11[%c0_22, %c512] : memref<64x1152xbf16, #tpu.memory_space<vmem>>, vector<64x128xbf16>
    tpu.vector_store %arg11[%c0_22, %c512], %18 {strides = array<i32>} : memref<64x1152xbf16, #tpu.memory_space<vmem>>, vector<64x128xbf16>,
    %c0_23 = arith.constant 0 : index
    %c1_24 = arith.constant 1 : index
    %c2_25 = arith.constant 2 : index
    %c0_26 = arith.constant 0 : index
    %20 = vector.load %arg1[%c0_23, %c1_24, %c2_25, %c0_26] : memref<1x10x10x128xbf16, #tpu.memory_space<vmem>>, vector<1x8x8x128xbf16>
    %21 = vector.shape_cast %20 : vector<1x8x8x128xbf16> to vector<8x8x128xbf16>
    %22 = vector.shape_cast %21 : vector<8x8x128xbf16> to vector<64x128xbf16>
    %c0_27 = arith.constant 0 : index
    %c640 = arith.constant 640 : index
    %23 = vector.load %arg11[%c0_27, %c640] : memref<64x1152xbf16, #tpu.memory_space<vmem>>, vector<64x128xbf16>
    tpu.vector_store %arg11[%c0_27, %c640], %22 {strides = array<i32>} : memref<64x1152xbf16, #tpu.memory_space<vmem>>, vector<64x128xbf16>,
    %c0_28 = arith.constant 0 : index
    %c2_29 = arith.constant 2 : index
    %c0_30 = arith.constant 0 : index
    %c0_31 = arith.constant 0 : index
    %24 = vector.load %arg1[%c0_28, %c2_29, %c0_30, %c0_31] : memref<1x10x10x128xbf16, #tpu.memory_space<vmem>>, vector<1x8x8x128xbf16>
    %25 = vector.shape_cast %24 : vector<1x8x8x128xbf16> to vector<8x8x128xbf16>
    %26 = vector.shape_cast %25 : vector<8x8x128xbf16> to vector<64x128xbf16>
    %c0_32 = arith.constant 0 : index
    %c768 = arith.constant 768 : index
    %27 = vector.load %arg11[%c0_32, %c768] : memref<64x1152xbf16, #tpu.memory_space<vmem>>, vector<64x128xbf16>
    tpu.vector_store %arg11[%c0_32, %c768], %26 {strides = array<i32>} : memref<64x1152xbf16, #tpu.memory_space<vmem>>, vector<64x128xbf16>,
    %c0_33 = arith.constant 0 : index
    %c2_34 = arith.constant 2 : index
    %c1_35 = arith.constant 1 : index
    %c0_36 = arith.constant 0 : index
    %28 = vector.load %arg1[%c0_33, %c2_34, %c1_35, %c0_36] : memref<1x10x10x128xbf16, #tpu.memory_space<vmem>>, vector<1x8x8x128xbf16>
    %29 = vector.shape_cast %28 : vector<1x8x8x128xbf16> to vector<8x8x128xbf16>
    %30 = vector.shape_cast %29 : vector<8x8x128xbf16> to vector<64x128xbf16>
    %c0_37 = arith.constant 0 : index
    %c896 = arith.constant 896 : index
    %31 = vector.load %arg11[%c0_37, %c896] : memref<64x1152xbf16, #tpu.memory_space<vmem>>, vector<64x128xbf16>
    tpu.vector_store %arg11[%c0_37, %c896], %30 {strides = array<i32>} : memref<64x1152xbf16, #tpu.memory_space<vmem>>, vector<64x128xbf16>,
    %c0_38 = arith.constant 0 : index
    %c2_39 = arith.constant 2 : index
    %c2_40 = arith.constant 2 : index
    %c0_41 = arith.constant 0 : index
    %32 = vector.load %arg1[%c0_38, %c2_39, %c2_40, %c0_41] : memref<1x10x10x128xbf16, #tpu.memory_space<vmem>>, vector<1x8x8x128xbf16>
    %33 = vector.shape_cast %32 : vector<1x8x8x128xbf16> to vector<8x8x128xbf16>
    %34 = vector.shape_cast %33 : vector<8x8x128xbf16> to vector<64x128xbf16>
    %c0_42 = arith.constant 0 : index
    %c1024 = arith.constant 1024 : index
    %35 = vector.load %arg11[%c0_42, %c1024] : memref<64x1152xbf16, #tpu.memory_space<vmem>>, vector<64x128xbf16>
    tpu.vector_store %arg11[%c0_42, %c1024], %34 {strides = array<i32>} : memref<64x1152xbf16, #tpu.memory_space<vmem>>, vector<64x128xbf16>,
    %c0_43 = arith.constant 0 : index
    %c0_44 = arith.constant 0 : index
    %36 = vector.load %arg11[%c0_43, %c0_44] : memref<64x1152xbf16, #tpu.memory_space<vmem>>, vector<64x1152xbf16>
    %c0_45 = arith.constant 0 : index
    %c0_46 = arith.constant 0 : index
    %37 = vector.load %arg2[%c0_45, %c0_46] : memref<1152x128xbf16, #tpu.memory_space<vmem>>, vector<1152x128xbf16>
    %cst = arith.constant dense<0.000000e+00> : vector<64x128xf32>
    %38 = tpu.matmul %36, %37, %cst {dimension_numbers = #tpu.dot_dimension_numbers<[1], [0], [0], [1], [0, 0, 1, 1], [], []>} : vector<64x1152xbf16>, vector<1152x128xbf16>, vector<64x128xf32> -> vector<64x128xf32>
    %c0_47 = arith.constant 0 : index
    %c0_48 = arith.constant 0 : index
    %c0_49 = arith.constant 0 : index
    %39 = vector.load %arg3[%c0_47, %c0_48, %c0_49] : memref<1x64x4xbf16, #tpu.memory_space<vmem>>, vector<1x64x4xbf16>
    %40 = vector.shape_cast %39 : vector<1x64x4xbf16> to vector<64x4xbf16>
    %c0_50 = arith.constant 0 : index
    %c0_51 = arith.constant 0 : index
    %41 = vector.load %arg4[%c0_50, %c0_51] : memref<4x128xbf16, #tpu.memory_space<vmem>>, vector<4x128xbf16>
    %cst_52 = arith.constant dense<0.000000e+00> : vector<64x128xf32>
    %42 = tpu.matmul %40, %41, %cst_52 {dimension_numbers = #tpu.dot_dimension_numbers<[1], [0], [0], [1], [0, 0, 1, 1], [], []>} : vector<64x4xbf16>, vector<4x128xbf16>, vector<64x128xf32> -> vector<64x128xf32>
    %43 = arith.truncf %38 : vector<64x128xf32> to vector<64x128xbf16>
    %c0_53 = arith.constant 0 : index
    %c0_54 = arith.constant 0 : index
    %c0_55 = arith.constant 0 : index
    %44 = vector.load %arg5[%c0_53, %c0_54, %c0_55] : memref<1x64x128xbf16, #tpu.memory_space<vmem>>, vector<1x64x128xbf16>
    %45 = vector.shape_cast %44 : vector<1x64x128xbf16> to vector<64x128xbf16>
    %46 = vector.shape_cast %43 : vector<64x128xbf16> to vector<1x64x128xbf16>
    tpu.vector_store %arg5[%c0_53, %c0_54, %c0_55], %46 {strides = array<i32>} : memref<1x64x128xbf16, #tpu.memory_space<vmem>>, vector<1x64x128xbf16>,
    %47 = arith.truncf %42 : vector<64x128xf32> to vector<64x128xbf16>
    %c0_56 = arith.constant 0 : index
    %c0_57 = arith.constant 0 : index
    %c0_58 = arith.constant 0 : index
    %48 = vector.load %arg6[%c0_56, %c0_57, %c0_58] : memref<1x64x128xbf16, #tpu.memory_space<vmem>>, vector<1x64x128xbf16>
    %49 = vector.shape_cast %48 : vector<1x64x128xbf16> to vector<64x128xbf16>
    %50 = vector.shape_cast %47 : vector<64x128xbf16> to vector<1x64x128xbf16>
    tpu.vector_store %arg6[%c0_56, %c0_57, %c0_58], %50 {strides = array<i32>} : memref<1x64x128xbf16, #tpu.memory_space<vmem>>, vector<1x64x128xbf16>,
    %cst_59 = arith.constant dense<0.000000e+00> : vector<128xf32>
    %51 = vector.multi_reduction <add>, %38, %cst_59 [0] : vector<64x128xf32> to vector<128xf32>
    %52 = vector.shape_cast %51 : vector<128xf32> to vector<1x128xf32>
    %c0_60 = arith.constant 0 : index
    %c0_61 = arith.constant 0 : index
    %c0_62 = arith.constant 0 : index
    %53 = vector.load %arg7[%c0_60, %c0_61, %c0_62] : memref<1x1x128xf32, #tpu.memory_space<vmem>>, vector<1x1x128xf32>
    %54 = vector.shape_cast %53 : vector<1x1x128xf32> to vector<1x128xf32>
    %55 = vector.shape_cast %52 : vector<1x128xf32> to vector<1x1x128xf32>
    tpu.vector_store %arg7[%c0_60, %c0_61, %c0_62], %55 {strides = array<i32>} : memref<1x1x128xf32, #tpu.memory_space<vmem>>, vector<1x1x128xf32>,
    %56 = arith.mulf %38, %38 : vector<64x128xf32>
    %cst_63 = arith.constant dense<0.000000e+00> : vector<128xf32>
    %57 = vector.multi_reduction <add>, %56, %cst_63 [0] : vector<64x128xf32> to vector<128xf32>
    %58 = vector.shape_cast %57 : vector<128xf32> to vector<1x128xf32>
    %c0_64 = arith.constant 0 : index
    %c0_65 = arith.constant 0 : index
    %c0_66 = arith.constant 0 : index
    %59 = vector.load %arg8[%c0_64, %c0_65, %c0_66] : memref<1x1x128xf32, #tpu.memory_space<vmem>>, vector<1x1x128xf32>
    %60 = vector.shape_cast %59 : vector<1x1x128xf32> to vector<1x128xf32>
    %61 = vector.shape_cast %58 : vector<1x128xf32> to vector<1x1x128xf32>
    tpu.vector_store %arg8[%c0_64, %c0_65, %c0_66], %61 {strides = array<i32>} : memref<1x1x128xf32, #tpu.memory_space<vmem>>, vector<1x1x128xf32>,
    %cst_67 = arith.constant dense<0.000000e+00> : vector<128xf32>
    %62 = vector.multi_reduction <add>, %42, %cst_67 [0] : vector<64x128xf32> to vector<128xf32>
    %63 = vector.shape_cast %62 : vector<128xf32> to vector<1x128xf32>
    %c0_68 = arith.constant 0 : index
    %c0_69 = arith.constant 0 : index
    %c0_70 = arith.constant 0 : index
    %64 = vector.load %arg9[%c0_68, %c0_69, %c0_70] : memref<1x1x128xf32, #tpu.memory_space<vmem>>, vector<1x1x128xf32>
    %65 = vector.shape_cast %64 : vector<1x1x128xf32> to vector<1x128xf32>
    %66 = vector.shape_cast %63 : vector<1x128xf32> to vector<1x1x128xf32>
    tpu.vector_store %arg9[%c0_68, %c0_69, %c0_70], %66 {strides = array<i32>} : memref<1x1x128xf32, #tpu.memory_space<vmem>>, vector<1x1x128xf32>,
    %67 = arith.mulf %42, %42 : vector<64x128xf32>
    %cst_71 = arith.constant dense<0.000000e+00> : vector<128xf32>
    %68 = vector.multi_reduction <add>, %67, %cst_71 [0] : vector<64x128xf32> to vector<128xf32>
    %69 = vector.shape_cast %68 : vector<128xf32> to vector<1x128xf32>
    %c0_72 = arith.constant 0 : index
    %c0_73 = arith.constant 0 : index
    %c0_74 = arith.constant 0 : index
    %70 = vector.load %arg10[%c0_72, %c0_73, %c0_74] : memref<1x1x128xf32, #tpu.memory_space<vmem>>, vector<1x1x128xf32>
    %71 = vector.shape_cast %70 : vector<1x1x128xf32> to vector<1x128xf32>
    %72 = vector.shape_cast %69 : vector<1x128xf32> to vector<1x1x128xf32>
    tpu.vector_store %arg10[%c0_72, %c0_73, %c0_74], %72 {strides = array<i32>} : memref<1x1x128xf32, #tpu.memory_space<vmem>>, vector<1x1x128xf32>,
    return
  }
  func.func @transform_0(%arg0: i32) -> (i32, i32, i32, i32) {
    %c0_i32 = arith.constant 0 : i32
    %c0_i32_0 = arith.constant 0 : i32
    %c0_i32_1 = arith.constant 0 : i32
    %c0_i32_2 = arith.constant 0 : i32
    return %arg0, %c0_i32, %c0_i32_0, %c0_i32_1 : i32, i32, i32, i32
  }
  func.func @transform_1(%arg0: i32) -> (i32, i32) {
    %c0_i32 = arith.constant 0 : i32
    %c0_i32_0 = arith.constant 0 : i32
    %c0_i32_1 = arith.constant 0 : i32
    return %c0_i32, %c0_i32_0 : i32, i32
  }
  func.func @transform_2(%arg0: i32) -> (i32, i32, i32) {
    %c0_i32 = arith.constant 0 : i32
    %c0_i32_0 = arith.constant 0 : i32
    %c0_i32_1 = arith.constant 0 : i32
    return %arg0, %c0_i32, %c0_i32_0 : i32, i32, i32
  }
  func.func @transform_3(%arg0: i32) -> (i32, i32) {
    %c0_i32 = arith.constant 0 : i32
    %c0_i32_0 = arith.constant 0 : i32
    %c0_i32_1 = arith.constant 0 : i32
    return %c0_i32, %c0_i32_0 : i32, i32
  }
  func.func @transform_4(%arg0: i32) -> (i32, i32, i32) {
    %c0_i32 = arith.constant 0 : i32
    %c0_i32_0 = arith.constant 0 : i32
    %c0_i32_1 = arith.constant 0 : i32
    return %arg0, %c0_i32, %c0_i32_0 : i32, i32, i32
  }
  func.func @transform_5(%arg0: i32) -> (i32, i32, i32) {
    %c0_i32 = arith.constant 0 : i32
    %c0_i32_0 = arith.constant 0 : i32
    %c0_i32_1 = arith.constant 0 : i32
    return %arg0, %c0_i32, %c0_i32_0 : i32, i32, i32
  }
  func.func @transform_6(%arg0: i32) -> (i32, i32, i32) {
    %c0_i32 = arith.constant 0 : i32
    %c0_i32_0 = arith.constant 0 : i32
    %c0_i32_1 = arith.constant 0 : i32
    return %arg0, %c0_i32, %c0_i32_0 : i32, i32, i32
  }
  func.func @transform_7(%arg0: i32) -> (i32, i32, i32) {
    %c0_i32 = arith.constant 0 : i32
    %c0_i32_0 = arith.constant 0 : i32
    %c0_i32_1 = arith.constant 0 : i32
    return %arg0, %c0_i32, %c0_i32_0 : i32, i32, i32
  }
  func.func @transform_8(%arg0: i32) -> (i32, i32, i32) {
    %c0_i32 = arith.constant 0 : i32
    %c0_i32_0 = arith.constant 0 : i32
    %c0_i32_1 = arith.constant 0 : i32
    return %arg0, %c0_i32, %c0_i32_0 : i32, i32, i32
  }
  func.func @transform_9(%arg0: i32) -> (i32, i32, i32) {
    %c0_i32 = arith.constant 0 : i32
    %c0_i32_0 = arith.constant 0 : i32
    %c0_i32_1 = arith.constant 0 : i32
    return %arg0, %c0_i32, %c0_i32_0 : i32, i32, i32
  }
}

module attributes {stable_mosaic.version = 11 : i64} {
  func.func @_bn_add_act_kernel(%arg0: i32, %arg1: memref<128x128xbf16, #tpu.memory_space<vmem>>, %arg2: memref<1x128xf32, #tpu.memory_space<vmem>>, %arg3: memref<1x128xf32, #tpu.memory_space<vmem>>, %arg4: memref<128x128xbf16, #tpu.memory_space<vmem>>, %arg5: memref<1x128xf32, #tpu.memory_space<vmem>>, %arg6: memref<1x128xf32, #tpu.memory_space<vmem>>, %arg7: memref<128x128xf32, #tpu.memory_space<vmem>>) attributes {dimension_semantics = [#tpu.dimension_semantics<parallel>], iteration_bounds = array<i64: 1>, scalar_prefetch = 0 : i64, scratch_operands = 0 : i64, tpu.core_type = #tpu.core_type<tc>, window_params = [{transform_indices = @transform_0, window_bounds = array<i64: 128, 128>}, {pipeline_mode = #tpu.pipeline_mode<synchronous>, transform_indices = @transform_1, window_bounds = array<i64: 1, 128>}, {pipeline_mode = #tpu.pipeline_mode<synchronous>, transform_indices = @transform_2, window_bounds = array<i64: 1, 128>}, {transform_indices = @transform_3, window_bounds = array<i64: 128, 128>}, {pipeline_mode = #tpu.pipeline_mode<synchronous>, transform_indices = @transform_4, window_bounds = array<i64: 1, 128>}, {pipeline_mode = #tpu.pipeline_mode<synchronous>, transform_indices = @transform_5, window_bounds = array<i64: 1, 128>}, {transform_indices = @transform_6, window_bounds = array<i64: 128, 128>}]} {
    %c0 = arith.constant 0 : index
    %c0_0 = arith.constant 0 : index
    %0 = vector.load %arg1[%c0, %c0_0] : memref<128x128xbf16, #tpu.memory_space<vmem>>, vector<128x128xbf16>
    %1 = arith.extf %0 : vector<128x128xbf16> to vector<128x128xf32>
    %c0_1 = arith.constant 0 : index
    %c0_2 = arith.constant 0 : index
    %2 = vector.load %arg2[%c0_1, %c0_2] : memref<1x128xf32, #tpu.memory_space<vmem>>, vector<1x128xf32>
    %3 = vector.broadcast %2 : vector<1x128xf32> to vector<128x128xf32>
    %4 = arith.mulf %1, %3 : vector<128x128xf32>
    %c0_3 = arith.constant 0 : index
    %c0_4 = arith.constant 0 : index
    %5 = vector.load %arg3[%c0_3, %c0_4] : memref<1x128xf32, #tpu.memory_space<vmem>>, vector<1x128xf32>
    %6 = vector.broadcast %5 : vector<1x128xf32> to vector<128x128xf32>
    %7 = arith.addf %4, %6 : vector<128x128xf32>
    %c0_5 = arith.constant 0 : index
    %c0_6 = arith.constant 0 : index
    %8 = vector.load %arg4[%c0_5, %c0_6] : memref<128x128xbf16, #tpu.memory_space<vmem>>, vector<128x128xbf16>
    %9 = arith.extf %8 : vector<128x128xbf16> to vector<128x128xf32>
    %c0_7 = arith.constant 0 : index
    %c0_8 = arith.constant 0 : index
    %10 = vector.load %arg5[%c0_7, %c0_8] : memref<1x128xf32, #tpu.memory_space<vmem>>, vector<1x128xf32>
    %11 = vector.broadcast %10 : vector<1x128xf32> to vector<128x128xf32>
    %12 = arith.mulf %9, %11 : vector<128x128xf32>
    %13 = arith.addf %7, %12 : vector<128x128xf32>
    %c0_9 = arith.constant 0 : index
    %c0_10 = arith.constant 0 : index
    %14 = vector.load %arg6[%c0_9, %c0_10] : memref<1x128xf32, #tpu.memory_space<vmem>>, vector<1x128xf32>
    %15 = vector.broadcast %14 : vector<1x128xf32> to vector<128x128xf32>
    %16 = arith.addf %13, %15 : vector<128x128xf32>
    %cst = arith.constant 0.000000e+00 : f32
    %17 = vector.broadcast %cst : f32 to vector<128x128xf32>
    %18 = arith.maximumf %16, %17 : vector<128x128xf32>
    %c0_11 = arith.constant 0 : index
    %c0_12 = arith.constant 0 : index
    %19 = vector.load %arg7[%c0_11, %c0_12] : memref<128x128xf32, #tpu.memory_space<vmem>>, vector<128x128xf32>
    tpu.vector_store %arg7[%c0_11, %c0_12], %18 {strides = array<i32>} : memref<128x128xf32, #tpu.memory_space<vmem>>, vector<128x128xf32>,
    return
  }
  func.func @transform_0(%arg0: i32) -> (i32, i32) {
    %c0_i32 = arith.constant 0 : i32
    %c0_i32_0 = arith.constant 0 : i32
    return %arg0, %c0_i32 : i32, i32
  }
  func.func @transform_1(%arg0: i32) -> (i32, i32) {
    %c0_i32 = arith.constant 0 : i32
    %c0_i32_0 = arith.constant 0 : i32
    %c0_i32_1 = arith.constant 0 : i32
    return %c0_i32, %c0_i32_0 : i32, i32
  }
  func.func @transform_2(%arg0: i32) -> (i32, i32) {
    %c0_i32 = arith.constant 0 : i32
    %c0_i32_0 = arith.constant 0 : i32
    %c0_i32_1 = arith.constant 0 : i32
    return %c0_i32, %c0_i32_0 : i32, i32
  }
  func.func @transform_3(%arg0: i32) -> (i32, i32) {
    %c0_i32 = arith.constant 0 : i32
    %c0_i32_0 = arith.constant 0 : i32
    return %arg0, %c0_i32 : i32, i32
  }
  func.func @transform_4(%arg0: i32) -> (i32, i32) {
    %c0_i32 = arith.constant 0 : i32
    %c0_i32_0 = arith.constant 0 : i32
    %c0_i32_1 = arith.constant 0 : i32
    return %c0_i32, %c0_i32_0 : i32, i32
  }
  func.func @transform_5(%arg0: i32) -> (i32, i32) {
    %c0_i32 = arith.constant 0 : i32
    %c0_i32_0 = arith.constant 0 : i32
    %c0_i32_1 = arith.constant 0 : i32
    return %c0_i32, %c0_i32_0 : i32, i32
  }
  func.func @transform_6(%arg0: i32) -> (i32, i32) {
    %c0_i32 = arith.constant 0 : i32
    %c0_i32_0 = arith.constant 0 : i32
    return %arg0, %c0_i32 : i32, i32
  }
}

</mosaic_0001>

<llo_original>
// kernel: basic_block_forward.5
$region0: #{basic_block_forward.5}
  #allocation0 [shape = 'u32[]', space=smem, size = 0x4, offset = 0x4, fixed_abs, tag = 'smem constant byte address 0x4 - core index']
  #allocation1 [shape = 'u32[144,128]{1,0:T(1,128)}', space=vmem, size = 0x12000, scoped, tag = 'internal scratch']
  %s0 = inlined_call_operand.vmem [shape: bf16[128,128], index: 0, kind: input, shape index: {}]
  %s1 = inlined_call_operand.vmem [shape: f32[1,128], index: 1, kind: input, shape index: {}]
  %s2 = inlined_call_operand.vmem [shape: f32[1,128], index: 2, kind: input, shape index: {}]
  %s3 = inlined_call_operand.vmem [shape: bf16[128,128], index: 3, kind: output, shape index: {}]
  %s4 = sld [smem:[#allocation0]]
  $region22: #{basic_block_forward.5} parent=0
    _
  %s6 = ssub.s32 1, %s4
  %s7 = scalar_select 0, %s6, %s4
  // Predicated region
  $region2: #{basic_block_forward.5} parent=0 // pred_check
    _
  $region3: #{basic_block_forward.5} parent=0 // pred_check_branch
    %9 = sbr.rel (0) target = $region5
  $region4: #{basic_block_forward.5} parent=0 // pred_region
    _
  $region5: #{basic_block_forward.5} parent=0 // pred_fallthru
    _
  // Predicated region
  $region6: #{basic_block_forward.5} parent=0 // pred_check
    _
  $region7: #{basic_block_forward.5} parent=0 // pred_check_branch
    %11 = sbr.rel (0) target = $region9
  $region8: #{basic_block_forward.5} parent=0 // pred_region
    _
  $region9: #{basic_block_forward.5} parent=0 // pred_fallthru
    _
  // Predicated region
  $region10: #{basic_block_forward.5} parent=0 // pred_check
    _
  $region11: #{basic_block_forward.5} parent=0 // pred_check_branch
    %13 = sbr.rel (0) target = $region13
  $region12: #{basic_block_forward.5} parent=0 // pred_region
    _
  $region13: #{basic_block_forward.5} parent=0 // pred_fallthru
    _
  %v14 = vld [vmem:[%s0] sm:$0xf]
  %v15 = vld [vmem:[%s0 + $0x4] sm:$0xf]
  %v16 = vld [vmem:[%s0 + $0x8] sm:$0xf]
  %v17 = vld [vmem:[%s0 + $0xc] sm:$0xf]
  %v18 = vld [vmem:[%s0 + $0x10] sm:$0xf]
  %v19 = vld [vmem:[%s0 + $0x14] sm:$0xf]
  %v20 = vld [vmem:[%s0 + $0x18] sm:$0xf]
  %v21 = vld [vmem:[%s0 + $0x1c] sm:$0xf]
  %v22 = vld [vmem:[%s0 + $0x20] sm:$0xf]
  %v23 = vld [vmem:[%s0 + $0x24] sm:$0xf]
  %v24 = vld [vmem:[%s0 + $0x28] sm:$0xf]
  %v25 = vld [vmem:[%s0 + $0x2c] sm:$0xf]
  %v26 = vld [vmem:[%s0 + $0x30] sm:$0xf]
  %v27 = vld [vmem:[%s0 + $0x34] sm:$0xf]
  %v28 = vld [vmem:[%s0 + $0x38] sm:$0xf]
  %v29 = vld [vmem:[%s0 + $0x3c] sm:$0xf]
  %v30 = vunpack.c.l.bf16 %v14
  %v31 = vunpack.c.l.bf16 %v15
  %v32 = vunpack.c.l.bf16 %v16
  %v33 = vunpack.c.l.bf16 %v17
  %v34 = vunpack.c.l.bf16 %v18
  %v35 = vunpack.c.l.bf16 %v19
  %v36 = vunpack.c.l.bf16 %v20
  %v37 = vunpack.c.l.bf16 %v21
  %v38 = vunpack.c.l.bf16 %v22
  %v39 = vunpack.c.l.bf16 %v23
  %v40 = vunpack.c.l.bf16 %v24
  %v41 = vunpack.c.l.bf16 %v25
  %v42 = vunpack.c.l.bf16 %v26
  %v43 = vunpack.c.l.bf16 %v27
  %v44 = vunpack.c.l.bf16 %v28
  %v45 = vunpack.c.l.bf16 %v29
  %v46 = vld [vmem:[%s1] sm:$0x1]
  %v48 = vlaneseq
  %v49 = vshrl.u32 %v48, 7
  %v50 = vsub.s32 0, %v49
  %v51 = vrot.slane %v46, %v50
  %v53 = vmul.f32 %v30, %v51
  %v54 = vmul.f32 %v31, %v51
  %v55 = vmul.f32 %v32, %v51
  %v56 = vmul.f32 %v33, %v51
  %v57 = vmul.f32 %v34, %v51
  %v58 = vmul.f32 %v35, %v51
  %v59 = vmul.f32 %v36, %v51
  %v60 = vmul.f32 %v37, %v51
  %v61 = vmul.f32 %v38, %v51
  %v62 = vmul.f32 %v39, %v51
  %v63 = vmul.f32 %v40, %v51
  %v64 = vmul.f32 %v41, %v51
  %v65 = vmul.f32 %v42, %v51
  %v66 = vmul.f32 %v43, %v51
  %v67 = vmul.f32 %v44, %v51
  %v68 = vmul.f32 %v45, %v51
  %v69 = vld [vmem:[%s2] sm:$0x1]
  %v71 = vlaneseq
  %v72 = vshrl.u32 %v71, 7
  %v73 = vsub.s32 0, %v72
  %v74 = vrot.slane %v69, %v73
  %v76 = vadd.f32 %v53, %v74
  %v77 = vadd.f32 %v54, %v74
  %v78 = vadd.f32 %v55, %v74
  %v79 = vadd.f32 %v56, %v74
  %v80 = vadd.f32 %v57, %v74
  %v81 = vadd.f32 %v58, %v74
  %v82 = vadd.f32 %v59, %v74
  %v83 = vadd.f32 %v60, %v74
  %v84 = vadd.f32 %v61, %v74
  %v85 = vadd.f32 %v62, %v74
  %v86 = vadd.f32 %v63, %v74
  %v87 = vadd.f32 %v64, %v74
  %v88 = vadd.f32 %v65, %v74
  %v89 = vadd.f32 %v66, %v74
  %v90 = vadd.f32 %v67, %v74
  %v91 = vadd.f32 %v68, %v74
  %v92 = vmax.f32 %v76, 0.0
  %v93 = vmax.f32 %v77, 0.0
  %v94 = vmax.f32 %v78, 0.0
  %v95 = vmax.f32 %v79, 0.0
  %v96 = vmax.f32 %v80, 0.0
  %v97 = vmax.f32 %v81, 0.0
  %v98 = vmax.f32 %v82, 0.0
  %v99 = vmax.f32 %v83, 0.0
  %v100 = vmax.f32 %v84, 0.0
  %v101 = vmax.f32 %v85, 0.0
  %v102 = vmax.f32 %v86, 0.0
  %v103 = vmax.f32 %v87, 0.0
  %v104 = vmax.f32 %v88, 0.0
  %v105 = vmax.f32 %v89, 0.0
  %v106 = vmax.f32 %v90, 0.0
  %v107 = vmax.f32 %v91, 0.0
  %v108 = vpack.c.bf16 %v93, %v92
  %v109 = vpack.c.bf16 %v95, %v94
  %v110 = vpack.c.bf16 %v97, %v96
  %v111 = vpack.c.bf16 %v99, %v98
  %v112 = vpack.c.bf16 %v101, %v100
  %v113 = vpack.c.bf16 %v103, %v102
  %v114 = vpack.c.bf16 %v105, %v104
  %v115 = vpack.c.bf16 %v107, %v106
  %v124 = vunpack.c.l.b16 %v108
  %v125 = vunpack.c.h.b16 %v108
  %v126 = vunpack.c.l.b16 %v109
  %v127 = vunpack.c.h.b16 %v109
  %v128 = vunpack.c.l.b16 %v110
  %v129 = vunpack.c.h.b16 %v110
  %v130 = vunpack.c.l.b16 %v111
  %v131 = vunpack.c.h.b16 %v111
  %v132 = vunpack.c.l.b16 %v112
  %v133 = vunpack.c.h.b16 %v112
  %v134 = vunpack.c.l.b16 %v113
  %v135 = vunpack.c.h.b16 %v113
  %v136 = vunpack.c.l.b16 %v114
  %v137 = vunpack.c.h.b16 %v114
  %v138 = vunpack.c.l.b16 %v115
  %v139 = vunpack.c.h.b16 %v115
  %v140 = vpack.c.b16 %v124, %v124
  %v141 = vpack.c.b16 %v125, %v125
  %v142 = vpack.c.b16 %v126, %v126
  %v143 = vpack.c.b16 %v127, %v127
  %v144 = vpack.c.b16 %v128, %v128
  %v145 = vpack.c.b16 %v129, %v129
  %v146 = vpack.c.b16 %v130, %v130
  %v147 = vpack.c.b16 %v131, %v131
  %v148 = vpack.c.b16 %v132, %v132
  %v149 = vpack.c.b16 %v133, %v133
  %v150 = vpack.c.b16 %v134, %v134
  %v151 = vpack.c.b16 %v135, %v135
  %v152 = vpack.c.b16 %v136, %v136
  %v153 = vpack.c.b16 %v137, %v137
  %v154 = vpack.c.b16 %v138, %v138
  %v155 = vpack.c.b16 %v139, %v139
  %172 = vst [vmem:[%s3] sm:$0xf] %v140
  %173 = vst [vmem:[%s3 + $0x4] sm:$0xf] %v141
  %174 = vst [vmem:[%s3 + $0x8] sm:$0xf] %v142
  %175 = vst [vmem:[%s3 + $0xc] sm:$0xf] %v143
  %176 = vst [vmem:[%s3 + $0x10] sm:$0xf] %v144
  %177 = vst [vmem:[%s3 + $0x14] sm:$0xf] %v145
  %178 = vst [vmem:[%s3 + $0x18] sm:$0xf] %v146
  %179 = vst [vmem:[%s3 + $0x1c] sm:$0xf] %v147
  %180 = vst [vmem:[%s3 + $0x20] sm:$0xf] %v148
  %181 = vst [vmem:[%s3 + $0x24] sm:$0xf] %v149
  %182 = vst [vmem:[%s3 + $0x28] sm:$0xf] %v150
  %183 = vst [vmem:[%s3 + $0x2c] sm:$0xf] %v151
  %184 = vst [vmem:[%s3 + $0x30] sm:$0xf] %v152
  %185 = vst [vmem:[%s3 + $0x34] sm:$0xf] %v153
  %186 = vst [vmem:[%s3 + $0x38] sm:$0xf] %v154
  %187 = vst [vmem:[%s3 + $0x3c] sm:$0xf] %v155
  // Predicated region
  $region14: #{basic_block_forward.5} parent=0 // pred_check
    _
  $region15: #{basic_block_forward.5} parent=0 // pred_check_branch
    %189 = sbr.rel (0) target = $region17
  $region16: #{basic_block_forward.5} parent=0 // pred_region
    _
  $region17: #{basic_block_forward.5} parent=0 // pred_fallthru
    _
  // Predicated region
  $region18: #{basic_block_forward.5} parent=0 // pred_check
    _
  $region19: #{basic_block_forward.5} parent=0 // pred_check_branch
    %191 = sbr.rel (0) target = $region21
  $region20: #{basic_block_forward.5} parent=0 // pred_region
    _
  $region21: #{basic_block_forward.5} parent=0 // pred_fallthru
    _

// kernel: basic_block_forward.4
$region0: #{basic_block_forward.4}
  #allocation0 [shape = 'u32[]', space=smem, size = 0x4, offset = 0x4, fixed_abs, tag = 'smem constant byte address 0x4 - core index']
  #allocation1 [shape = 'u32[144,128]{1,0:T(1,128)}', space=vmem, size = 0x12000, scoped, tag = 'internal scratch']
  %s0 = inlined_call_operand.vmem [shape: bf16[2,36,9,4], index: 0, kind: input, shape index: {}]
  %s1 = inlined_call_operand.vmem [shape: bf16[36,128], index: 1, kind: input, shape index: {}]
  %s2 = inlined_call_operand.vmem [shape: bf16[2,64,128], index: 2, kind: output, shape index: {0}]
  %s3 = inlined_call_operand.vmem [shape: f32[2,1,128], index: 3, kind: output, shape index: {1}]
  %s4 = inlined_call_operand.vmem [shape: f32[2,1,128], index: 4, kind: output, shape index: {2}]
  %5 = xla_tuple %s2, %s3, %s4
  %s6 = sld [smem:[#allocation0]]
  $region57: #{basic_block_forward.4} parent=0
    _
  %s8 = ssub.s32 1, %s6
  %s9 = scalar_select 0, %s8, %s6
  loop: start=0, step=1, limit=4
  $region2: #{basic_block_forward.4} parent=0 // loop_pre_header
    _
  $region3: #{basic_block_forward.4} parent=0 // loop_header
    %s11 = sphi 0, %s15
    %p12 = scmp.ge.s32.totalorder %s11, 4
    %s21 = sphi 0, %s23
    %s24 = sphi 0, %s21
    %s25 = sphi 0, %s24
    %s41 = sphi 0, %s25
    %s45 = sphi 0, %s45
    %s47 = sphi 0, %s45
    %s48 = sphi 0, %s47
    %s62 = sphi 0, %s48
    %s68 = sphi 0, %s70
    %s71 = sphi 0, %s68
    %s72 = sphi 0, %s71
    %s88 = sphi 0, %s72
    %s94 = sphi 0, %s96
    %s97 = sphi 0, %s94
    %s98 = sphi 0, %s97
    %s114 = sphi 0, %s98
    %s120 = sphi 0, %s122
    %s123 = sphi 0, %s120
    %s124 = sphi 0, %s123
    %s140 = sphi 0, %s124
  $region4: #{basic_block_forward.4} parent=0 // loop_header_branch
    %14 = sbr.rel (%p12) target = $region8
  $region5: #{basic_block_forward.4} parent=0 // loop_body
    %s16 = ssub.s32 %s11, 1
    %s17 = ssub.s32 %s11, 2
    %s18 = sadd.s32 %s11, 1
    %s19 = ssub.s32 %s11, %s18
    %p20 = scmp.eq.s32.totalorder %s19, 0
    %s22 = sadd.s32 %s21, 1
    %s23 = scalar_select %p20, %s21, %s22
    %p26 = pneg %p20
    %p27 = scmp.eq.s32.totalorder %s11, 1
    %p28 = por %p26, %p27
    %p29 = scmp.ne.s32.totalorder %s21, %s24
    %p30 = scmp.eq.s32.totalorder %s11, 0
    %p31 = por %p29, %p30
    %p32 = scmp.ne.s32.totalorder %s21, %s24
    %p33 = scmp.eq.s32.totalorder %s16, 1
    %p34 = por %p32, %p33
    %p35 = scmp.ne.s32.totalorder %s24, %s25
    %p36 = scmp.eq.s32.totalorder %s16, 0
    %p37 = por %p35, %p36
    %p38 = scmp.ne.s32.totalorder %s24, %s25
    %p39 = scmp.eq.s32.totalorder %s17, 1
    %p40 = por %p38, %p39
    %p42 = scmp.ne.s32.totalorder %s25, %s41
    %p43 = scmp.eq.s32.totalorder %s17, 0
    %p44 = por %p42, %p43
    %s46 = sadd.s32 %s45, 1
    %p49 = scmp.eq.s32.totalorder %s11, 1
    %p50 = scmp.ne.s32.totalorder %s45, %s47
    %p51 = scmp.eq.s32.totalorder %s11, 0
    %p52 = por %p50, %p51
    %p53 = scmp.ne.s32.totalorder %s45, %s47
    %p54 = scmp.eq.s32.totalorder %s16, 1
    %p55 = por %p53, %p54
    %p56 = scmp.ne.s32.totalorder %s47, %s48
    %p57 = scmp.eq.s32.totalorder %s16, 0
    %p58 = por %p56, %p57
    %p59 = scmp.ne.s32.totalorder %s47, %s48
    %p60 = scmp.eq.s32.totalorder %s17, 1
    %p61 = por %p59, %p60
    %p63 = scmp.ne.s32.totalorder %s48, %s62
    %p64 = scmp.eq.s32.totalorder %s17, 0
    %p65 = por %p63, %p64
    %s66 = ssub.s32 %s11, %s18
    %p67 = scmp.eq.s32.totalorder %s66, 0
    %s69 = sadd.s32 %s68, 1
    %s70 = scalar_select %p67, %s68, %s69
    %p73 = pneg %p67
    %p74 = scmp.eq.s32.totalorder %s11, 1
    %p75 = por %p73, %p74
    %p76 = scmp.ne.s32.totalorder %s68, %s71
    %p77 = scmp.eq.s32.totalorder %s11, 0
    %p78 = por %p76, %p77
    %p79 = scmp.ne.s32.totalorder %s68, %s71
    %p80 = scmp.eq.s32.totalorder %s16, 1
    %p81 = por %p79, %p80
    %p82 = scmp.ne.s32.totalorder %s71, %s72
    %p83 = scmp.eq.s32.totalorder %s16, 0
    %p84 = por %p82, %p83
    %p85 = scmp.ne.s32.totalorder %s71, %s72
    %p86 = scmp.eq.s32.totalorder %s17, 1
    %p87 = por %p85, %p86
    %p89 = scmp.ne.s32.totalorder %s72, %s88
    %p90 = scmp.eq.s32.totalorder %s17, 0
    %p91 = por %p89, %p90
    %s92 = ssub.s32 %s11, %s18
    %p93 = scmp.eq.s32.totalorder %s92, 0
    %s95 = sadd.s32 %s94, 1
    %s96 = scalar_select %p93, %s94, %s95
    %p99 = pneg %p93
    %p100 = scmp.eq.s32.totalorder %s11, 1
    %p101 = por %p99, %p100
    %p102 = scmp.ne.s32.totalorder %s94, %s97
    %p103 = scmp.eq.s32.totalorder %s11, 0
    %p104 = por %p102, %p103
    %p105 = scmp.ne.s32.totalorder %s94, %s97
    %p106 = scmp.eq.s32.totalorder %s16, 1
    %p107 = por %p105, %p106
    %p108 = scmp.ne.s32.totalorder %s97, %s98
    %p109 = scmp.eq.s32.totalorder %s16, 0
    %p110 = por %p108, %p109
    %p111 = scmp.ne.s32.totalorder %s97, %s98
    %p112 = scmp.eq.s32.totalorder %s17, 1
    %p113 = por %p111, %p112
    %p115 = scmp.ne.s32.totalorder %s98, %s114
    %p116 = scmp.eq.s32.totalorder %s17, 0
    %p117 = por %p115, %p116
    %s118 = ssub.s32 %s11, %s18
    %p119 = scmp.eq.s32.totalorder %s118, 0
    %s121 = sadd.s32 %s120, 1
    %s122 = scalar_select %p119, %s120, %s121
    %p125 = pneg %p119
    %p126 = scmp.eq.s32.totalorder %s11, 1
    %p127 = por %p125, %p126
    %p128 = scmp.ne.s32.totalorder %s120, %s123
    %p129 = scmp.eq.s32.totalorder %s11, 0
    %p130 = por %p128, %p129
    %p131 = scmp.ne.s32.totalorder %s120, %s123
    %p132 = scmp.eq.s32.totalorder %s16, 1
    %p133 = por %p131, %p132
    %p134 = scmp.ne.s32.totalorder %s123, %s124
    %p135 = scmp.eq.s32.totalorder %s16, 0
    %p136 = por %p134, %p135
    %p137 = scmp.ne.s32.totalorder %s123, %s124
    %p138 = scmp.eq.s32.totalorder %s17, 1
    %p139 = por %p137, %p138
    %p141 = scmp.ne.s32.totalorder %s124, %s140
    %p142 = scmp.eq.s32.totalorder %s17, 0
    %p143 = por %p141, %p142
    %p144 = scmp.le.s32.totalorder 1, %s11
    %p145 = scmp.lt.s32.totalorder %s11, 3
    %p146 = pnand %p144, %p145
    %p147 = pneg %p146
    // Predicated region
    $region9: #{basic_block_forward.4} parent=5 // pred_check
      _
    $region10: #{basic_block_forward.4} parent=5 // pred_check_branch
      %149 = sbr.rel (%p146) target = $region12
    $region11: #{basic_block_forward.4} parent=5 // pred_region
      %s150 = ssub.s32 %s11, 1
      // Predicated region
      $region13: #{basic_block_forward.4} parent=11 // pred_check
        %p151 = pneg %p58
      $region14: #{basic_block_forward.4} parent=11 // pred_check_branch
        %153 = sbr.rel (%p151) target = $region16
      $region15: #{basic_block_forward.4} parent=11 // pred_region
        _
      $region16: #{basic_block_forward.4} parent=11 // pred_fallthru
        _
    $region12: #{basic_block_forward.4} parent=5 // pred_fallthru
      _
    %p154 = scmp.lt.s32.totalorder %s11, 2
    // Predicated region
    $region17: #{basic_block_forward.4} parent=5 // pred_check
      %p155 = pneg %p154
    $region18: #{basic_block_forward.4} parent=5 // pred_check_branch
      %157 = sbr.rel (%p155) target = $region20
    $region19: #{basic_block_forward.4} parent=5 // pred_region
      // Predicated region
      $region21: #{basic_block_forward.4} parent=19 // pred_check
        %p158 = pneg %p31
      $region22: #{basic_block_forward.4} parent=19 // pred_check_branch
        %160 = sbr.rel (%p158) target = $region24
      $region23: #{basic_block_forward.4} parent=19 // pred_region
        %p161 = scmp.lt.s32.totalorder %s11, 1
        %s162 = scalar_select %p161, %s11, 1
        %s163 = smul.addr %s162, 72
        %s164 = smul.addr %s163, 4
        %s165 = scalar_lea.vmem %s0, %s164
      $region24: #{basic_block_forward.4} parent=19 // pred_fallthru
        _
    $region20: #{basic_block_forward.4} parent=5 // pred_fallthru
      _
    %p166 = scmp.le.s32.totalorder 1, %s11
    %p167 = scmp.lt.s32.totalorder %s11, 3
    %p168 = pnand %p166, %p167
    %p169 = pneg %p168
    // Predicated region
    $region25: #{basic_block_forward.4} parent=5 // pred_check
      _
    $region26: #{basic_block_forward.4} parent=5 // pred_check_branch
      %171 = sbr.rel (%p168) target = $region28
    $region27: #{basic_block_forward.4} parent=5 // pred_region
      %s172 = ssub.s32 %s11, 1
      %p173 = scmp.lt.s32.totalorder %s16, 1
      %s174 = scalar_select %p173, %s16, 1
      %s175 = smul.addr %s174, 72
      %s176 = smul.addr %s175, 4
      %s177 = scalar_lea.vmem %s0, %s176
      %p178 = pneg %p37
      %p179 = pneg %p34
      %p180 = pneg %p58
      %p181 = pneg %p55
      %p182 = pneg %p84
      %p183 = pneg %p81
      %p184 = scmp.lt.s32.totalorder %s16, 1
      %s185 = scalar_select %p184, %s16, 1
      %s186 = smul.addr %s185, 8
      %s187 = smul.addr %s186, 4
      %s188 = scalar_lea.vmem %s2, %s187
      %p189 = pneg %p110
      %p190 = pneg %p107
      %p191 = scmp.lt.s32.totalorder %s16, 1
      %s192 = scalar_select %p191, %s16, 1
      %s193 = scalar_lea.vmem %s3, %s192
      %p194 = pneg %p136
      %p195 = pneg %p133
      %p196 = scmp.lt.s32.totalorder %s16, 1
      %s197 = scalar_select %p196, %s16, 1
      %s198 = scalar_lea.vmem %s4, %s197
      %p199 = scmp.lt.s32.totalorder %s16, 1
      %s200 = scalar_select %p199, %s16, 1
      %s201 = smul.addr %s200, 72
      %s202 = smul.addr %s201, 4
      %s203 = scalar_lea.vmem %s0, %s202
      %p204 = scmp.lt.s32.totalorder %s16, 1
      %s205 = scalar_select %p204, %s16, 1
      %s206 = smul.addr %s205, 8
      %s207 = smul.addr %s206, 4
      %s208 = scalar_lea.vmem %s2, %s207
      %p209 = scmp.lt.s32.totalorder %s16, 1
      %s210 = scalar_select %p209, %s16, 1
      %s211 = scalar_lea.vmem %s3, %s210
      %p212 = scmp.lt.s32.totalorder %s16, 1
      %s213 = scalar_select %p212, %s16, 1
      %s214 = scalar_lea.vmem %s4, %s213
      %v216 = vld [vmem:[%s203] sm:$0xf]
      %v217 = vld [vmem:[%s203 + $0x8] sm:$0xf]
      %v218 = vld [vmem:[%s203 + $0x10] sm:$0xf]
      %v219 = vld [vmem:[%s203 + $0x18] sm:$0xf]
      %v220 = vld [vmem:[%s203 + $0x20] sm:$0xf]
      %v221 = vld [vmem:[%s203 + $0x28] sm:$0xf]
      %v222 = vld [vmem:[%s203 + $0x30] sm:$0xf]
      %v223 = vld [vmem:[%s203 + $0x38] sm:$0xf]
      %v224 = vld [vmem:[%s1] sm:$0x3]
      %s225 = scalar_lea.vmem %s203, 72
      %v226 = vld [vmem:[%s225] sm:$0xf]
      %v227 = vld [vmem:[%s225 + $0x8] sm:$0xf]
      %v228 = vld [vmem:[%s225 + $0x10] sm:$0xf]
      %v229 = vld [vmem:[%s225 + $0x18] sm:$0xf]
      %v230 = vld [vmem:[%s225 + $0x20] sm:$0xf]
      %v231 = vld [vmem:[%s225 + $0x28] sm:$0xf]
      %v232 = vld [vmem:[%s225 + $0x30] sm:$0xf]
      %v233 = vld [vmem:[%s225 + $0x38] sm:$0xf]
      %v234 = vld [vmem:[%s1] sm:$0xc]
      %v243 = vunpack.c.l.b16 %v226
      %v244 = vunpack.c.l.b16 %v227
      %v245 = vunpack.c.l.b16 %v228
      %v246 = vunpack.c.l.b16 %v229
      %v247 = vunpack.c.l.b16 %v230
      %v248 = vunpack.c.l.b16 %v231
      %v249 = vunpack.c.l.b16 %v232
      %v250 = vunpack.c.l.b16 %v233
      %v251 = vpack.c.b16 %v244, %v243
      %v252 = vpack.c.b16 %v246, %v245
      %v253 = vpack.c.b16 %v248, %v247
      %v254 = vpack.c.b16 %v250, %v249
      %v256 = vunpack.c.l.b16 %v234
      %v257 = vpack.c.b16 %v256, %v256
      %v258 = vrot.slane %v257, 2
      %vm259 = vcmask 31744
      %v261 = vsel %vm259, %v251, 0
      %v264 = vsel %vm259, %v252, 0
      %v267 = vsel %vm259, %v253, 0
      %v270 = vsel %vm259, %v254, 0
      %vm272 = vcmask 1041408
      %v274 = vsel %vm272, %v258, 0
      %276 = vmatprep.subr.bf16.mxu0 0
      %277 = vmatpush1.bf16.msra.mxu0 %v274
      %278 = vmatprep.subr.bf16.mxu0 0
      %279 = vmatpush1.bf16.msra.mxu0 0
      %280 = vmatprep.subr.bf16.mxu0 0
      %281 = vmatpush1.bf16.msra.mxu0 0
      %282 = vmatprep.subr.bf16.mxu0 0
      %283 = vmatpush1.bf16.msra.mxu0 0
      %284 = vmatprep.subr.bf16.mxu0 0
      %285 = vmatpush1.bf16.msra.mxu0 0
      %286 = vmatprep.subr.bf16.mxu0 0
      %287 = vmatpush1.bf16.msra.mxu0 0
      %288 = vmatprep.subr.bf16.mxu0 0
      %289 = vmatpush1.bf16.msra.mxu0 0
      %290 = vmatprep.subr.bf16.mxu0 0
      %291 = vmatpush1.bf16.msra.mxu0 0
      %292 = vmatprep.subr.bf16.mxu0 0
      %293 = vmatpush1.bf16.msra.mxu0 0
      %294 = vmatprep.subr.bf16.mxu0 0
      %295 = vmatpush1.bf16.msra.mxu0 0
      %296 = vmatprep.subr.bf16.mxu0 0
      %297 = vmatpush1.bf16.msra.mxu0 0
      %298 = vmatprep.subr.bf16.mxu0 0
      %299 = vmatpush1.bf16.msra.mxu0 0
      %300 = vmatprep.subr.bf16.mxu0 0
      %301 = vmatpush1.bf16.msra.mxu0 0
      %302 = vmatprep.subr.bf16.mxu0 0
      %303 = vmatpush1.bf16.msra.mxu0 0
      %304 = vmatprep.subr.bf16.mxu0 0
      %305 = vmatpush1.bf16.msra.mxu0 0
      %306 = vmatprep.subr.bf16.mxu0 0
      %307 = vmatpush1.bf16.msra.mxu0 0
      %308 = vmatprep.mubr.bf16.mxu0 0
      %309 = vmatmul.mubr.bf16.gmra.mrb[0].mxu0 %v261
      %v310 = vpop.f32.mrb[0].mxu0
      %v311 = vadd.f32 0.0, %v310
      %v312 = vpop.f32.mrb[0].mxu0
      %v313 = vpop.f32.mrb[0].mxu0
      %v314 = vadd.f32 0.0, %v313
      %v315 = vpop.f32.mrb[0].mxu0
      %316 = vmatprep.mubr.bf16.mxu0 0
      %317 = vmatmul.mubr.bf16.gmra.mrb[0].mxu0 %v264
      %v318 = vpop.f32.mrb[0].mxu0
      %v319 = vadd.f32 0.0, %v318
      %v320 = vpop.f32.mrb[0].mxu0
      %v321 = vpop.f32.mrb[0].mxu0
      %v322 = vadd.f32 0.0, %v321
      %v323 = vpop.f32.mrb[0].mxu0
      %324 = vmatprep.mubr.bf16.mxu0 0
      %325 = vmatmul.mubr.bf16.gmra.mrb[0].mxu0 %v267
      %v326 = vpop.f32.mrb[0].mxu0
      %v327 = vadd.f32 0.0, %v326
      %v328 = vpop.f32.mrb[0].mxu0
      %v329 = vpop.f32.mrb[0].mxu0
      %v330 = vadd.f32 0.0, %v329
      %v331 = vpop.f32.mrb[0].mxu0
      %332 = vmatprep.mubr.bf16.mxu0 0
      %333 = vmatmul.mubr.bf16.gmra.mrb[0].mxu0 %v270
      %v334 = vpop.f32.mrb[0].mxu0
      %v335 = vadd.f32 0.0, %v334
      %v336 = vpop.f32.mrb[0].mxu0
      %v337 = vpop.f32.mrb[0].mxu0
      %v338 = vadd.f32 0.0, %v337
      %v339 = vpop.f32.mrb[0].mxu0
      %340 = vdwg.mxu0
      %v349 = vunpack.c.l.b16 %v216
      %v350 = vunpack.c.l.b16 %v217
      %v351 = vunpack.c.l.b16 %v218
      %v352 = vunpack.c.l.b16 %v219
      %v353 = vunpack.c.l.b16 %v220
      %v354 = vunpack.c.l.b16 %v221
      %v355 = vunpack.c.l.b16 %v222
      %v356 = vunpack.c.l.b16 %v223
      %v357 = vpack.c.b16 %v350, %v349
      %v358 = vpack.c.b16 %v352, %v351
      %v359 = vpack.c.b16 %v354, %v353
      %v360 = vpack.c.b16 %v356, %v355
      %v362 = vsel %vm259, %v357, 0
      %v365 = vsel %vm259, %v358, 0
      %v368 = vsel %vm259, %v359, 0
      %v371 = vsel %vm259, %v360, 0
      %v374 = vsel %vm272, %v224, 0
      %376 = vmatprep.subr.bf16.mxu0 0
      %377 = vmatpush1.bf16.msra.mxu0 %v374
      %378 = vmatprep.subr.bf16.mxu0 0
      %379 = vmatpush1.bf16.msra.mxu0 0
      %380 = vmatprep.subr.bf16.mxu0 0
      %381 = vmatpush1.bf16.msra.mxu0 0
      %382 = vmatprep.subr.bf16.mxu0 0
      %383 = vmatpush1.bf16.msra.mxu0 0
      %384 = vmatprep.subr.bf16.mxu0 0
      %385 = vmatpush1.bf16.msra.mxu0 0
      %386 = vmatprep.subr.bf16.mxu0 0
      %387 = vmatpush1.bf16.msra.mxu0 0
      %388 = vmatprep.subr.bf16.mxu0 0
      %389 = vmatpush1.bf16.msra.mxu0 0
      %390 = vmatprep.subr.bf16.mxu0 0
      %391 = vmatpush1.bf16.msra.mxu0 0
      %392 = vmatprep.subr.bf16.mxu0 0
      %393 = vmatpush1.bf16.msra.mxu0 0
      %394 = vmatprep.subr.bf16.mxu0 0
      %395 = vmatpush1.bf16.msra.mxu0 0
      %396 = vmatprep.subr.bf16.mxu0 0
      %397 = vmatpush1.bf16.msra.mxu0 0
      %398 = vmatprep.subr.bf16.mxu0 0
      %399 = vmatpush1.bf16.msra.mxu0 0
      %400 = vmatprep.subr.bf16.mxu0 0
      %401 = vmatpush1.bf16.msra.mxu0 0
      %402 = vmatprep.subr.bf16.mxu0 0
      %403 = vmatpush1.bf16.msra.mxu0 0
      %404 = vmatprep.subr.bf16.mxu0 0
      %405 = vmatpush1.bf16.msra.mxu0 0
      %406 = vmatprep.subr.bf16.mxu0 0
      %407 = vmatpush1.bf16.msra.mxu0 0
      %408 = vmatprep.mubr.bf16.mxu0 0
      %409 = vmatmul.mubr.bf16.gmra.mrb[0].mxu0 %v362
      %v410 = vpop.f32.mrb[0].mxu0
      %v411 = vadd.f32 %v311, %v410
      %v412 = vpop.f32.mrb[0].mxu0
      %v413 = vpop.f32.mrb[0].mxu0
      %v414 = vadd.f32 %v314, %v413
      %v415 = vpop.f32.mrb[0].mxu0
      %416 = vmatprep.mubr.bf16.mxu0 0
      %417 = vmatmul.mubr.bf16.gmra.mrb[0].mxu0 %v365
      %v418 = vpop.f32.mrb[0].mxu0
      %v419 = vadd.f32 %v319, %v418
      %v420 = vpop.f32.mrb[0].mxu0
      %v421 = vpop.f32.mrb[0].mxu0
      %v422 = vadd.f32 %v322, %v421
      %v423 = vpop.f32.mrb[0].mxu0
      %424 = vmatprep.mubr.bf16.mxu0 0
      %425 = vmatmul.mubr.bf16.gmra.mrb[0].mxu0 %v368
      %v426 = vpop.f32.mrb[0].mxu0
      %v427 = vadd.f32 %v327, %v426
      %v428 = vpop.f32.mrb[0].mxu0
      %v429 = vpop.f32.mrb[0].mxu0
      %v430 = vadd.f32 %v330, %v429
      %v431 = vpop.f32.mrb[0].mxu0
      %432 = vmatprep.mubr.bf16.mxu0 0
      %433 = vmatmul.mubr.bf16.gmra.mrb[0].mxu0 %v371
      %v434 = vpop.f32.mrb[0].mxu0
      %v435 = vadd.f32 %v335, %v434
      %v436 = vpop.f32.mrb[0].mxu0
      %v437 = vpop.f32.mrb[0].mxu0
      %v438 = vadd.f32 %v338, %v437
      %v439 = vpop.f32.mrb[0].mxu0
      %440 = vdwg.mxu0
      %v441 = vld [vmem:[%s203] sm:$0xf]
      %v442 = vld [vmem:[%s203 + $0x4] sm:$0x1]
      %v443 = vld [vmem:[%s203 + $0x8] sm:$0xf]
      %v444 = vld [vmem:[%s203 + $0xc] sm:$0x1]
      %v445 = vld [vmem:[%s203 + $0x10] sm:$0xf]
      %v446 = vld [vmem:[%s203 + $0x14] sm:$0x1]
      %v447 = vld [vmem:[%s203 + $0x18] sm:$0xf]
      %v448 = vld [vmem:[%s203 + $0x1c] sm:$0x1]
      %v449 = vld [vmem:[%s203 + $0x20] sm:$0xf]
      %v450 = vld [vmem:[%s203 + $0x24] sm:$0x1]
      %v451 = vld [vmem:[%s203 + $0x28] sm:$0xf]
      %v452 = vld [vmem:[%s203 + $0x2c] sm:$0x1]
      %v453 = vld [vmem:[%s203 + $0x30] sm:$0xf]
      %v454 = vld [vmem:[%s203 + $0x34] sm:$0x1]
      %v455 = vld [vmem:[%s203 + $0x38] sm:$0xf]
      %v456 = vld [vmem:[%s203 + $0x3c] sm:$0x1]
      %vm457 = vsmask.f32 3328
      %vm458 = vsmask.f32 7440
      %vm459 = vmor %vm457, %vm458
      %v461 = vshrl.u32 %v441, 16
      %v463 = vrot.slane %v461, 4
      %v464 = vshll.u32 %v441, 16
      %v466 = vrot.slane %v464, 5
      %v467 = vor.u32 %v463, %v466
      %v468 = vrot.slane %v467, 4
      %v470 = vshll.u32 %v442, 16
      %v472 = vrot.slane %v470, 5
      %v473 = vsel %vm459, %v468, %v472
      %v475 = vshrl.u32 %v443, 16
      %v477 = vrot.slane %v475, 4
      %v478 = vshll.u32 %v443, 16
      %v480 = vrot.slane %v478, 5
      %v481 = vor.u32 %v477, %v480
      %v482 = vrot.slane %v481, 4
      %v484 = vshll.u32 %v444, 16
      %v486 = vrot.slane %v484, 5
      %v487 = vsel %vm459, %v482, %v486
      %v489 = vshrl.u32 %v445, 16
      %v491 = vrot.slane %v489, 4
      %v492 = vshll.u32 %v445, 16
      %v494 = vrot.slane %v492, 5
      %v495 = vor.u32 %v491, %v494
      %v496 = vrot.slane %v495, 4
      %v498 = vshll.u32 %v446, 16
      %v500 = vrot.slane %v498, 5
      %v501 = vsel %vm459, %v496, %v500
      %v503 = vshrl.u32 %v447, 16
      %v505 = vrot.slane %v503, 4
      %v506 = vshll.u32 %v447, 16
      %v508 = vrot.slane %v506, 5
      %v509 = vor.u32 %v505, %v508
      %v510 = vrot.slane %v509, 4
      %v512 = vshll.u32 %v448, 16
      %v514 = vrot.slane %v512, 5
      %v515 = vsel %vm459, %v510, %v514
      %v517 = vshrl.u32 %v449, 16
      %v519 = vrot.slane %v517, 4
      %v520 = vshll.u32 %v449, 16
      %v522 = vrot.slane %v520, 5
      %v523 = vor.u32 %v519, %v522
      %v524 = vrot.slane %v523, 4
      %v526 = vshll.u32 %v450, 16
      %v528 = vrot.slane %v526, 5
      %v529 = vsel %vm459, %v524, %v528
      %v531 = vshrl.u32 %v451, 16
      %v533 = vrot.slane %v531, 4
      %v534 = vshll.u32 %v451, 16
      %v536 = vrot.slane %v534, 5
      %v537 = vor.u32 %v533, %v536
      %v538 = vrot.slane %v537, 4
      %v540 = vshll.u32 %v452, 16
      %v542 = vrot.slane %v540, 5
      %v543 = vsel %vm459, %v538, %v542
      %v545 = vshrl.u32 %v453, 16
      %v547 = vrot.slane %v545, 4
      %v548 = vshll.u32 %v453, 16
      %v550 = vrot.slane %v548, 5
      %v551 = vor.u32 %v547, %v550
      %v552 = vrot.slane %v551, 4
      %v554 = vshll.u32 %v454, 16
      %v556 = vrot.slane %v554, 5
      %v557 = vsel %vm459, %v552, %v556
      %v559 = vshrl.u32 %v455, 16
      %v561 = vrot.slane %v559, 4
      %v562 = vshll.u32 %v455, 16
      %v564 = vrot.slane %v562, 5
      %v565 = vor.u32 %v561, %v564
      %v566 = vrot.slane %v565, 4
      %v568 = vshll.u32 %v456, 16
      %v570 = vrot.slane %v568, 5
      %v571 = vsel %vm459, %v566, %v570
      %v572 = vld [vmem:[%s1 + $0x4] sm:$0x3]
      %v573 = vunpack.c.l.b16 %v473
      %v574 = vunpack.c.l.b16 %v487
      %v575 = vunpack.c.l.b16 %v501
      %v576 = vunpack.c.l.b16 %v515
      %v577 = vunpack.c.l.b16 %v529
      %v578 = vunpack.c.l.b16 %v543
      %v579 = vunpack.c.l.b16 %v557
      %v580 = vunpack.c.l.b16 %v571
      %v581 = vpack.c.b16 %v574, %v573
      %v582 = vpack.c.b16 %v576, %v575
      %v583 = vpack.c.b16 %v578, %v577
      %v584 = vpack.c.b16 %v580, %v579
      %v586 = vsel %vm259, %v581, 0
      %v589 = vsel %vm259, %v582, 0
      %v592 = vsel %vm259, %v583, 0
      %v595 = vsel %vm259, %v584, 0
      %v598 = vsel %vm272, %v572, 0
      %600 = vmatprep.subr.bf16.mxu0 0
      %601 = vmatpush1.bf16.msra.mxu0 %v598
      %602 = vmatprep.subr.bf16.mxu0 0
      %603 = vmatpush1.bf16.msra.mxu0 0
      %604 = vmatprep.subr.bf16.mxu0 0
      %605 = vmatpush1.bf16.msra.mxu0 0
      %606 = vmatprep.subr.bf16.mxu0 0
      %607 = vmatpush1.bf16.msra.mxu0 0
      %608 = vmatprep.subr.bf16.mxu0 0
      %609 = vmatpush1.bf16.msra.mxu0 0
      %610 = vmatprep.subr.bf16.mxu0 0
      %611 = vmatpush1.bf16.msra.mxu0 0
      %612 = vmatprep.subr.bf16.mxu0 0
      %613 = vmatpush1.bf16.msra.mxu0 0
      %614 = vmatprep.subr.bf16.mxu0 0
      %615 = vmatpush1.bf16.msra.mxu0 0
      %616 = vmatprep.subr.bf16.mxu0 0
      %617 = vmatpush1.bf16.msra.mxu0 0
      %618 = vmatprep.subr.bf16.mxu0 0
      %619 = vmatpush1.bf16.msra.mxu0 0
      %620 = vmatprep.subr.bf16.mxu0 0
      %621 = vmatpush1.bf16.msra.mxu0 0
      %622 = vmatprep.subr.bf16.mxu0 0
      %623 = vmatpush1.bf16.msra.mxu0 0
      %624 = vmatprep.subr.bf16.mxu0 0
      %625 = vmatpush1.bf16.msra.mxu0 0
      %626 = vmatprep.subr.bf16.mxu0 0
      %627 = vmatpush1.bf16.msra.mxu0 0
      %628 = vmatprep.subr.bf16.mxu0 0
      %629 = vmatpush1.bf16.msra.mxu0 0
      %630 = vmatprep.subr.bf16.mxu0 0
      %631 = vmatpush1.bf16.msra.mxu0 0
      %632 = vmatprep.mubr.bf16.mxu0 0
      %633 = vmatmul.mubr.bf16.gmra.mrb[0].mxu0 %v586
      %v634 = vpop.f32.mrb[0].mxu0
      %v635 = vadd.f32 0.0, %v634
      %v636 = vpop.f32.mrb[0].mxu0
      %v637 = vpop.f32.mrb[0].mxu0
      %v638 = vadd.f32 0.0, %v637
      %v639 = vpop.f32.mrb[0].mxu0
      %640 = vmatprep.mubr.bf16.mxu0 0
      %641 = vmatmul.mubr.bf16.gmra.mrb[0].mxu0 %v589
      %v642 = vpop.f32.mrb[0].mxu0
      %v643 = vadd.f32 0.0, %v642
      %v644 = vpop.f32.mrb[0].mxu0
      %v645 = vpop.f32.mrb[0].mxu0
      %v646 = vadd.f32 0.0, %v645
      %v647 = vpop.f32.mrb[0].mxu0
      %648 = vmatprep.mubr.bf16.mxu0 0
      %649 = vmatmul.mubr.bf16.gmra.mrb[0].mxu0 %v592
      %v650 = vpop.f32.mrb[0].mxu0
      %v651 = vadd.f32 0.0, %v650
      %v652 = vpop.f32.mrb[0].mxu0
      %v653 = vpop.f32.mrb[0].mxu0
      %v654 = vadd.f32 0.0, %v653
      %v655 = vpop.f32.mrb[0].mxu0
      %656 = vmatprep.mubr.bf16.mxu0 0
      %657 = vmatmul.mubr.bf16.gmra.mrb[0].mxu0 %v595
      %v658 = vpop.f32.mrb[0].mxu0
      %v659 = vadd.f32 0.0, %v658
      %v660 = vpop.f32.mrb[0].mxu0
      %v661 = vpop.f32.mrb[0].mxu0
      %v662 = vadd.f32 0.0, %v661
      %v663 = vpop.f32.mrb[0].mxu0
      %664 = vdwg.mxu0
      %v665 = vadd.f32 %v411, %v635
      %v666 = vadd.f32 %v414, %v638
      %v667 = vadd.f32 %v419, %v643
      %v668 = vadd.f32 %v422, %v646
      %v669 = vadd.f32 %v427, %v651
      %v670 = vadd.f32 %v430, %v654
      %v671 = vadd.f32 %v435, %v659
      %v672 = vadd.f32 %v438, %v662
      %s673 = scalar_lea.vmem %s203, 144
      %v674 = vld [vmem:[%s673] sm:$0xf]
      %v675 = vld [vmem:[%s673 + $0x8] sm:$0xf]
      %v676 = vld [vmem:[%s673 + $0x10] sm:$0xf]
      %v677 = vld [vmem:[%s673 + $0x18] sm:$0xf]
      %v678 = vld [vmem:[%s673 + $0x20] sm:$0xf]
      %v679 = vld [vmem:[%s673 + $0x28] sm:$0xf]
      %v680 = vld [vmem:[%s673 + $0x30] sm:$0xf]
      %v681 = vld [vmem:[%s673 + $0x38] sm:$0xf]
      %v682 = vld [vmem:[%s1 + $0x4] sm:$0xc]
      %v691 = vunpack.c.l.b16 %v674
      %v692 = vunpack.c.l.b16 %v675
      %v693 = vunpack.c.l.b16 %v676
      %v694 = vunpack.c.l.b16 %v677
      %v695 = vunpack.c.l.b16 %v678
      %v696 = vunpack.c.l.b16 %v679
      %v697 = vunpack.c.l.b16 %v680
      %v698 = vunpack.c.l.b16 %v681
      %v699 = vpack.c.b16 %v692, %v691
      %v700 = vpack.c.b16 %v694, %v693
      %v701 = vpack.c.b16 %v696, %v695
      %v702 = vpack.c.b16 %v698, %v697
      %v704 = vunpack.c.l.b16 %v682
      %v705 = vpack.c.b16 %v704, %v704
      %v706 = vrot.slane %v705, 2
      %v708 = vsel %vm259, %v699, 0
      %v711 = vsel %vm259, %v700, 0
      %v714 = vsel %vm259, %v701, 0
      %v717 = vsel %vm259, %v702, 0
      %v720 = vsel %vm272, %v706, 0
      %722 = vmatprep.subr.bf16.mxu0 0
      %723 = vmatpush1.bf16.msra.mxu0 %v720
      %724 = vmatprep.subr.bf16.mxu0 0
      %725 = vmatpush1.bf16.msra.mxu0 0
      %726 = vmatprep.subr.bf16.mxu0 0
      %727 = vmatpush1.bf16.msra.mxu0 0
      %728 = vmatprep.subr.bf16.mxu0 0
      %729 = vmatpush1.bf16.msra.mxu0 0
      %730 = vmatprep.subr.bf16.mxu0 0
      %731 = vmatpush1.bf16.msra.mxu0 0
      %732 = vmatprep.subr.bf16.mxu0 0
      %733 = vmatpush1.bf16.msra.mxu0 0
      %734 = vmatprep.subr.bf16.mxu0 0
      %735 = vmatpush1.bf16.msra.mxu0 0
      %736 = vmatprep.subr.bf16.mxu0 0
      %737 = vmatpush1.bf16.msra.mxu0 0
      %738 = vmatprep.subr.bf16.mxu0 0
      %739 = vmatpush1.bf16.msra.mxu0 0
      %740 = vmatprep.subr.bf16.mxu0 0
      %741 = vmatpush1.bf16.msra.mxu0 0
      %742 = vmatprep.subr.bf16.mxu0 0
      %743 = vmatpush1.bf16.msra.mxu0 0
      %744 = vmatprep.subr.bf16.mxu0 0
      %745 = vmatpush1.bf16.msra.mxu0 0
      %746 = vmatprep.subr.bf16.mxu0 0
      %747 = vmatpush1.bf16.msra.mxu0 0
      %748 = vmatprep.subr.bf16.mxu0 0
      %749 = vmatpush1.bf16.msra.mxu0 0
      %750 = vmatprep.subr.bf16.mxu0 0
      %751 = vmatpush1.bf16.msra.mxu0 0
      %752 = vmatprep.subr.bf16.mxu0 0
      %753 = vmatpush1.bf16.msra.mxu0 0
      %754 = vmatprep.mubr.bf16.mxu0 0
      %755 = vmatmul.mubr.bf16.gmra.mrb[0].mxu0 %v708
      %v756 = vpop.f32.mrb[0].mxu0
      %v757 = vadd.f32 0.0, %v756
      %v758 = vpop.f32.mrb[0].mxu0
      %v759 = vpop.f32.mrb[0].mxu0
      %v760 = vadd.f32 0.0, %v759
      %v761 = vpop.f32.mrb[0].mxu0
      %762 = vmatprep.mubr.bf16.mxu0 0
      %763 = vmatmul.mubr.bf16.gmra.mrb[0].mxu0 %v711
      %v764 = vpop.f32.mrb[0].mxu0
      %v765 = vadd.f32 0.0, %v764
      %v766 = vpop.f32.mrb[0].mxu0
      %v767 = vpop.f32.mrb[0].mxu0
      %v768 = vadd.f32 0.0, %v767
      %v769 = vpop.f32.mrb[0].mxu0
      %770 = vmatprep.mubr.bf16.mxu0 0
      %771 = vmatmul.mubr.bf16.gmra.mrb[0].mxu0 %v714
      %v772 = vpop.f32.mrb[0].mxu0
      %v773 = vadd.f32 0.0, %v772
      %v774 = vpop.f32.mrb[0].mxu0
      %v775 = vpop.f32.mrb[0].mxu0
      %v776 = vadd.f32 0.0, %v775
      %v777 = vpop.f32.mrb[0].mxu0
      %778 = vmatprep.mubr.bf16.mxu0 0
      %779 = vmatmul.mubr.bf16.gmra.mrb[0].mxu0 %v717
      %v780 = vpop.f32.mrb[0].mxu0
      %v781 = vadd.f32 0.0, %v780
      %v782 = vpop.f32.mrb[0].mxu0
      %v783 = vpop.f32.mrb[0].mxu0
      %v784 = vadd.f32 0.0, %v783
      %v785 = vpop.f32.mrb[0].mxu0
      %786 = vdwg.mxu0
      %v787 = vadd.f32 %v665, %v757
      %v788 = vadd.f32 %v666, %v760
      %v789 = vadd.f32 %v667, %v765
      %v790 = vadd.f32 %v668, %v768
      %v791 = vadd.f32 %v669, %v773
      %v792 = vadd.f32 %v670, %v776
      %v793 = vadd.f32 %v671, %v781
      %v794 = vadd.f32 %v672, %v784
      %s795 = scalar_lea.vmem %s203, 216
      %v796 = vld [vmem:[%s795] sm:$0xf]
      %v797 = vld [vmem:[%s795 + $0x8] sm:$0xf]
      %v798 = vld [vmem:[%s795 + $0x10] sm:$0xf]
      %v799 = vld [vmem:[%s795 + $0x18] sm:$0xf]
      %v800 = vld [vmem:[%s795 + $0x20] sm:$0xf]
      %v801 = vld [vmem:[%s795 + $0x28] sm:$0xf]
      %v802 = vld [vmem:[%s795 + $0x30] sm:$0xf]
      %v803 = vld [vmem:[%s795 + $0x38] sm:$0xf]
      %v804 = vld [vmem:[%s1 + $0x8] sm:$0x3]
      %v813 = vunpack.c.l.b16 %v796
      %v814 = vunpack.c.l.b16 %v797
      %v815 = vunpack.c.l.b16 %v798
      %v816 = vunpack.c.l.b16 %v799
      %v817 = vunpack.c.l.b16 %v800
      %v818 = vunpack.c.l.b16 %v801
      %v819 = vunpack.c.l.b16 %v802
      %v820 = vunpack.c.l.b16 %v803
      %v821 = vpack.c.b16 %v814, %v813
      %v822 = vpack.c.b16 %v816, %v815
      %v823 = vpack.c.b16 %v818, %v817
      %v824 = vpack.c.b16 %v820, %v819
      %v826 = vsel %vm259, %v821, 0
      %v829 = vsel %vm259, %v822, 0
      %v832 = vsel %vm259, %v823, 0
      %v835 = vsel %vm259, %v824, 0
      %v838 = vsel %vm272, %v804, 0
      %840 = vmatprep.subr.bf16.mxu0 0
      %841 = vmatpush1.bf16.msra.mxu0 %v838
      %842 = vmatprep.subr.bf16.mxu0 0
      %843 = vmatpush1.bf16.msra.mxu0 0
      %844 = vmatprep.subr.bf16.mxu0 0
      %845 = vmatpush1.bf16.msra.mxu0 0
      %846 = vmatprep.subr.bf16.mxu0 0
      %847 = vmatpush1.bf16.msra.mxu0 0
      %848 = vmatprep.subr.bf16.mxu0 0
      %849 = vmatpush1.bf16.msra.mxu0 0
      %850 = vmatprep.subr.bf16.mxu0 0
      %851 = vmatpush1.bf16.msra.mxu0 0
      %852 = vmatprep.subr.bf16.mxu0 0
      %853 = vmatpush1.bf16.msra.mxu0 0
      %854 = vmatprep.subr.bf16.mxu0 0
      %855 = vmatpush1.bf16.msra.mxu0 0
      %856 = vmatprep.subr.bf16.mxu0 0
      %857 = vmatpush1.bf16.msra.mxu0 0
      %858 = vmatprep.subr.bf16.mxu0 0
      %859 = vmatpush1.bf16.msra.mxu0 0
      %860 = vmatprep.subr.bf16.mxu0 0
      %861 = vmatpush1.bf16.msra.mxu0 0
      %862 = vmatprep.subr.bf16.mxu0 0
      %863 = vmatpush1.bf16.msra.mxu0 0
      %864 = vmatprep.subr.bf16.mxu0 0
      %865 = vmatpush1.bf16.msra.mxu0 0
      %866 = vmatprep.subr.bf16.mxu0 0
      %867 = vmatpush1.bf16.msra.mxu0 0
      %868 = vmatprep.subr.bf16.mxu0 0
      %869 = vmatpush1.bf16.msra.mxu0 0
      %870 = vmatprep.subr.bf16.mxu0 0
      %871 = vmatpush1.bf16.msra.mxu0 0
      %872 = vmatprep.mubr.bf16.mxu0 0
      %873 = vmatmul.mubr.bf16.gmra.mrb[0].mxu0 %v826
      %v874 = vpop.f32.mrb[0].mxu0
      %v875 = vadd.f32 0.0, %v874
      %v876 = vpop.f32.mrb[0].mxu0
      %v877 = vpop.f32.mrb[0].mxu0
      %v878 = vadd.f32 0.0, %v877
      %v879 = vpop.f32.mrb[0].mxu0
      %880 = vmatprep.mubr.bf16.mxu0 0
      %881 = vmatmul.mubr.bf16.gmra.mrb[0].mxu0 %v829
      %v882 = vpop.f32.mrb[0].mxu0
      %v883 = vadd.f32 0.0, %v882
      %v884 = vpop.f32.mrb[0].mxu0
      %v885 = vpop.f32.mrb[0].mxu0
      %v886 = vadd.f32 0.0, %v885
      %v887 = vpop.f32.mrb[0].mxu0
      %888 = vmatprep.mubr.bf16.mxu0 0
      %889 = vmatmul.mubr.bf16.gmra.mrb[0].mxu0 %v832
      %v890 = vpop.f32.mrb[0].mxu0
      %v891 = vadd.f32 0.0, %v890
      %v892 = vpop.f32.mrb[0].mxu0
      %v893 = vpop.f32.mrb[0].mxu0
      %v894 = vadd.f32 0.0, %v893
      %v895 = vpop.f32.mrb[0].mxu0
      %896 = vmatprep.mubr.bf16.mxu0 0
      %897 = vmatmul.mubr.bf16.gmra.mrb[0].mxu0 %v835
      %v898 = vpop.f32.mrb[0].mxu0
      %v899 = vadd.f32 0.0, %v898
      %v900 = vpop.f32.mrb[0].mxu0
      %v901 = vpop.f32.mrb[0].mxu0
      %v902 = vadd.f32 0.0, %v901
      %v903 = vpop.f32.mrb[0].mxu0
      %904 = vdwg.mxu0
      %v905 = vadd.f32 %v787, %v875
      %v906 = vadd.f32 %v788, %v878
      %v907 = vadd.f32 %v789, %v883
      %v908 = vadd.f32 %v790, %v886
      %v909 = vadd.f32 %v791, %v891
      %v910 = vadd.f32 %v792, %v894
      %v911 = vadd.f32 %v793, %v899
      %v912 = vadd.f32 %v794, %v902
      %v913 = vld [vmem:[%s673] sm:$0xf]
      %v914 = vld [vmem:[%s673 + $0x4] sm:$0x1]
      %v915 = vld [vmem:[%s673 + $0x8] sm:$0xf]
      %v916 = vld [vmem:[%s673 + $0xc] sm:$0x1]
      %v917 = vld [vmem:[%s673 + $0x10] sm:$0xf]
      %v918 = vld [vmem:[%s673 + $0x14] sm:$0x1]
      %v919 = vld [vmem:[%s673 + $0x18] sm:$0xf]
      %v920 = vld [vmem:[%s673 + $0x1c] sm:$0x1]
      %v921 = vld [vmem:[%s673 + $0x20] sm:$0xf]
      %v922 = vld [vmem:[%s673 + $0x24] sm:$0x1]
      %v923 = vld [vmem:[%s673 + $0x28] sm:$0xf]
      %v924 = vld [vmem:[%s673 + $0x2c] sm:$0x1]
      %v925 = vld [vmem:[%s673 + $0x30] sm:$0xf]
      %v926 = vld [vmem:[%s673 + $0x34] sm:$0x1]
      %v927 = vld [vmem:[%s673 + $0x38] sm:$0xf]
      %v928 = vld [vmem:[%s673 + $0x3c] sm:$0x1]
      %v930 = vshrl.u32 %v913, 16
      %v932 = vrot.slane %v930, 4
      %v933 = vshll.u32 %v913, 16
      %v935 = vrot.slane %v933, 5
      %v936 = vor.u32 %v932, %v935
      %v937 = vrot.slane %v936, 4
      %v939 = vshll.u32 %v914, 16
      %v941 = vrot.slane %v939, 5
      %v942 = vsel %vm459, %v937, %v941
      %v944 = vshrl.u32 %v915, 16
      %v946 = vrot.slane %v944, 4
      %v947 = vshll.u32 %v915, 16
      %v949 = vrot.slane %v947, 5
      %v950 = vor.u32 %v946, %v949
      %v951 = vrot.slane %v950, 4
      %v953 = vshll.u32 %v916, 16
      %v955 = vrot.slane %v953, 5
      %v956 = vsel %vm459, %v951, %v955
      %v958 = vshrl.u32 %v917, 16
      %v960 = vrot.slane %v958, 4
      %v961 = vshll.u32 %v917, 16
      %v963 = vrot.slane %v961, 5
      %v964 = vor.u32 %v960, %v963
      %v965 = vrot.slane %v964, 4
      %v967 = vshll.u32 %v918, 16
      %v969 = vrot.slane %v967, 5
      %v970 = vsel %vm459, %v965, %v969
      %v972 = vshrl.u32 %v919, 16
      %v974 = vrot.slane %v972, 4
      %v975 = vshll.u32 %v919, 16
      %v977 = vrot.slane %v975, 5
      %v978 = vor.u32 %v974, %v977
      %v979 = vrot.slane %v978, 4
      %v981 = vshll.u32 %v920, 16
      %v983 = vrot.slane %v981, 5
      %v984 = vsel %vm459, %v979, %v983
      %v986 = vshrl.u32 %v921, 16
      %v988 = vrot.slane %v986, 4
      %v989 = vshll.u32 %v921, 16
      %v991 = vrot.slane %v989, 5
      %v992 = vor.u32 %v988, %v991
      %v993 = vrot.slane %v992, 4
      %v995 = vshll.u32 %v922, 16
      %v997 = vrot.slane %v995, 5
      %v998 = vsel %vm459, %v993, %v997
      %v1000 = vshrl.u32 %v923, 16
      %v1002 = vrot.slane %v1000, 4
      %v1003 = vshll.u32 %v923, 16
      %v1005 = vrot.slane %v1003, 5
      %v1006 = vor.u32 %v1002, %v1005
      %v1007 = vrot.slane %v1006, 4
      %v1009 = vshll.u32 %v924, 16
      %v1011 = vrot.slane %v1009, 5
      %v1012 = vsel %vm459, %v1007, %v1011
      %v1014 = vshrl.u32 %v925, 16
      %v1016 = vrot.slane %v1014, 4
      %v1017 = vshll.u32 %v925, 16
      %v1019 = vrot.slane %v1017, 5
      %v1020 = vor.u32 %v1016, %v1019
      %v1021 = vrot.slane %v1020, 4
      %v1023 = vshll.u32 %v926, 16
      %v1025 = vrot.slane %v1023, 5
      %v1026 = vsel %vm459, %v1021, %v1025
      %v1028 = vshrl.u32 %v927, 16
      %v1030 = vrot.slane %v1028, 4
      %v1031 = vshll.u32 %v927, 16
      %v1033 = vrot.slane %v1031, 5
      %v1034 = vor.u32 %v1030, %v1033
      %v1035 = vrot.slane %v1034, 4
      %v1037 = vshll.u32 %v928, 16
      %v1039 = vrot.slane %v1037, 5
      %v1040 = vsel %vm459, %v1035, %v1039
      %v1041 = vld [vmem:[%s1 + $0x8] sm:$0xc]
      %v1042 = vunpack.c.l.b16 %v942
      %v1043 = vunpack.c.l.b16 %v956
      %v1044 = vunpack.c.l.b16 %v970
      %v1045 = vunpack.c.l.b16 %v984
      %v1046 = vunpack.c.l.b16 %v998
      %v1047 = vunpack.c.l.b16 %v1012
      %v1048 = vunpack.c.l.b16 %v1026
      %v1049 = vunpack.c.l.b16 %v1040
      %v1050 = vpack.c.b16 %v1043, %v1042
      %v1051 = vpack.c.b16 %v1045, %v1044
      %v1052 = vpack.c.b16 %v1047, %v1046
      %v1053 = vpack.c.b16 %v1049, %v1048
      %v1055 = vunpack.c.l.b16 %v1041
      %v1056 = vpack.c.b16 %v1055, %v1055
      %v1057 = vrot.slane %v1056, 2
      %v1059 = vsel %vm259, %v1050, 0
      %v1062 = vsel %vm259, %v1051, 0
      %v1065 = vsel %vm259, %v1052, 0
      %v1068 = vsel %vm259, %v1053, 0
      %v1071 = vsel %vm272, %v1057, 0
      %1073 = vmatprep.subr.bf16.mxu0 0
      %1074 = vmatpush1.bf16.msra.mxu0 %v1071
      %1075 = vmatprep.subr.bf16.mxu0 0
      %1076 = vmatpush1.bf16.msra.mxu0 0
      %1077 = vmatprep.subr.bf16.mxu0 0
      %1078 = vmatpush1.bf16.msra.mxu0 0
      %1079 = vmatprep.subr.bf16.mxu0 0
      %1080 = vmatpush1.bf16.msra.mxu0 0
      %1081 = vmatprep.subr.bf16.mxu0 0
      %1082 = vmatpush1.bf16.msra.mxu0 0
      %1083 = vmatprep.subr.bf16.mxu0 0
      %1084 = vmatpush1.bf16.msra.mxu0 0
      %1085 = vmatprep.subr.bf16.mxu0 0
      %1086 = vmatpush1.bf16.msra.mxu0 0
      %1087 = vmatprep.subr.bf16.mxu0 0
      %1088 = vmatpush1.bf16.msra.mxu0 0
      %1089 = vmatprep.subr.bf16.mxu0 0
      %1090 = vmatpush1.bf16.msra.mxu0 0
      %1091 = vmatprep.subr.bf16.mxu0 0
      %1092 = vmatpush1.bf16.msra.mxu0 0
      %1093 = vmatprep.subr.bf16.mxu0 0
      %1094 = vmatpush1.bf16.msra.mxu0 0
      %1095 = vmatprep.subr.bf16.mxu0 0
      %1096 = vmatpush1.bf16.msra.mxu0 0
      %1097 = vmatprep.subr.bf16.mxu0 0
      %1098 = vmatpush1.bf16.msra.mxu0 0
      %1099 = vmatprep.subr.bf16.mxu0 0
      %1100 = vmatpush1.bf16.msra.mxu0 0
      %1101 = vmatprep.subr.bf16.mxu0 0
      %1102 = vmatpush1.bf16.msra.mxu0 0
      %1103 = vmatprep.subr.bf16.mxu0 0
      %1104 = vmatpush1.bf16.msra.mxu0 0
      %1105 = vmatprep.mubr.bf16.mxu0 0
      %1106 = vmatmul.mubr.bf16.gmra.mrb[0].mxu0 %v1059
      %v1107 = vpop.f32.mrb[0].mxu0
      %v1108 = vadd.f32 0.0, %v1107
      %v1109 = vpop.f32.mrb[0].mxu0
      %v1110 = vpop.f32.mrb[0].mxu0
      %v1111 = vadd.f32 0.0, %v1110
      %v1112 = vpop.f32.mrb[0].mxu0
      %1113 = vmatprep.mubr.bf16.mxu0 0
      %1114 = vmatmul.mubr.bf16.gmra.mrb[0].mxu0 %v1062
      %v1115 = vpop.f32.mrb[0].mxu0
      %v1116 = vadd.f32 0.0, %v1115
      %v1117 = vpop.f32.mrb[0].mxu0
      %v1118 = vpop.f32.mrb[0].mxu0
      %v1119 = vadd.f32 0.0, %v1118
      %v1120 = vpop.f32.mrb[0].mxu0
      %1121 = vmatprep.mubr.bf16.mxu0 0
      %1122 = vmatmul.mubr.bf16.gmra.mrb[0].mxu0 %v1065
      %v1123 = vpop.f32.mrb[0].mxu0
      %v1124 = vadd.f32 0.0, %v1123
      %v1125 = vpop.f32.mrb[0].mxu0
      %v1126 = vpop.f32.mrb[0].mxu0
      %v1127 = vadd.f32 0.0, %v1126
      %v1128 = vpop.f32.mrb[0].mxu0
      %1129 = vmatprep.mubr.bf16.mxu0 0
      %1130 = vmatmul.mubr.bf16.gmra.mrb[0].mxu0 %v1068
      %v1131 = vpop.f32.mrb[0].mxu0
      %v1132 = vadd.f32 0.0, %v1131
      %v1133 = vpop.f32.mrb[0].mxu0
      %v1134 = vpop.f32.mrb[0].mxu0
      %v1135 = vadd.f32 0.0, %v1134
      %v1136 = vpop.f32.mrb[0].mxu0
      %1137 = vdwg.mxu0
      %v1138 = vadd.f32 %v905, %v1108
      %v1139 = vadd.f32 %v906, %v1111
      %v1140 = vadd.f32 %v907, %v1116
      %v1141 = vadd.f32 %v908, %v1119
      %v1142 = vadd.f32 %v909, %v1124
      %v1143 = vadd.f32 %v910, %v1127
      %v1144 = vadd.f32 %v911, %v1132
      %v1145 = vadd.f32 %v912, %v1135
      %s1146 = scalar_lea.vmem %s203, 8
      %v1147 = vld [vmem:[%s1146] sm:$0xf]
      %v1148 = vld [vmem:[%s1146 + $0x8] sm:$0xf]
      %v1149 = vld [vmem:[%s1146 + $0x10] sm:$0xf]
      %v1150 = vld [vmem:[%s1146 + $0x18] sm:$0xf]
      %v1151 = vld [vmem:[%s1146 + $0x20] sm:$0xf]
      %v1152 = vld [vmem:[%s1146 + $0x28] sm:$0xf]
      %v1153 = vld [vmem:[%s1146 + $0x30] sm:$0xf]
      %v1154 = vld [vmem:[%s1146 + $0x38] sm:$0xf]
      %v1155 = vld [vmem:[%s1 + $0xc] sm:$0x3]
      %v1164 = vunpack.c.l.b16 %v1147
      %v1165 = vunpack.c.l.b16 %v1148
      %v1166 = vunpack.c.l.b16 %v1149
      %v1167 = vunpack.c.l.b16 %v1150
      %v1168 = vunpack.c.l.b16 %v1151
      %v1169 = vunpack.c.l.b16 %v1152
      %v1170 = vunpack.c.l.b16 %v1153
      %v1171 = vunpack.c.l.b16 %v1154
      %v1172 = vpack.c.b16 %v1165, %v1164
      %v1173 = vpack.c.b16 %v1167, %v1166
      %v1174 = vpack.c.b16 %v1169, %v1168
      %v1175 = vpack.c.b16 %v1171, %v1170
      %v1177 = vsel %vm259, %v1172, 0
      %v1180 = vsel %vm259, %v1173, 0
      %v1183 = vsel %vm259, %v1174, 0
      %v1186 = vsel %vm259, %v1175, 0
      %v1189 = vsel %vm272, %v1155, 0
      %1191 = vmatprep.subr.bf16.mxu0 0
      %1192 = vmatpush1.bf16.msra.mxu0 %v1189
      %1193 = vmatprep.subr.bf16.mxu0 0
      %1194 = vmatpush1.bf16.msra.mxu0 0
      %1195 = vmatprep.subr.bf16.mxu0 0
      %1196 = vmatpush1.bf16.msra.mxu0 0
      %1197 = vmatprep.subr.bf16.mxu0 0
      %1198 = vmatpush1.bf16.msra.mxu0 0
      %1199 = vmatprep.subr.bf16.mxu0 0
      %1200 = vmatpush1.bf16.msra.mxu0 0
      %1201 = vmatprep.subr.bf16.mxu0 0
      %1202 = vmatpush1.bf16.msra.mxu0 0
      %1203 = vmatprep.subr.bf16.mxu0 0
      %1204 = vmatpush1.bf16.msra.mxu0 0
      %1205 = vmatprep.subr.bf16.mxu0 0
      %1206 = vmatpush1.bf16.msra.mxu0 0
      %1207 = vmatprep.subr.bf16.mxu0 0
      %1208 = vmatpush1.bf16.msra.mxu0 0
      %1209 = vmatprep.subr.bf16.mxu0 0
      %1210 = vmatpush1.bf16.msra.mxu0 0
      %1211 = vmatprep.subr.bf16.mxu0 0
      %1212 = vmatpush1.bf16.msra.mxu0 0
      %1213 = vmatprep.subr.bf16.mxu0 0
      %1214 = vmatpush1.bf16.msra.mxu0 0
      %1215 = vmatprep.subr.bf16.mxu0 0
      %1216 = vmatpush1.bf16.msra.mxu0 0
      %1217 = vmatprep.subr.bf16.mxu0 0
      %1218 = vmatpush1.bf16.msra.mxu0 0
      %1219 = vmatprep.subr.bf16.mxu0 0
      %1220 = vmatpush1.bf16.msra.mxu0 0
      %1221 = vmatprep.subr.bf16.mxu0 0
      %1222 = vmatpush1.bf16.msra.mxu0 0
      %1223 = vmatprep.mubr.bf16.mxu0 0
      %1224 = vmatmul.mubr.bf16.gmra.mrb[0].mxu0 %v1177
      %v1225 = vpop.f32.mrb[0].mxu0
      %v1226 = vadd.f32 0.0, %v1225
      %v1227 = vpop.f32.mrb[0].mxu0
      %v1228 = vpop.f32.mrb[0].mxu0
      %v1229 = vadd.f32 0.0, %v1228
      %v1230 = vpop.f32.mrb[0].mxu0
      %1231 = vmatprep.mubr.bf16.mxu0 0
      %1232 = vmatmul.mubr.bf16.gmra.mrb[0].mxu0 %v1180
      %v1233 = vpop.f32.mrb[0].mxu0
      %v1234 = vadd.f32 0.0, %v1233
      %v1235 = vpop.f32.mrb[0].mxu0
      %v1236 = vpop.f32.mrb[0].mxu0
      %v1237 = vadd.f32 0.0, %v1236
      %v1238 = vpop.f32.mrb[0].mxu0
      %1239 = vmatprep.mubr.bf16.mxu0 0
      %1240 = vmatmul.mubr.bf16.gmra.mrb[0].mxu0 %v1183
      %v1241 = vpop.f32.mrb[0].mxu0
      %v1242 = vadd.f32 0.0, %v1241
      %v1243 = vpop.f32.mrb[0].mxu0
      %v1244 = vpop.f32.mrb[0].mxu0
      %v1245 = vadd.f32 0.0, %v1244
      %v1246 = vpop.f32.mrb[0].mxu0
      %1247 = vmatprep.mubr.bf16.mxu0 0
      %1248 = vmatmul.mubr.bf16.gmra.mrb[0].mxu0 %v1186
      %v1249 = vpop.f32.mrb[0].mxu0
      %v1250 = vadd.f32 0.0, %v1249
      %v1251 = vpop.f32.mrb[0].mxu0
      %v1252 = vpop.f32.mrb[0].mxu0
      %v1253 = vadd.f32 0.0, %v1252
      %v1254 = vpop.f32.mrb[0].mxu0
      %1255 = vdwg.mxu0
      %v1256 = vadd.f32 %v1138, %v1226
      %v1257 = vadd.f32 %v1139, %v1229
      %v1258 = vadd.f32 %v1140, %v1234
      %v1259 = vadd.f32 %v1141, %v1237
      %v1260 = vadd.f32 %v1142, %v1242
      %v1261 = vadd.f32 %v1143, %v1245
      %v1262 = vadd.f32 %v1144, %v1250
      %v1263 = vadd.f32 %v1145, %v1253
      %s1264 = scalar_lea.vmem %s203, 80
      %v1265 = vld [vmem:[%s1264] sm:$0xf]
      %v1266 = vld [vmem:[%s1264 + $0x8] sm:$0xf]
      %v1267 = vld [vmem:[%s1264 + $0x10] sm:$0xf]
      %v1268 = vld [vmem:[%s1264 + $0x18] sm:$0xf]
      %v1269 = vld [vmem:[%s1264 + $0x20] sm:$0xf]
      %v1270 = vld [vmem:[%s1264 + $0x28] sm:$0xf]
      %v1271 = vld [vmem:[%s1264 + $0x30] sm:$0xf]
      %v1272 = vld [vmem:[%s1264 + $0x38] sm:$0xf]
      %v1273 = vld [vmem:[%s1 + $0xc] sm:$0xc]
      %v1282 = vunpack.c.l.b16 %v1265
      %v1283 = vunpack.c.l.b16 %v1266
      %v1284 = vunpack.c.l.b16 %v1267
      %v1285 = vunpack.c.l.b16 %v1268
      %v1286 = vunpack.c.l.b16 %v1269
      %v1287 = vunpack.c.l.b16 %v1270
      %v1288 = vunpack.c.l.b16 %v1271
      %v1289 = vunpack.c.l.b16 %v1272
      %v1290 = vpack.c.b16 %v1283, %v1282
      %v1291 = vpack.c.b16 %v1285, %v1284
      %v1292 = vpack.c.b16 %v1287, %v1286
      %v1293 = vpack.c.b16 %v1289, %v1288
      %v1295 = vunpack.c.l.b16 %v1273
      %v1296 = vpack.c.b16 %v1295, %v1295
      %v1297 = vrot.slane %v1296, 2
      %v1299 = vsel %vm259, %v1290, 0
      %v1302 = vsel %vm259, %v1291, 0
      %v1305 = vsel %vm259, %v1292, 0
      %v1308 = vsel %vm259, %v1293, 0
      %v1311 = vsel %vm272, %v1297, 0
      %1313 = vmatprep.subr.bf16.mxu0 0
      %1314 = vmatpush1.bf16.msra.mxu0 %v1311
      %1315 = vmatprep.subr.bf16.mxu0 0
      %1316 = vmatpush1.bf16.msra.mxu0 0
      %1317 = vmatprep.subr.bf16.mxu0 0
      %1318 = vmatpush1.bf16.msra.mxu0 0
      %1319 = vmatprep.subr.bf16.mxu0 0
      %1320 = vmatpush1.bf16.msra.mxu0 0
      %1321 = vmatprep.subr.bf16.mxu0 0
      %1322 = vmatpush1.bf16.msra.mxu0 0
      %1323 = vmatprep.subr.bf16.mxu0 0
      %1324 = vmatpush1.bf16.msra.mxu0 0
      %1325 = vmatprep.subr.bf16.mxu0 0
      %1326 = vmatpush1.bf16.msra.mxu0 0
      %1327 = vmatprep.subr.bf16.mxu0 0
      %1328 = vmatpush1.bf16.msra.mxu0 0
      %1329 = vmatprep.subr.bf16.mxu0 0
      %1330 = vmatpush1.bf16.msra.mxu0 0
      %1331 = vmatprep.subr.bf16.mxu0 0
      %1332 = vmatpush1.bf16.msra.mxu0 0
      %1333 = vmatprep.subr.bf16.mxu0 0
      %1334 = vmatpush1.bf16.msra.mxu0 0
      %1335 = vmatprep.subr.bf16.mxu0 0
      %1336 = vmatpush1.bf16.msra.mxu0 0
      %1337 = vmatprep.subr.bf16.mxu0 0
      %1338 = vmatpush1.bf16.msra.mxu0 0
      %1339 = vmatprep.subr.bf16.mxu0 0
      %1340 = vmatpush1.bf16.msra.mxu0 0
      %1341 = vmatprep.subr.bf16.mxu0 0
      %1342 = vmatpush1.bf16.msra.mxu0 0
      %1343 = vmatprep.subr.bf16.mxu0 0
      %1344 = vmatpush1.bf16.msra.mxu0 0
      %1345 = vmatprep.mubr.bf16.mxu0 0
      %1346 = vmatmul.mubr.bf16.gmra.mrb[0].mxu0 %v1299
      %v1347 = vpop.f32.mrb[0].mxu0
      %v1348 = vadd.f32 0.0, %v1347
      %v1349 = vpop.f32.mrb[0].mxu0
      %v1350 = vpop.f32.mrb[0].mxu0
      %v1351 = vadd.f32 0.0, %v1350
      %v1352 = vpop.f32.mrb[0].mxu0
      %1353 = vmatprep.mubr.bf16.mxu0 0
      %1354 = vmatmul.mubr.bf16.gmra.mrb[0].mxu0 %v1302
      %v1355 = vpop.f32.mrb[0].mxu0
      %v1356 = vadd.f32 0.0, %v1355
      %v1357 = vpop.f32.mrb[0].mxu0
      %v1358 = vpop.f32.mrb[0].mxu0
      %v1359 = vadd.f32 0.0, %v1358
      %v1360 = vpop.f32.mrb[0].mxu0
      %1361 = vmatprep.mubr.bf16.mxu0 0
      %1362 = vmatmul.mubr.bf16.gmra.mrb[0].mxu0 %v1305
      %v1363 = vpop.f32.mrb[0].mxu0
      %v1364 = vadd.f32 0.0, %v1363
      %v1365 = vpop.f32.mrb[0].mxu0
      %v1366 = vpop.f32.mrb[0].mxu0
      %v1367 = vadd.f32 0.0, %v1366
      %v1368 = vpop.f32.mrb[0].mxu0
      %1369 = vmatprep.mubr.bf16.mxu0 0
      %1370 = vmatmul.mubr.bf16.gmra.mrb[0].mxu0 %v1308
      %v1371 = vpop.f32.mrb[0].mxu0
      %v1372 = vadd.f32 0.0, %v1371
      %v1373 = vpop.f32.mrb[0].mxu0
      %v1374 = vpop.f32.mrb[0].mxu0
      %v1375 = vadd.f32 0.0, %v1374
      %v1376 = vpop.f32.mrb[0].mxu0
      %1377 = vdwg.mxu0
      %v1378 = vadd.f32 %v1256, %v1348
      %v1379 = vadd.f32 %v1257, %v1351
      %v1380 = vadd.f32 %v1258, %v1356
      %v1381 = vadd.f32 %v1259, %v1359
      %v1382 = vadd.f32 %v1260, %v1364
      %v1383 = vadd.f32 %v1261, %v1367
      %v1384 = vadd.f32 %v1262, %v1372
      %v1385 = vadd.f32 %v1263, %v1375
      %v1386 = vld [vmem:[%s1146] sm:$0xf]
      %v1387 = vld [vmem:[%s1146 + $0x4] sm:$0x1]
      %v1388 = vld [vmem:[%s1146 + $0x8] sm:$0xf]
      %v1389 = vld [vmem:[%s1146 + $0xc] sm:$0x1]
      %v1390 = vld [vmem:[%s1146 + $0x10] sm:$0xf]
      %v1391 = vld [vmem:[%s1146 + $0x14] sm:$0x1]
      %v1392 = vld [vmem:[%s1146 + $0x18] sm:$0xf]
      %v1393 = vld [vmem:[%s1146 + $0x1c] sm:$0x1]
      %v1394 = vld [vmem:[%s1146 + $0x20] sm:$0xf]
      %v1395 = vld [vmem:[%s1146 + $0x24] sm:$0x1]
      %v1396 = vld [vmem:[%s1146 + $0x28] sm:$0xf]
      %v1397 = vld [vmem:[%s1146 + $0x2c] sm:$0x1]
      %v1398 = vld [vmem:[%s1146 + $0x30] sm:$0xf]
      %v1399 = vld [vmem:[%s1146 + $0x34] sm:$0x1]
      %v1400 = vld [vmem:[%s1146 + $0x38] sm:$0xf]
      %v1401 = vld [vmem:[%s1146 + $0x3c] sm:$0x1]
      %v1403 = vshrl.u32 %v1386, 16
      %v1405 = vrot.slane %v1403, 4
      %v1406 = vshll.u32 %v1386, 16
      %v1408 = vrot.slane %v1406, 5
      %v1409 = vor.u32 %v1405, %v1408
      %v1410 = vrot.slane %v1409, 4
      %v1412 = vshll.u32 %v1387, 16
      %v1414 = vrot.slane %v1412, 5
      %v1415 = vsel %vm459, %v1410, %v1414
      %v1417 = vshrl.u32 %v1388, 16
      %v1419 = vrot.slane %v1417, 4
      %v1420 = vshll.u32 %v1388, 16
      %v1422 = vrot.slane %v1420, 5
      %v1423 = vor.u32 %v1419, %v1422
      %v1424 = vrot.slane %v1423, 4
      %v1426 = vshll.u32 %v1389, 16
      %v1428 = vrot.slane %v1426, 5
      %v1429 = vsel %vm459, %v1424, %v1428
      %v1431 = vshrl.u32 %v1390, 16
      %v1433 = vrot.slane %v1431, 4
      %v1434 = vshll.u32 %v1390, 16
      %v1436 = vrot.slane %v1434, 5
      %v1437 = vor.u32 %v1433, %v1436
      %v1438 = vrot.slane %v1437, 4
      %v1440 = vshll.u32 %v1391, 16
      %v1442 = vrot.slane %v1440, 5
      %v1443 = vsel %vm459, %v1438, %v1442
      %v1445 = vshrl.u32 %v1392, 16
      %v1447 = vrot.slane %v1445, 4
      %v1448 = vshll.u32 %v1392, 16
      %v1450 = vrot.slane %v1448, 5
      %v1451 = vor.u32 %v1447, %v1450
      %v1452 = vrot.slane %v1451, 4
      %v1454 = vshll.u32 %v1393, 16
      %v1456 = vrot.slane %v1454, 5
      %v1457 = vsel %vm459, %v1452, %v1456
      %v1459 = vshrl.u32 %v1394, 16
      %v1461 = vrot.slane %v1459, 4
      %v1462 = vshll.u32 %v1394, 16
      %v1464 = vrot.slane %v1462, 5
      %v1465 = vor.u32 %v1461, %v1464
      %v1466 = vrot.slane %v1465, 4
      %v1468 = vshll.u32 %v1395, 16
      %v1470 = vrot.slane %v1468, 5
      %v1471 = vsel %vm459, %v1466, %v1470
      %v1473 = vshrl.u32 %v1396, 16
      %v1475 = vrot.slane %v1473, 4
      %v1476 = vshll.u32 %v1396, 16
      %v1478 = vrot.slane %v1476, 5
      %v1479 = vor.u32 %v1475, %v1478
      %v1480 = vrot.slane %v1479, 4
      %v1482 = vshll.u32 %v1397, 16
      %v1484 = vrot.slane %v1482, 5
      %v1485 = vsel %vm459, %v1480, %v1484
      %v1487 = vshrl.u32 %v1398, 16
      %v1489 = vrot.slane %v1487, 4
      %v1490 = vshll.u32 %v1398, 16
      %v1492 = vrot.slane %v1490, 5
      %v1493 = vor.u32 %v1489, %v1492
      %v1494 = vrot.slane %v1493, 4
      %v1496 = vshll.u32 %v1399, 16
      %v1498 = vrot.slane %v1496, 5
      %v1499 = vsel %vm459, %v1494, %v1498
      %v1501 = vshrl.u32 %v1400, 16
      %v1503 = vrot.slane %v1501, 4
      %v1504 = vshll.u32 %v1400, 16
      %v1506 = vrot.slane %v1504, 5
      %v1507 = vor.u32 %v1503, %v1506
      %v1508 = vrot.slane %v1507, 4
      %v1510 = vshll.u32 %v1401, 16
      %v1512 = vrot.slane %v1510, 5
      %v1513 = vsel %vm459, %v1508, %v1512
      %v1514 = vld [vmem:[%s1 + $0x10] sm:$0x3]
      %v1515 = vunpack.c.l.b16 %v1415
      %v1516 = vunpack.c.l.b16 %v1429
      %v1517 = vunpack.c.l.b16 %v1443
      %v1518 = vunpack.c.l.b16 %v1457
      %v1519 = vunpack.c.l.b16 %v1471
      %v1520 = vunpack.c.l.b16 %v1485
      %v1521 = vunpack.c.l.b16 %v1499
      %v1522 = vunpack.c.l.b16 %v1513
      %v1523 = vpack.c.b16 %v1516, %v1515
      %v1524 = vpack.c.b16 %v1518, %v1517
      %v1525 = vpack.c.b16 %v1520, %v1519
      %v1526 = vpack.c.b16 %v1522, %v1521
      %v1528 = vsel %vm259, %v1523, 0
      %v1531 = vsel %vm259, %v1524, 0
      %v1534 = vsel %vm259, %v1525, 0
      %v1537 = vsel %vm259, %v1526, 0
      %v1540 = vsel %vm272, %v1514, 0
      %1542 = vmatprep.subr.bf16.mxu0 0
      %1543 = vmatpush1.bf16.msra.mxu0 %v1540
      %1544 = vmatprep.subr.bf16.mxu0 0
      %1545 = vmatpush1.bf16.msra.mxu0 0
      %1546 = vmatprep.subr.bf16.mxu0 0
      %1547 = vmatpush1.bf16.msra.mxu0 0
      %1548 = vmatprep.subr.bf16.mxu0 0
      %1549 = vmatpush1.bf16.msra.mxu0 0
      %1550 = vmatprep.subr.bf16.mxu0 0
      %1551 = vmatpush1.bf16.msra.mxu0 0
      %1552 = vmatprep.subr.bf16.mxu0 0
      %1553 = vmatpush1.bf16.msra.mxu0 0
      %1554 = vmatprep.subr.bf16.mxu0 0
      %1555 = vmatpush1.bf16.msra.mxu0 0
      %1556 = vmatprep.subr.bf16.mxu0 0
      %1557 = vmatpush1.bf16.msra.mxu0 0
      %1558 = vmatprep.subr.bf16.mxu0 0
      %1559 = vmatpush1.bf16.msra.mxu0 0
      %1560 = vmatprep.subr.bf16.mxu0 0
      %1561 = vmatpush1.bf16.msra.mxu0 0
      %1562 = vmatprep.subr.bf16.mxu0 0
      %1563 = vmatpush1.bf16.msra.mxu0 0
      %1564 = vmatprep.subr.bf16.mxu0 0
      %1565 = vmatpush1.bf16.msra.mxu0 0
      %1566 = vmatprep.subr.bf16.mxu0 0
      %1567 = vmatpush1.bf16.msra.mxu0 0
      %1568 = vmatprep.subr.bf16.mxu0 0
      %1569 = vmatpush1.bf16.msra.mxu0 0
      %1570 = vmatprep.subr.bf16.mxu0 0
      %1571 = vmatpush1.bf16.msra.mxu0 0
      %1572 = vmatprep.subr.bf16.mxu0 0
      %1573 = vmatpush1.bf16.msra.mxu0 0
      %1574 = vmatprep.mubr.bf16.mxu0 0
      %1575 = vmatmul.mubr.bf16.gmra.mrb[0].mxu0 %v1528
      %v1576 = vpop.f32.mrb[0].mxu0
      %v1577 = vadd.f32 0.0, %v1576
      %v1578 = vpop.f32.mrb[0].mxu0
      %v1579 = vpop.f32.mrb[0].mxu0
      %v1580 = vadd.f32 0.0, %v1579
      %v1581 = vpop.f32.mrb[0].mxu0
      %1582 = vmatprep.mubr.bf16.mxu0 0
      %1583 = vmatmul.mubr.bf16.gmra.mrb[0].mxu0 %v1531
      %v1584 = vpop.f32.mrb[0].mxu0
      %v1585 = vadd.f32 0.0, %v1584
      %v1586 = vpop.f32.mrb[0].mxu0
      %v1587 = vpop.f32.mrb[0].mxu0
      %v1588 = vadd.f32 0.0, %v1587
      %v1589 = vpop.f32.mrb[0].mxu0
      %1590 = vmatprep.mubr.bf16.mxu0 0
      %1591 = vmatmul.mubr.bf16.gmra.mrb[0].mxu0 %v1534
      %v1592 = vpop.f32.mrb[0].mxu0
      %v1593 = vadd.f32 0.0, %v1592
      %v1594 = vpop.f32.mrb[0].mxu0
      %v1595 = vpop.f32.mrb[0].mxu0
      %v1596 = vadd.f32 0.0, %v1595
      %v1597 = vpop.f32.mrb[0].mxu0
      %1598 = vmatprep.mubr.bf16.mxu0 0
      %1599 = vmatmul.mubr.bf16.gmra.mrb[0].mxu0 %v1537
      %v1600 = vpop.f32.mrb[0].mxu0
      %v1601 = vadd.f32 0.0, %v1600
      %v1602 = vpop.f32.mrb[0].mxu0
      %v1603 = vpop.f32.mrb[0].mxu0
      %v1604 = vadd.f32 0.0, %v1603
      %v1605 = vpop.f32.mrb[0].mxu0
      %1606 = vdwg.mxu0
      %v1607 = vadd.f32 %v1378, %v1577
      %v1608 = vadd.f32 %v1379, %v1580
      %v1609 = vadd.f32 %v1380, %v1585
      %v1610 = vadd.f32 %v1381, %v1588
      %v1611 = vadd.f32 %v1382, %v1593
      %v1612 = vadd.f32 %v1383, %v1596
      %v1613 = vadd.f32 %v1384, %v1601
      %v1614 = vadd.f32 %v1385, %v1604
      %v1615 = vpack.c.bf16 %v1608, %v1607
      %v1616 = vpack.c.bf16 %v1610, %v1609
      %v1617 = vpack.c.bf16 %v1612, %v1611
      %v1618 = vpack.c.bf16 %v1614, %v1613
      %v1623 = vunpack.c.l.b16 %v1615
      %v1624 = vunpack.c.h.b16 %v1615
      %v1625 = vunpack.c.l.b16 %v1616
      %v1626 = vunpack.c.h.b16 %v1616
      %v1627 = vunpack.c.l.b16 %v1617
      %v1628 = vunpack.c.h.b16 %v1617
      %v1629 = vunpack.c.l.b16 %v1618
      %v1630 = vunpack.c.h.b16 %v1618
      %v1631 = vpack.c.b16 %v1623, %v1623
      %v1632 = vpack.c.b16 %v1624, %v1624
      %v1633 = vpack.c.b16 %v1625, %v1625
      %v1634 = vpack.c.b16 %v1626, %v1626
      %v1635 = vpack.c.b16 %v1627, %v1627
      %v1636 = vpack.c.b16 %v1628, %v1628
      %v1637 = vpack.c.b16 %v1629, %v1629
      %v1638 = vpack.c.b16 %v1630, %v1630
      %1647 = vst [vmem:[%s208] sm:$0xf] %v1631
      %1648 = vst [vmem:[%s208 + $0x4] sm:$0xf] %v1632
      %1649 = vst [vmem:[%s208 + $0x8] sm:$0xf] %v1633
      %1650 = vst [vmem:[%s208 + $0xc] sm:$0xf] %v1634
      %1651 = vst [vmem:[%s208 + $0x10] sm:$0xf] %v1635
      %1652 = vst [vmem:[%s208 + $0x14] sm:$0xf] %v1636
      %1653 = vst [vmem:[%s208 + $0x18] sm:$0xf] %v1637
      %1654 = vst [vmem:[%s208 + $0x1c] sm:$0xf] %v1638
      %v1655 = vadd.f32 %v1607, %v1608
      %v1656 = vadd.f32 %v1655, %v1609
      %v1657 = vadd.f32 %v1656, %v1610
      %v1658 = vadd.f32 %v1657, %v1611
      %v1659 = vadd.f32 %v1658, %v1612
      %v1660 = vadd.f32 %v1659, %v1613
      %v1661 = vadd.f32 %v1660, %v1614
      %v1662 = vrot.slane %v1661, 4
      %v1663 = vadd.f32 %v1661, %v1662
      %v1664 = vrot.slane %v1663, 2
      %v1665 = vadd.f32 %v1663, %v1664
      %v1666 = vrot.slane %v1665, 1
      %v1667 = vadd.f32 %v1665, %v1666
      %1668 = vst [vmem:[%s211] sm:$0x1] %v1667
      %v1669 = vmul.f32 %v1607, %v1607
      %v1670 = vmul.f32 %v1608, %v1608
      %v1671 = vmul.f32 %v1609, %v1609
      %v1672 = vmul.f32 %v1610, %v1610
      %v1673 = vmul.f32 %v1611, %v1611
      %v1674 = vmul.f32 %v1612, %v1612
      %v1675 = vmul.f32 %v1613, %v1613
      %v1676 = vmul.f32 %v1614, %v1614
      %v1677 = vadd.f32 %v1669, %v1670
      %v1678 = vadd.f32 %v1677, %v1671
      %v1679 = vadd.f32 %v1678, %v1672
      %v1680 = vadd.f32 %v1679, %v1673
      %v1681 = vadd.f32 %v1680, %v1674
      %v1682 = vadd.f32 %v1681, %v1675
      %v1683 = vadd.f32 %v1682, %v1676
      %v1684 = vrot.slane %v1683, 4
      %v1685 = vadd.f32 %v1683, %v1684
      %v1686 = vrot.slane %v1685, 2
      %v1687 = vadd.f32 %v1685, %v1686
      %v1688 = vrot.slane %v1687, 1
      %v1689 = vadd.f32 %v1687, %v1688
      %1690 = vst [vmem:[%s214] sm:$0x1] %v1689
      %p1691 = scmp.lt.s32.totalorder %s16, 1
      %s1692 = scalar_select %p1691, %s16, 1
      %s1693 = smul.addr %s1692, 8
      %s1694 = smul.addr %s1693, 4
      %s1695 = scalar_lea.vmem %s2, %s1694
      %p1696 = scmp.lt.s32.totalorder %s16, 1
      %s1697 = scalar_select %p1696, %s16, 1
      %s1698 = scalar_lea.vmem %s3, %s1697
      %p1699 = scmp.lt.s32.totalorder %s16, 1
      %s1700 = scalar_select %p1699, %s16, 1
      %s1701 = scalar_lea.vmem %s4, %s1700
      // Predicated region
      $region29: #{basic_block_forward.4} parent=27 // pred_check
        %p1702 = pneg %p81
      $region30: #{basic_block_forward.4} parent=27 // pred_check_branch
        %1704 = sbr.rel (%p1702) target = $region32
      $region31: #{basic_block_forward.4} parent=27 // pred_region
        _
      $region32: #{basic_block_forward.4} parent=27 // pred_fallthru
        _
      // Predicated region
      $region33: #{basic_block_forward.4} parent=27 // pred_check
        %p1705 = pneg %p107
      $region34: #{basic_block_forward.4} parent=27 // pred_check_branch
        %1707 = sbr.rel (%p1705) target = $region36
      $region35: #{basic_block_forward.4} parent=27 // pred_region
        _
      $region36: #{basic_block_forward.4} parent=27 // pred_fallthru
        _
      // Predicated region
      $region37: #{basic_block_forward.4} parent=27 // pred_check
        %p1708 = pneg %p133
      $region38: #{basic_block_forward.4} parent=27 // pred_check_branch
        %1710 = sbr.rel (%p1708) target = $region40
      $region39: #{basic_block_forward.4} parent=27 // pred_region
        _
      $region40: #{basic_block_forward.4} parent=27 // pred_fallthru
        _
    $region28: #{basic_block_forward.4} parent=5 // pred_fallthru
      _
    %p1711 = scmp.le.s32.totalorder 2, %s11
    // Predicated region
    $region41: #{basic_block_forward.4} parent=5 // pred_check
      %p1712 = pneg %p1711
    $region42: #{basic_block_forward.4} parent=5 // pred_check_branch
      %1714 = sbr.rel (%p1712) target = $region44
    $region43: #{basic_block_forward.4} parent=5 // pred_region
      %s1715 = ssub.s32 %s11, 2
      // Predicated region
      $region45: #{basic_block_forward.4} parent=43 // pred_check
        %p1716 = pneg %p87
      $region46: #{basic_block_forward.4} parent=43 // pred_check_branch
        %1718 = sbr.rel (%p1716) target = $region48
      $region47: #{basic_block_forward.4} parent=43 // pred_region
        %p1719 = scmp.lt.s32.totalorder %s17, 1
        %s1720 = scalar_select %p1719, %s17, 1
        %s1721 = smul.addr %s1720, 8
        %s1722 = smul.addr %s1721, 4
        %s1723 = scalar_lea.vmem %s2, %s1722
      $region48: #{basic_block_forward.4} parent=43 // pred_fallthru
        _
      // Predicated region
      $region49: #{basic_block_forward.4} parent=43 // pred_check
        %p1724 = pneg %p113
      $region50: #{basic_block_forward.4} parent=43 // pred_check_branch
        %1726 = sbr.rel (%p1724) target = $region52
      $region51: #{basic_block_forward.4} parent=43 // pred_region
        %p1727 = scmp.lt.s32.totalorder %s17, 1
        %s1728 = scalar_select %p1727, %s17, 1
        %s1729 = scalar_lea.vmem %s3, %s1728
      $region52: #{basic_block_forward.4} parent=43 // pred_fallthru
        _
      // Predicated region
      $region53: #{basic_block_forward.4} parent=43 // pred_check
        %p1730 = pneg %p139
      $region54: #{basic_block_forward.4} parent=43 // pred_check_branch
        %1732 = sbr.rel (%p1730) target = $region56
      $region55: #{basic_block_forward.4} parent=43 // pred_region
        %p1733 = scmp.lt.s32.totalorder %s17, 1
        %s1734 = scalar_select %p1733, %s17, 1
        %s1735 = scalar_lea.vmem %s4, %s1734
      $region56: #{basic_block_forward.4} parent=43 // pred_fallthru
        _
    $region44: #{basic_block_forward.4} parent=5 // pred_fallthru
      _
  $region6: #{basic_block_forward.4} parent=0 // loop_footer
    %s15 = sadd.s32 1, %s11
  $region7: #{basic_block_forward.4} parent=0 // loop_footer_branch
    %10 = sbr.rel target = $region3
  $region8: #{basic_block_forward.4} parent=0 // loop_exit
    _

// kernel: basic_block_forward.7
$region0: #{basic_block_forward.7}
  #allocation0 [shape = 'u32[]', space=smem, size = 0x4, offset = 0x4, fixed_abs, tag = 'smem constant byte address 0x4 - core index']
  #allocation1 [shape = 'u32[144,128]{1,0:T(1,128)}', space=vmem, size = 0x12000, scoped, tag = 'internal scratch']
  %s0 = inlined_call_operand.vmem [shape: bf16[128,128], index: 0, kind: input, shape index: {}]
  %s1 = inlined_call_operand.vmem [shape: f32[1,128], index: 1, kind: input, shape index: {}]
  %s2 = inlined_call_operand.vmem [shape: f32[1,128], index: 2, kind: input, shape index: {}]
  %s3 = inlined_call_operand.vmem [shape: bf16[128,128], index: 3, kind: input, shape index: {}]
  %s4 = inlined_call_operand.vmem [shape: f32[1,128], index: 4, kind: input, shape index: {}]
  %s5 = inlined_call_operand.vmem [shape: f32[1,128], index: 5, kind: input, shape index: {}]
  %s6 = inlined_call_operand.vmem [shape: f32[128,128], index: 6, kind: output, shape index: {}]
  %s7 = sld [smem:[#allocation0]]
  $region34: #{basic_block_forward.7} parent=0
    _
  %s9 = ssub.s32 1, %s7
  %s10 = scalar_select 0, %s9, %s7
  // Predicated region
  $region2: #{basic_block_forward.7} parent=0 // pred_check
    _
  $region3: #{basic_block_forward.7} parent=0 // pred_check_branch
    %12 = sbr.rel (0) target = $region5
  $region4: #{basic_block_forward.7} parent=0 // pred_region
    _
  $region5: #{basic_block_forward.7} parent=0 // pred_fallthru
    _
  // Predicated region
  $region6: #{basic_block_forward.7} parent=0 // pred_check
    _
  $region7: #{basic_block_forward.7} parent=0 // pred_check_branch
    %14 = sbr.rel (0) target = $region9
  $region8: #{basic_block_forward.7} parent=0 // pred_region
    _
  $region9: #{basic_block_forward.7} parent=0 // pred_fallthru
    _
  // Predicated region
  $region10: #{basic_block_forward.7} parent=0 // pred_check
    _
  $region11: #{basic_block_forward.7} parent=0 // pred_check_branch
    %16 = sbr.rel (0) target = $region13
  $region12: #{basic_block_forward.7} parent=0 // pred_region
    _
  $region13: #{basic_block_forward.7} parent=0 // pred_fallthru
    _
  // Predicated region
  $region14: #{basic_block_forward.7} parent=0 // pred_check
    _
  $region15: #{basic_block_forward.7} parent=0 // pred_check_branch
    %18 = sbr.rel (0) target = $region17
  $region16: #{basic_block_forward.7} parent=0 // pred_region
    _
  $region17: #{basic_block_forward.7} parent=0 // pred_fallthru
    _
  // Predicated region
  $region18: #{basic_block_forward.7} parent=0 // pred_check
    _
  $region19: #{basic_block_forward.7} parent=0 // pred_check_branch
    %20 = sbr.rel (0) target = $region21
  $region20: #{basic_block_forward.7} parent=0 // pred_region
    _
  $region21: #{basic_block_forward.7} parent=0 // pred_fallthru
    _
  // Predicated region
  $region22: #{basic_block_forward.7} parent=0 // pred_check
    _
  $region23: #{basic_block_forward.7} parent=0 // pred_check_branch
    %22 = sbr.rel (0) target = $region25
  $region24: #{basic_block_forward.7} parent=0 // pred_region
    _
  $region25: #{basic_block_forward.7} parent=0 // pred_fallthru
    _
  %v23 = vld [vmem:[%s0] sm:$0xf]
  %v24 = vld [vmem:[%s0 + $0x4] sm:$0xf]
  %v25 = vld [vmem:[%s0 + $0x8] sm:$0xf]
  %v26 = vld [vmem:[%s0 + $0xc] sm:$0xf]
  %v27 = vld [vmem:[%s0 + $0x10] sm:$0xf]
  %v28 = vld [vmem:[%s0 + $0x14] sm:$0xf]
  %v29 = vld [vmem:[%s0 + $0x18] sm:$0xf]
  %v30 = vld [vmem:[%s0 + $0x1c] sm:$0xf]
  %v31 = vld [vmem:[%s0 + $0x20] sm:$0xf]
  %v32 = vld [vmem:[%s0 + $0x24] sm:$0xf]
  %v33 = vld [vmem:[%s0 + $0x28] sm:$0xf]
  %v34 = vld [vmem:[%s0 + $0x2c] sm:$0xf]
  %v35 = vld [vmem:[%s0 + $0x30] sm:$0xf]
  %v36 = vld [vmem:[%s0 + $0x34] sm:$0xf]
  %v37 = vld [vmem:[%s0 + $0x38] sm:$0xf]
  %v38 = vld [vmem:[%s0 + $0x3c] sm:$0xf]
  %v39 = vunpack.c.l.bf16 %v23
  %v40 = vunpack.c.l.bf16 %v24
  %v41 = vunpack.c.l.bf16 %v25
  %v42 = vunpack.c.l.bf16 %v26
  %v43 = vunpack.c.l.bf16 %v27
  %v44 = vunpack.c.l.bf16 %v28
  %v45 = vunpack.c.l.bf16 %v29
  %v46 = vunpack.c.l.bf16 %v30
  %v47 = vunpack.c.l.bf16 %v31
  %v48 = vunpack.c.l.bf16 %v32
  %v49 = vunpack.c.l.bf16 %v33
  %v50 = vunpack.c.l.bf16 %v34
  %v51 = vunpack.c.l.bf16 %v35
  %v52 = vunpack.c.l.bf16 %v36
  %v53 = vunpack.c.l.bf16 %v37
  %v54 = vunpack.c.l.bf16 %v38
  %v55 = vld [vmem:[%s1] sm:$0x1]
  %v57 = vlaneseq
  %v58 = vshrl.u32 %v57, 7
  %v59 = vsub.s32 0, %v58
  %v60 = vrot.slane %v55, %v59
  %v62 = vmul.f32 %v39, %v60
  %v63 = vmul.f32 %v40, %v60
  %v64 = vmul.f32 %v41, %v60
  %v65 = vmul.f32 %v42, %v60
  %v66 = vmul.f32 %v43, %v60
  %v67 = vmul.f32 %v44, %v60
  %v68 = vmul.f32 %v45, %v60
  %v69 = vmul.f32 %v46, %v60
  %v70 = vmul.f32 %v47, %v60
  %v71 = vmul.f32 %v48, %v60
  %v72 = vmul.f32 %v49, %v60
  %v73 = vmul.f32 %v50, %v60
  %v74 = vmul.f32 %v51, %v60
  %v75 = vmul.f32 %v52, %v60
  %v76 = vmul.f32 %v53, %v60
  %v77 = vmul.f32 %v54, %v60
  %v78 = vld [vmem:[%s2] sm:$0x1]
  %v80 = vlaneseq
  %v81 = vshrl.u32 %v80, 7
  %v82 = vsub.s32 0, %v81
  %v83 = vrot.slane %v78, %v82
  %v85 = vadd.f32 %v62, %v83
  %v86 = vadd.f32 %v63, %v83
  %v87 = vadd.f32 %v64, %v83
  %v88 = vadd.f32 %v65, %v83
  %v89 = vadd.f32 %v66, %v83
  %v90 = vadd.f32 %v67, %v83
  %v91 = vadd.f32 %v68, %v83
  %v92 = vadd.f32 %v69, %v83
  %v93 = vadd.f32 %v70, %v83
  %v94 = vadd.f32 %v71, %v83
  %v95 = vadd.f32 %v72, %v83
  %v96 = vadd.f32 %v73, %v83
  %v97 = vadd.f32 %v74, %v83
  %v98 = vadd.f32 %v75, %v83
  %v99 = vadd.f32 %v76, %v83
  %v100 = vadd.f32 %v77, %v83
  %v101 = vld [vmem:[%s3] sm:$0xf]
  %v102 = vld [vmem:[%s3 + $0x4] sm:$0xf]
  %v103 = vld [vmem:[%s3 + $0x8] sm:$0xf]
  %v104 = vld [vmem:[%s3 + $0xc] sm:$0xf]
  %v105 = vld [vmem:[%s3 + $0x10] sm:$0xf]
  %v106 = vld [vmem:[%s3 + $0x14] sm:$0xf]
  %v107 = vld [vmem:[%s3 + $0x18] sm:$0xf]
  %v108 = vld [vmem:[%s3 + $0x1c] sm:$0xf]
  %v109 = vld [vmem:[%s3 + $0x20] sm:$0xf]
  %v110 = vld [vmem:[%s3 + $0x24] sm:$0xf]
  %v111 = vld [vmem:[%s3 + $0x28] sm:$0xf]
  %v112 = vld [vmem:[%s3 + $0x2c] sm:$0xf]
  %v113 = vld [vmem:[%s3 + $0x30] sm:$0xf]
  %v114 = vld [vmem:[%s3 + $0x34] sm:$0xf]
  %v115 = vld [vmem:[%s3 + $0x38] sm:$0xf]
  %v116 = vld [vmem:[%s3 + $0x3c] sm:$0xf]
  %v117 = vunpack.c.l.bf16 %v101
  %v118 = vunpack.c.l.bf16 %v102
  %v119 = vunpack.c.l.bf16 %v103
  %v120 = vunpack.c.l.bf16 %v104
  %v121 = vunpack.c.l.bf16 %v105
  %v122 = vunpack.c.l.bf16 %v106
  %v123 = vunpack.c.l.bf16 %v107
  %v124 = vunpack.c.l.bf16 %v108
  %v125 = vunpack.c.l.bf16 %v109
  %v126 = vunpack.c.l.bf16 %v110
  %v127 = vunpack.c.l.bf16 %v111
  %v128 = vunpack.c.l.bf16 %v112
  %v129 = vunpack.c.l.bf16 %v113
  %v130 = vunpack.c.l.bf16 %v114
  %v131 = vunpack.c.l.bf16 %v115
  %v132 = vunpack.c.l.bf16 %v116
  %v133 = vld [vmem:[%s4] sm:$0x1]
  %v135 = vlaneseq
  %v136 = vshrl.u32 %v135, 7
  %v137 = vsub.s32 0, %v136
  %v138 = vrot.slane %v133, %v137
  %v140 = vmul.f32 %v117, %v138
  %v141 = vmul.f32 %v118, %v138
  %v142 = vmul.f32 %v119, %v138
  %v143 = vmul.f32 %v120, %v138
  %v144 = vmul.f32 %v121, %v138
  %v145 = vmul.f32 %v122, %v138
  %v146 = vmul.f32 %v123, %v138
  %v147 = vmul.f32 %v124, %v138
  %v148 = vmul.f32 %v125, %v138
  %v149 = vmul.f32 %v126, %v138
  %v150 = vmul.f32 %v127, %v138
  %v151 = vmul.f32 %v128, %v138
  %v152 = vmul.f32 %v129, %v138
  %v153 = vmul.f32 %v130, %v138
  %v154 = vmul.f32 %v131, %v138
  %v155 = vmul.f32 %v132, %v138
  %v156 = vadd.f32 %v85, %v140
  %v157 = vadd.f32 %v86, %v141
  %v158 = vadd.f32 %v87, %v142
  %v159 = vadd.f32 %v88, %v143
  %v160 = vadd.f32 %v89, %v144
  %v161 = vadd.f32 %v90, %v145
  %v162 = vadd.f32 %v91, %v146
  %v163 = vadd.f32 %v92, %v147
  %v164 = vadd.f32 %v93, %v148
  %v165 = vadd.f32 %v94, %v149
  %v166 = vadd.f32 %v95, %v150
  %v167 = vadd.f32 %v96, %v151
  %v168 = vadd.f32 %v97, %v152
  %v169 = vadd.f32 %v98, %v153
  %v170 = vadd.f32 %v99, %v154
  %v171 = vadd.f32 %v100, %v155
  %v172 = vld [vmem:[%s5] sm:$0x1]
  %v174 = vlaneseq
  %v175 = vshrl.u32 %v174, 7
  %v176 = vsub.s32 0, %v175
  %v177 = vrot.slane %v172, %v176
  %v179 = vadd.f32 %v156, %v177
  %v180 = vadd.f32 %v157, %v177
  %v181 = vadd.f32 %v158, %v177
  %v182 = vadd.f32 %v159, %v177
  %v183 = vadd.f32 %v160, %v177
  %v184 = vadd.f32 %v161, %v177
  %v185 = vadd.f32 %v162, %v177
  %v186 = vadd.f32 %v163, %v177
  %v187 = vadd.f32 %v164, %v177
  %v188 = vadd.f32 %v165, %v177
  %v189 = vadd.f32 %v166, %v177
  %v190 = vadd.f32 %v167, %v177
  %v191 = vadd.f32 %v168, %v177
  %v192 = vadd.f32 %v169, %v177
  %v193 = vadd.f32 %v170, %v177
  %v194 = vadd.f32 %v171, %v177
  %v195 = vmax.f32 %v179, 0.0
  %v196 = vmax.f32 %v180, 0.0
  %v197 = vmax.f32 %v181, 0.0
  %v198 = vmax.f32 %v182, 0.0
  %v199 = vmax.f32 %v183, 0.0
  %v200 = vmax.f32 %v184, 0.0
  %v201 = vmax.f32 %v185, 0.0
  %v202 = vmax.f32 %v186, 0.0
  %v203 = vmax.f32 %v187, 0.0
  %v204 = vmax.f32 %v188, 0.0
  %v205 = vmax.f32 %v189, 0.0
  %v206 = vmax.f32 %v190, 0.0
  %v207 = vmax.f32 %v191, 0.0
  %v208 = vmax.f32 %v192, 0.0
  %v209 = vmax.f32 %v193, 0.0
  %v210 = vmax.f32 %v194, 0.0
  %211 = vst [vmem:[%s6] sm:$0xff] %v195
  %212 = vst [vmem:[%s6 + $0x8] sm:$0xff] %v196
  %213 = vst [vmem:[%s6 + $0x10] sm:$0xff] %v197
  %214 = vst [vmem:[%s6 + $0x18] sm:$0xff] %v198
  %215 = vst [vmem:[%s6 + $0x20] sm:$0xff] %v199
  %216 = vst [vmem:[%s6 + $0x28] sm:$0xff] %v200
  %217 = vst [vmem:[%s6 + $0x30] sm:$0xff] %v201
  %218 = vst [vmem:[%s6 + $0x38] sm:$0xff] %v202
  %219 = vst [vmem:[%s6 + $0x40] sm:$0xff] %v203
  %220 = vst [vmem:[%s6 + $0x48] sm:$0xff] %v204
  %221 = vst [vmem:[%s6 + $0x50] sm:$0xff] %v205
  %222 = vst [vmem:[%s6 + $0x58] sm:$0xff] %v206
  %223 = vst [vmem:[%s6 + $0x60] sm:$0xff] %v207
  %224 = vst [vmem:[%s6 + $0x68] sm:$0xff] %v208
  %225 = vst [vmem:[%s6 + $0x70] sm:$0xff] %v209
  %226 = vst [vmem:[%s6 + $0x78] sm:$0xff] %v210
  // Predicated region
  $region26: #{basic_block_forward.7} parent=0 // pred_check
    _
  $region27: #{basic_block_forward.7} parent=0 // pred_check_branch
    %228 = sbr.rel (0) target = $region29
  $region28: #{basic_block_forward.7} parent=0 // pred_region
    _
  $region29: #{basic_block_forward.7} parent=0 // pred_fallthru
    _
  // Predicated region
  $region30: #{basic_block_forward.7} parent=0 // pred_check
    _
  $region31: #{basic_block_forward.7} parent=0 // pred_check_branch
    %230 = sbr.rel (0) target = $region33
  $region32: #{basic_block_forward.7} parent=0 // pred_region
    _
  $region33: #{basic_block_forward.7} parent=0 // pred_fallthru
    _

// kernel: basic_block_forward.6
$region0: #{basic_block_forward.6}
  #allocation0 [shape = 'u32[]', space=smem, size = 0x4, offset = 0x4, fixed_abs, tag = 'smem constant byte address 0x4 - core index']
  #allocation1 [shape = 'u32[144,128]{1,0:T(1,128)}', space=vmem, size = 0x12000, scoped, tag = 'internal scratch']
  #allocation2 [shape = 'bf16[64,1152]{1,0:T(16,128)(2,1)}', space=vmem, size = 0x24000, scoped, tag = 'scratch operand']
  %s0 = inlined_call_operand.vmem [shape: bf16[2,10,10,128], index: 0, kind: input, shape index: {}]
  %s1 = inlined_call_operand.vmem [shape: bf16[1152,128], index: 1, kind: input, shape index: {}]
  %s2 = inlined_call_operand.vmem [shape: bf16[2,64,4], index: 2, kind: input, shape index: {}]
  %s3 = inlined_call_operand.vmem [shape: bf16[4,128], index: 3, kind: input, shape index: {}]
  %s4 = inlined_call_operand.vmem [shape: bf16[2,64,128], index: 4, kind: output, shape index: {0}]
  %s5 = inlined_call_operand.vmem [shape: bf16[2,64,128], index: 5, kind: output, shape index: {1}]
  %s6 = inlined_call_operand.vmem [shape: f32[2,1,128], index: 6, kind: output, shape index: {2}]
  %s7 = inlined_call_operand.vmem [shape: f32[2,1,128], index: 7, kind: output, shape index: {3}]
  %s8 = inlined_call_operand.vmem [shape: f32[2,1,128], index: 8, kind: output, shape index: {4}]
  %s9 = inlined_call_operand.vmem [shape: f32[2,1,128], index: 9, kind: output, shape index: {5}]
  %10 = xla_tuple %s4, %s5, %s6, %s7, %s8, %s9
  %s11 = sld [smem:[#allocation0]]
  $region89: #{basic_block_forward.6} parent=0
    _
  %s13 = ssub.s32 1, %s11
  %s14 = scalar_select 0, %s13, %s11
  loop: start=0, step=1, limit=4
  $region2: #{basic_block_forward.6} parent=0 // loop_pre_header
    _
  $region3: #{basic_block_forward.6} parent=0 // loop_header
    %s16 = sphi 0, %s20
    %p17 = scmp.ge.s32.totalorder %s16, 4
    %s26 = sphi 0, %s28
    %s29 = sphi 0, %s26
    %s30 = sphi 0, %s29
    %s46 = sphi 0, %s30
    %s50 = sphi 0, %s50
    %s52 = sphi 0, %s50
    %s53 = sphi 0, %s52
    %s67 = sphi 0, %s53
    %s73 = sphi 0, %s75
    %s76 = sphi 0, %s73
    %s77 = sphi 0, %s76
    %s93 = sphi 0, %s77
    %s97 = sphi 0, %s97
    %s99 = sphi 0, %s97
    %s100 = sphi 0, %s99
    %s114 = sphi 0, %s100
    %s120 = sphi 0, %s122
    %s123 = sphi 0, %s120
    %s124 = sphi 0, %s123
    %s140 = sphi 0, %s124
    %s146 = sphi 0, %s148
    %s149 = sphi 0, %s146
    %s150 = sphi 0, %s149
    %s166 = sphi 0, %s150
    %s172 = sphi 0, %s174
    %s175 = sphi 0, %s172
    %s176 = sphi 0, %s175
    %s192 = sphi 0, %s176
    %s198 = sphi 0, %s200
    %s201 = sphi 0, %s198
    %s202 = sphi 0, %s201
    %s218 = sphi 0, %s202
    %s224 = sphi 0, %s226
    %s227 = sphi 0, %s224
    %s228 = sphi 0, %s227
    %s244 = sphi 0, %s228
    %s250 = sphi 0, %s252
    %s253 = sphi 0, %s250
    %s254 = sphi 0, %s253
    %s270 = sphi 0, %s254
  $region4: #{basic_block_forward.6} parent=0 // loop_header_branch
    %19 = sbr.rel (%p17) target = $region8
  $region5: #{basic_block_forward.6} parent=0 // loop_body
    %s21 = ssub.s32 %s16, 1
    %s22 = ssub.s32 %s16, 2
    %s23 = sadd.s32 %s16, 1
    %s24 = ssub.s32 %s16, %s23
    %p25 = scmp.eq.s32.totalorder %s24, 0
    %s27 = sadd.s32 %s26, 1
    %s28 = scalar_select %p25, %s26, %s27
    %p31 = pneg %p25
    %p32 = scmp.eq.s32.totalorder %s16, 1
    %p33 = por %p31, %p32
    %p34 = scmp.ne.s32.totalorder %s26, %s29
    %p35 = scmp.eq.s32.totalorder %s16, 0
    %p36 = por %p34, %p35
    %p37 = scmp.ne.s32.totalorder %s26, %s29
    %p38 = scmp.eq.s32.totalorder %s21, 1
    %p39 = por %p37, %p38
    %p40 = scmp.ne.s32.totalorder %s29, %s30
    %p41 = scmp.eq.s32.totalorder %s21, 0
    %p42 = por %p40, %p41
    %p43 = scmp.ne.s32.totalorder %s29, %s30
    %p44 = scmp.eq.s32.totalorder %s22, 1
    %p45 = por %p43, %p44
    %p47 = scmp.ne.s32.totalorder %s30, %s46
    %p48 = scmp.eq.s32.totalorder %s22, 0
    %p49 = por %p47, %p48
    %s51 = sadd.s32 %s50, 1
    %p54 = scmp.eq.s32.totalorder %s16, 1
    %p55 = scmp.ne.s32.totalorder %s50, %s52
    %p56 = scmp.eq.s32.totalorder %s16, 0
    %p57 = por %p55, %p56
    %p58 = scmp.ne.s32.totalorder %s50, %s52
    %p59 = scmp.eq.s32.totalorder %s21, 1
    %p60 = por %p58, %p59
    %p61 = scmp.ne.s32.totalorder %s52, %s53
    %p62 = scmp.eq.s32.totalorder %s21, 0
    %p63 = por %p61, %p62
    %p64 = scmp.ne.s32.totalorder %s52, %s53
    %p65 = scmp.eq.s32.totalorder %s22, 1
    %p66 = por %p64, %p65
    %p68 = scmp.ne.s32.totalorder %s53, %s67
    %p69 = scmp.eq.s32.totalorder %s22, 0
    %p70 = por %p68, %p69
    %s71 = ssub.s32 %s16, %s23
    %p72 = scmp.eq.s32.totalorder %s71, 0
    %s74 = sadd.s32 %s73, 1
    %s75 = scalar_select %p72, %s73, %s74
    %p78 = pneg %p72
    %p79 = scmp.eq.s32.totalorder %s16, 1
    %p80 = por %p78, %p79
    %p81 = scmp.ne.s32.totalorder %s73, %s76
    %p82 = scmp.eq.s32.totalorder %s16, 0
    %p83 = por %p81, %p82
    %p84 = scmp.ne.s32.totalorder %s73, %s76
    %p85 = scmp.eq.s32.totalorder %s21, 1
    %p86 = por %p84, %p85
    %p87 = scmp.ne.s32.totalorder %s76, %s77
    %p88 = scmp.eq.s32.totalorder %s21, 0
    %p89 = por %p87, %p88
    %p90 = scmp.ne.s32.totalorder %s76, %s77
    %p91 = scmp.eq.s32.totalorder %s22, 1
    %p92 = por %p90, %p91
    %p94 = scmp.ne.s32.totalorder %s77, %s93
    %p95 = scmp.eq.s32.totalorder %s22, 0
    %p96 = por %p94, %p95
    %s98 = sadd.s32 %s97, 1
    %p101 = scmp.eq.s32.totalorder %s16, 1
    %p102 = scmp.ne.s32.totalorder %s97, %s99
    %p103 = scmp.eq.s32.totalorder %s16, 0
    %p104 = por %p102, %p103
    %p105 = scmp.ne.s32.totalorder %s97, %s99
    %p106 = scmp.eq.s32.totalorder %s21, 1
    %p107 = por %p105, %p106
    %p108 = scmp.ne.s32.totalorder %s99, %s100
    %p109 = scmp.eq.s32.totalorder %s21, 0
    %p110 = por %p108, %p109
    %p111 = scmp.ne.s32.totalorder %s99, %s100
    %p112 = scmp.eq.s32.totalorder %s22, 1
    %p113 = por %p111, %p112
    %p115 = scmp.ne.s32.totalorder %s100, %s114
    %p116 = scmp.eq.s32.totalorder %s22, 0
    %p117 = por %p115, %p116
    %s118 = ssub.s32 %s16, %s23
    %p119 = scmp.eq.s32.totalorder %s118, 0
    %s121 = sadd.s32 %s120, 1
    %s122 = scalar_select %p119, %s120, %s121
    %p125 = pneg %p119
    %p126 = scmp.eq.s32.totalorder %s16, 1
    %p127 = por %p125, %p126
    %p128 = scmp.ne.s32.totalorder %s120, %s123
    %p129 = scmp.eq.s32.totalorder %s16, 0
    %p130 = por %p128, %p129
    %p131 = scmp.ne.s32.totalorder %s120, %s123
    %p132 = scmp.eq.s32.totalorder %s21, 1
    %p133 = por %p131, %p132
    %p134 = scmp.ne.s32.totalorder %s123, %s124
    %p135 = scmp.eq.s32.totalorder %s21, 0
    %p136 = por %p134, %p135
    %p137 = scmp.ne.s32.totalorder %s123, %s124
    %p138 = scmp.eq.s32.totalorder %s22, 1
    %p139 = por %p137, %p138
    %p141 = scmp.ne.s32.totalorder %s124, %s140
    %p142 = scmp.eq.s32.totalorder %s22, 0
    %p143 = por %p141, %p142
    %s144 = ssub.s32 %s16, %s23
    %p145 = scmp.eq.s32.totalorder %s144, 0
    %s147 = sadd.s32 %s146, 1
    %s148 = scalar_select %p145, %s146, %s147
    %p151 = pneg %p145
    %p152 = scmp.eq.s32.totalorder %s16, 1
    %p153 = por %p151, %p152
    %p154 = scmp.ne.s32.totalorder %s146, %s149
    %p155 = scmp.eq.s32.totalorder %s16, 0
    %p156 = por %p154, %p155
    %p157 = scmp.ne.s32.totalorder %s146, %s149
    %p158 = scmp.eq.s32.totalorder %s21, 1
    %p159 = por %p157, %p158
    %p160 = scmp.ne.s32.totalorder %s149, %s150
    %p161 = scmp.eq.s32.totalorder %s21, 0
    %p162 = por %p160, %p161
    %p163 = scmp.ne.s32.totalorder %s149, %s150
    %p164 = scmp.eq.s32.totalorder %s22, 1
    %p165 = por %p163, %p164
    %p167 = scmp.ne.s32.totalorder %s150, %s166
    %p168 = scmp.eq.s32.totalorder %s22, 0
    %p169 = por %p167, %p168
    %s170 = ssub.s32 %s16, %s23
    %p171 = scmp.eq.s32.totalorder %s170, 0
    %s173 = sadd.s32 %s172, 1
    %s174 = scalar_select %p171, %s172, %s173
    %p177 = pneg %p171
    %p178 = scmp.eq.s32.totalorder %s16, 1
    %p179 = por %p177, %p178
    %p180 = scmp.ne.s32.totalorder %s172, %s175
    %p181 = scmp.eq.s32.totalorder %s16, 0
    %p182 = por %p180, %p181
    %p183 = scmp.ne.s32.totalorder %s172, %s175
    %p184 = scmp.eq.s32.totalorder %s21, 1
    %p185 = por %p183, %p184
    %p186 = scmp.ne.s32.totalorder %s175, %s176
    %p187 = scmp.eq.s32.totalorder %s21, 0
    %p188 = por %p186, %p187
    %p189 = scmp.ne.s32.totalorder %s175, %s176
    %p190 = scmp.eq.s32.totalorder %s22, 1
    %p191 = por %p189, %p190
    %p193 = scmp.ne.s32.totalorder %s176, %s192
    %p194 = scmp.eq.s32.totalorder %s22, 0
    %p195 = por %p193, %p194
    %s196 = ssub.s32 %s16, %s23
    %p197 = scmp.eq.s32.totalorder %s196, 0
    %s199 = sadd.s32 %s198, 1
    %s200 = scalar_select %p197, %s198, %s199
    %p203 = pneg %p197
    %p204 = scmp.eq.s32.totalorder %s16, 1
    %p205 = por %p203, %p204
    %p206 = scmp.ne.s32.totalorder %s198, %s201
    %p207 = scmp.eq.s32.totalorder %s16, 0
    %p208 = por %p206, %p207
    %p209 = scmp.ne.s32.totalorder %s198, %s201
    %p210 = scmp.eq.s32.totalorder %s21, 1
    %p211 = por %p209, %p210
    %p212 = scmp.ne.s32.totalorder %s201, %s202
    %p213 = scmp.eq.s32.totalorder %s21, 0
    %p214 = por %p212, %p213
    %p215 = scmp.ne.s32.totalorder %s201, %s202
    %p216 = scmp.eq.s32.totalorder %s22, 1
    %p217 = por %p215, %p216
    %p219 = scmp.ne.s32.totalorder %s202, %s218
    %p220 = scmp.eq.s32.totalorder %s22, 0
    %p221 = por %p219, %p220
    %s222 = ssub.s32 %s16, %s23
    %p223 = scmp.eq.s32.totalorder %s222, 0
    %s225 = sadd.s32 %s224, 1
    %s226 = scalar_select %p223, %s224, %s225
    %p229 = pneg %p223
    %p230 = scmp.eq.s32.totalorder %s16, 1
    %p231 = por %p229, %p230
    %p232 = scmp.ne.s32.totalorder %s224, %s227
    %p233 = scmp.eq.s32.totalorder %s16, 0
    %p234 = por %p232, %p233
    %p235 = scmp.ne.s32.totalorder %s224, %s227
    %p236 = scmp.eq.s32.totalorder %s21, 1
    %p237 = por %p235, %p236
    %p238 = scmp.ne.s32.totalorder %s227, %s228
    %p239 = scmp.eq.s32.totalorder %s21, 0
    %p240 = por %p238, %p239
    %p241 = scmp.ne.s32.totalorder %s227, %s228
    %p242 = scmp.eq.s32.totalorder %s22, 1
    %p243 = por %p241, %p242
    %p245 = scmp.ne.s32.totalorder %s228, %s244
    %p246 = scmp.eq.s32.totalorder %s22, 0
    %p247 = por %p245, %p246
    %s248 = ssub.s32 %s16, %s23
    %p249 = scmp.eq.s32.totalorder %s248, 0
    %s251 = sadd.s32 %s250, 1
    %s252 = scalar_select %p249, %s250, %s251
    %p255 = pneg %p249
    %p256 = scmp.eq.s32.totalorder %s16, 1
    %p257 = por %p255, %p256
    %p258 = scmp.ne.s32.totalorder %s250, %s253
    %p259 = scmp.eq.s32.totalorder %s16, 0
    %p260 = por %p258, %p259
    %p261 = scmp.ne.s32.totalorder %s250, %s253
    %p262 = scmp.eq.s32.totalorder %s21, 1
    %p263 = por %p261, %p262
    %p264 = scmp.ne.s32.totalorder %s253, %s254
    %p265 = scmp.eq.s32.totalorder %s21, 0
    %p266 = por %p264, %p265
    %p267 = scmp.ne.s32.totalorder %s253, %s254
    %p268 = scmp.eq.s32.totalorder %s22, 1
    %p269 = por %p267, %p268
    %p271 = scmp.ne.s32.totalorder %s254, %s270
    %p272 = scmp.eq.s32.totalorder %s22, 0
    %p273 = por %p271, %p272
    %p274 = scmp.le.s32.totalorder 1, %s16
    %p275 = scmp.lt.s32.totalorder %s16, 3
    %p276 = pnand %p274, %p275
    %p277 = pneg %p276
    // Predicated region
    $region9: #{basic_block_forward.6} parent=5 // pred_check
      _
    $region10: #{basic_block_forward.6} parent=5 // pred_check_branch
      %279 = sbr.rel (%p276) target = $region12
    $region11: #{basic_block_forward.6} parent=5 // pred_region
      %s280 = ssub.s32 %s16, 1
      // Predicated region
      $region13: #{basic_block_forward.6} parent=11 // pred_check
        %p281 = pneg %p63
      $region14: #{basic_block_forward.6} parent=11 // pred_check_branch
        %283 = sbr.rel (%p281) target = $region16
      $region15: #{basic_block_forward.6} parent=11 // pred_region
        _
      $region16: #{basic_block_forward.6} parent=11 // pred_fallthru
        _
      // Predicated region
      $region17: #{basic_block_forward.6} parent=11 // pred_check
        %p284 = pneg %p110
      $region18: #{basic_block_forward.6} parent=11 // pred_check_branch
        %286 = sbr.rel (%p284) target = $region20
      $region19: #{basic_block_forward.6} parent=11 // pred_region
        _
      $region20: #{basic_block_forward.6} parent=11 // pred_fallthru
        _
    $region12: #{basic_block_forward.6} parent=5 // pred_fallthru
      _
    %p287 = scmp.lt.s32.totalorder %s16, 2
    // Predicated region
    $region21: #{basic_block_forward.6} parent=5 // pred_check
      %p288 = pneg %p287
    $region22: #{basic_block_forward.6} parent=5 // pred_check_branch
      %290 = sbr.rel (%p288) target = $region24
    $region23: #{basic_block_forward.6} parent=5 // pred_region
      // Predicated region
      $region25: #{basic_block_forward.6} parent=23 // pred_check
        %p291 = pneg %p36
      $region26: #{basic_block_forward.6} parent=23 // pred_check_branch
        %293 = sbr.rel (%p291) target = $region28
      $region27: #{basic_block_forward.6} parent=23 // pred_region
        %p294 = scmp.lt.s32.totalorder %s16, 1
        %s295 = scalar_select %p294, %s16, 1
        %s296 = smul.addr %s295, 20
        %s297 = smul.addr %s296, 4
        %s298 = scalar_lea.vmem %s0, %s297
      $region28: #{basic_block_forward.6} parent=23 // pred_fallthru
        _
      // Predicated region
      $region29: #{basic_block_forward.6} parent=23 // pred_check
        %p299 = pneg %p83
      $region30: #{basic_block_forward.6} parent=23 // pred_check_branch
        %301 = sbr.rel (%p299) target = $region32
      $region31: #{basic_block_forward.6} parent=23 // pred_region
        %p302 = scmp.lt.s32.totalorder %s16, 1
        %s303 = scalar_select %p302, %s16, 1
        %s304 = smul.addr %s303, 8
        %s305 = smul.addr %s304, 4
        %s306 = scalar_lea.vmem %s2, %s305
      $region32: #{basic_block_forward.6} parent=23 // pred_fallthru
        _
    $region24: #{basic_block_forward.6} parent=5 // pred_fallthru
      _
    %p307 = scmp.le.s32.totalorder 1, %s16
    %p308 = scmp.lt.s32.totalorder %s16, 3
    %p309 = pnand %p307, %p308
    %p310 = pneg %p309
    // Predicated region
    $region33: #{basic_block_forward.6} parent=5 // pred_check
      _
    $region34: #{basic_block_forward.6} parent=5 // pred_check_branch
      %312 = sbr.rel (%p309) target = $region36
    $region35: #{basic_block_forward.6} parent=5 // pred_region
      %s313 = ssub.s32 %s16, 1
      %p314 = scmp.lt.s32.totalorder %s21, 1
      %s315 = scalar_select %p314, %s21, 1
      %s316 = smul.addr %s315, 20
      %s317 = smul.addr %s316, 4
      %s318 = scalar_lea.vmem %s0, %s317
      %p319 = pneg %p42
      %p320 = pneg %p39
      %p321 = pneg %p63
      %p322 = pneg %p60
      %p323 = scmp.lt.s32.totalorder %s21, 1
      %s324 = scalar_select %p323, %s21, 1
      %s325 = smul.addr %s324, 8
      %s326 = smul.addr %s325, 4
      %s327 = scalar_lea.vmem %s2, %s326
      %p328 = pneg %p89
      %p329 = pneg %p86
      %p330 = pneg %p110
      %p331 = pneg %p107
      %p332 = pneg %p136
      %p333 = pneg %p133
      %p334 = scmp.lt.s32.totalorder %s21, 1
      %s335 = scalar_select %p334, %s21, 1
      %s336 = smul.addr %s335, 8
      %s337 = smul.addr %s336, 4
      %s338 = scalar_lea.vmem %s4, %s337
      %p339 = pneg %p162
      %p340 = pneg %p159
      %p341 = scmp.lt.s32.totalorder %s21, 1
      %s342 = scalar_select %p341, %s21, 1
      %s343 = smul.addr %s342, 8
      %s344 = smul.addr %s343, 4
      %s345 = scalar_lea.vmem %s5, %s344
      %p346 = pneg %p188
      %p347 = pneg %p185
      %p348 = scmp.lt.s32.totalorder %s21, 1
      %s349 = scalar_select %p348, %s21, 1
      %s350 = scalar_lea.vmem %s6, %s349
      %p351 = pneg %p214
      %p352 = pneg %p211
      %p353 = scmp.lt.s32.totalorder %s21, 1
      %s354 = scalar_select %p353, %s21, 1
      %s355 = scalar_lea.vmem %s7, %s354
      %p356 = pneg %p240
      %p357 = pneg %p237
      %p358 = scmp.lt.s32.totalorder %s21, 1
      %s359 = scalar_select %p358, %s21, 1
      %s360 = scalar_lea.vmem %s8, %s359
      %p361 = pneg %p266
      %p362 = pneg %p263
      %p363 = scmp.lt.s32.totalorder %s21, 1
      %s364 = scalar_select %p363, %s21, 1
      %s365 = scalar_lea.vmem %s9, %s364
      %p366 = scmp.lt.s32.totalorder %s21, 1
      %s367 = scalar_select %p366, %s21, 1
      %s368 = smul.addr %s367, 20
      %s369 = smul.addr %s368, 4
      %s370 = scalar_lea.vmem %s0, %s369
      %p371 = scmp.lt.s32.totalorder %s21, 1
      %s372 = scalar_select %p371, %s21, 1
      %s373 = smul.addr %s372, 8
      %s374 = smul.addr %s373, 4
      %s375 = scalar_lea.vmem %s2, %s374
      %p376 = scmp.lt.s32.totalorder %s21, 1
      %s377 = scalar_select %p376, %s21, 1
      %s378 = smul.addr %s377, 8
      %s379 = smul.addr %s378, 4
      %s380 = scalar_lea.vmem %s4, %s379
      %p381 = scmp.lt.s32.totalorder %s21, 1
      %s382 = scalar_select %p381, %s21, 1
      %s383 = smul.addr %s382, 8
      %s384 = smul.addr %s383, 4
      %s385 = scalar_lea.vmem %s5, %s384
      %p386 = scmp.lt.s32.totalorder %s21, 1
      %s387 = scalar_select %p386, %s21, 1
      %s388 = scalar_lea.vmem %s6, %s387
      %p389 = scmp.lt.s32.totalorder %s21, 1
      %s390 = scalar_select %p389, %s21, 1
      %s391 = scalar_lea.vmem %s7, %s390
      %p392 = scmp.lt.s32.totalorder %s21, 1
      %s393 = scalar_select %p392, %s21, 1
      %s394 = scalar_lea.vmem %s8, %s393
      %p395 = scmp.lt.s32.totalorder %s21, 1
      %s396 = scalar_select %p395, %s21, 1
      %s397 = scalar_lea.vmem %s9, %s396
      %v399 = vld [vmem:[%s370] sm:$0xf]
      %v400 = vld [vmem:[%s370 + $0x8] sm:$0xf]
      %v401 = vld [vmem:[%s370 + $0x10] sm:$0xf]
      %v402 = vld [vmem:[%s370 + $0x18] sm:$0xf]
      %v403 = vld [vmem:[%s370 + $0x20] sm:$0xf]
      %v404 = vld [vmem:[%s370 + $0x28] sm:$0xf]
      %v405 = vld [vmem:[%s370 + $0x30] sm:$0xf]
      %v406 = vld [vmem:[%s370 + $0x38] sm:$0xf]
      %v415 = vunpack.c.l.b16 %v399
      %v416 = vunpack.c.l.b16 %v400
      %v417 = vunpack.c.l.b16 %v401
      %v418 = vunpack.c.l.b16 %v402
      %v419 = vunpack.c.l.b16 %v403
      %v420 = vunpack.c.l.b16 %v404
      %v421 = vunpack.c.l.b16 %v405
      %v422 = vunpack.c.l.b16 %v406
      %v423 = vpack.c.b16 %v416, %v415
      %v424 = vpack.c.b16 %v418, %v417
      %v425 = vpack.c.b16 %v420, %v419
      %v426 = vpack.c.b16 %v422, %v421
      %431 = vst [vmem:[#allocation2] sm:$0xff] %v423
      %432 = vst [vmem:[#allocation2 + $0x48] sm:$0xff] %v424
      %433 = vst [vmem:[#allocation2 + $0x90] sm:$0xff] %v425
      %434 = vst [vmem:[#allocation2 + $0xd8] sm:$0xff] %v426
      %v435 = vld [vmem:[%s370] sm:$0xf]
      %v436 = vld [vmem:[%s370 + $0x4] sm:$0x1]
      %v437 = vld [vmem:[%s370 + $0x8] sm:$0xf]
      %v438 = vld [vmem:[%s370 + $0xc] sm:$0x1]
      %v439 = vld [vmem:[%s370 + $0x10] sm:$0xf]
      %v440 = vld [vmem:[%s370 + $0x14] sm:$0x1]
      %v441 = vld [vmem:[%s370 + $0x18] sm:$0xf]
      %v442 = vld [vmem:[%s370 + $0x1c] sm:$0x1]
      %v443 = vld [vmem:[%s370 + $0x20] sm:$0xf]
      %v444 = vld [vmem:[%s370 + $0x24] sm:$0x1]
      %v445 = vld [vmem:[%s370 + $0x28] sm:$0xf]
      %v446 = vld [vmem:[%s370 + $0x2c] sm:$0x1]
      %v447 = vld [vmem:[%s370 + $0x30] sm:$0xf]
      %v448 = vld [vmem:[%s370 + $0x34] sm:$0x1]
      %v449 = vld [vmem:[%s370 + $0x38] sm:$0xf]
      %v450 = vld [vmem:[%s370 + $0x3c] sm:$0x1]
      %vm451 = vsmask.f32 3328
      %vm452 = vsmask.f32 7440
      %vm453 = vmor %vm451, %vm452
      %v455 = vshrl.u32 %v435, 16
      %v457 = vrot.slane %v455, 4
      %v458 = vshll.u32 %v435, 16
      %v460 = vrot.slane %v458, 5
      %v461 = vor.u32 %v457, %v460
      %v462 = vrot.slane %v461, 4
      %v464 = vshll.u32 %v436, 16
      %v466 = vrot.slane %v464, 5
      %v467 = vsel %vm453, %v462, %v466
      %v469 = vshrl.u32 %v437, 16
      %v471 = vrot.slane %v469, 4
      %v472 = vshll.u32 %v437, 16
      %v474 = vrot.slane %v472, 5
      %v475 = vor.u32 %v471, %v474
      %v476 = vrot.slane %v475, 4
      %v478 = vshll.u32 %v438, 16
      %v480 = vrot.slane %v478, 5
      %v481 = vsel %vm453, %v476, %v480
      %v483 = vshrl.u32 %v439, 16
      %v485 = vrot.slane %v483, 4
      %v486 = vshll.u32 %v439, 16
      %v488 = vrot.slane %v486, 5
      %v489 = vor.u32 %v485, %v488
      %v490 = vrot.slane %v489, 4
      %v492 = vshll.u32 %v440, 16
      %v494 = vrot.slane %v492, 5
      %v495 = vsel %vm453, %v490, %v494
      %v497 = vshrl.u32 %v441, 16
      %v499 = vrot.slane %v497, 4
      %v500 = vshll.u32 %v441, 16
      %v502 = vrot.slane %v500, 5
      %v503 = vor.u32 %v499, %v502
      %v504 = vrot.slane %v503, 4
      %v506 = vshll.u32 %v442, 16
      %v508 = vrot.slane %v506, 5
      %v509 = vsel %vm453, %v504, %v508
      %v511 = vshrl.u32 %v443, 16
      %v513 = vrot.slane %v511, 4
      %v514 = vshll.u32 %v443, 16
      %v516 = vrot.slane %v514, 5
      %v517 = vor.u32 %v513, %v516
      %v518 = vrot.slane %v517, 4
      %v520 = vshll.u32 %v444, 16
      %v522 = vrot.slane %v520, 5
      %v523 = vsel %vm453, %v518, %v522
      %v525 = vshrl.u32 %v445, 16
      %v527 = vrot.slane %v525, 4
      %v528 = vshll.u32 %v445, 16
      %v530 = vrot.slane %v528, 5
      %v531 = vor.u32 %v527, %v530
      %v532 = vrot.slane %v531, 4
      %v534 = vshll.u32 %v446, 16
      %v536 = vrot.slane %v534, 5
      %v537 = vsel %vm453, %v532, %v536
      %v539 = vshrl.u32 %v447, 16
      %v541 = vrot.slane %v539, 4
      %v542 = vshll.u32 %v447, 16
      %v544 = vrot.slane %v542, 5
      %v545 = vor.u32 %v541, %v544
      %v546 = vrot.slane %v545, 4
      %v548 = vshll.u32 %v448, 16
      %v550 = vrot.slane %v548, 5
      %v551 = vsel %vm453, %v546, %v550
      %v553 = vshrl.u32 %v449, 16
      %v555 = vrot.slane %v553, 4
      %v556 = vshll.u32 %v449, 16
      %v558 = vrot.slane %v556, 5
      %v559 = vor.u32 %v555, %v558
      %v560 = vrot.slane %v559, 4
      %v562 = vshll.u32 %v450, 16
      %v564 = vrot.slane %v562, 5
      %v565 = vsel %vm453, %v560, %v564
      %v566 = vunpack.c.l.b16 %v467
      %v567 = vunpack.c.l.b16 %v481
      %v568 = vunpack.c.l.b16 %v495
      %v569 = vunpack.c.l.b16 %v509
      %v570 = vunpack.c.l.b16 %v523
      %v571 = vunpack.c.l.b16 %v537
      %v572 = vunpack.c.l.b16 %v551
      %v573 = vunpack.c.l.b16 %v565
      %v574 = vpack.c.b16 %v567, %v566
      %v575 = vpack.c.b16 %v569, %v568
      %v576 = vpack.c.b16 %v571, %v570
      %v577 = vpack.c.b16 %v573, %v572
      %582 = vst [vmem:[#allocation2 + $0x8] sm:$0xff] %v574
      %583 = vst [vmem:[#allocation2 + $0x50] sm:$0xff] %v575
      %584 = vst [vmem:[#allocation2 + $0x98] sm:$0xff] %v576
      %585 = vst [vmem:[#allocation2 + $0xe0] sm:$0xff] %v577
      %v586 = vld [vmem:[%s370] sm:$0xe]
      %v587 = vld [vmem:[%s370 + $0x4] sm:$0x1]
      %v588 = vld [vmem:[%s370 + $0x8] sm:$0xe]
      %v589 = vld [vmem:[%s370 + $0xc] sm:$0x1]
      %v590 = vld [vmem:[%s370 + $0x10] sm:$0xe]
      %v591 = vld [vmem:[%s370 + $0x14] sm:$0x1]
      %v592 = vld [vmem:[%s370 + $0x18] sm:$0xe]
      %v593 = vld [vmem:[%s370 + $0x1c] sm:$0x1]
      %v594 = vld [vmem:[%s370 + $0x20] sm:$0xe]
      %v595 = vld [vmem:[%s370 + $0x24] sm:$0x1]
      %v596 = vld [vmem:[%s370 + $0x28] sm:$0xe]
      %v597 = vld [vmem:[%s370 + $0x2c] sm:$0x1]
      %v598 = vld [vmem:[%s370 + $0x30] sm:$0xe]
      %v599 = vld [vmem:[%s370 + $0x34] sm:$0x1]
      %v600 = vld [vmem:[%s370 + $0x38] sm:$0xe]
      %v601 = vld [vmem:[%s370 + $0x3c] sm:$0x1]
      %vm618 = vcmask 1042432
      %vm619 = vcmask 1046532
      %vm620 = vmor %vm618, %vm619
      %v621 = vrot.slane %v586, 5
      %v622 = vrot.slane %v621, 4
      %v623 = vrot.slane %v587, 5
      %v624 = vsel %vm620, %v622, %v623
      %v625 = vrot.slane %v588, 5
      %v626 = vrot.slane %v625, 4
      %v627 = vrot.slane %v589, 5
      %v628 = vsel %vm620, %v626, %v627
      %v629 = vrot.slane %v590, 5
      %v630 = vrot.slane %v629, 4
      %v631 = vrot.slane %v591, 5
      %v632 = vsel %vm620, %v630, %v631
      %v633 = vrot.slane %v592, 5
      %v634 = vrot.slane %v633, 4
      %v635 = vrot.slane %v593, 5
      %v636 = vsel %vm620, %v634, %v635
      %v637 = vrot.slane %v594, 5
      %v638 = vrot.slane %v637, 4
      %v639 = vrot.slane %v595, 5
      %v640 = vsel %vm620, %v638, %v639
      %v641 = vrot.slane %v596, 5
      %v642 = vrot.slane %v641, 4
      %v643 = vrot.slane %v597, 5
      %v644 = vsel %vm620, %v642, %v643
      %v645 = vrot.slane %v598, 5
      %v646 = vrot.slane %v645, 4
      %v647 = vrot.slane %v599, 5
      %v648 = vsel %vm620, %v646, %v647
      %v649 = vrot.slane %v600, 5
      %v650 = vrot.slane %v649, 4
      %v651 = vrot.slane %v601, 5
      %v652 = vsel %vm620, %v650, %v651
      %v653 = vunpack.c.l.b16 %v624
      %v654 = vunpack.c.l.b16 %v628
      %v655 = vunpack.c.l.b16 %v632
      %v656 = vunpack.c.l.b16 %v636
      %v657 = vunpack.c.l.b16 %v640
      %v658 = vunpack.c.l.b16 %v644
      %v659 = vunpack.c.l.b16 %v648
      %v660 = vunpack.c.l.b16 %v652
      %v661 = vpack.c.b16 %v654, %v653
      %v662 = vpack.c.b16 %v656, %v655
      %v663 = vpack.c.b16 %v658, %v657
      %v664 = vpack.c.b16 %v660, %v659
      %669 = vst [vmem:[#allocation2 + $0x10] sm:$0xff] %v661
      %670 = vst [vmem:[#allocation2 + $0x58] sm:$0xff] %v662
      %671 = vst [vmem:[#allocation2 + $0xa0] sm:$0xff] %v663
      %672 = vst [vmem:[#allocation2 + $0xe8] sm:$0xff] %v664
      %s673 = scalar_lea.vmem %s370, 8
      %v674 = vld [vmem:[%s673] sm:$0xf]
      %v675 = vld [vmem:[%s673 + $0x8] sm:$0xf]
      %v676 = vld [vmem:[%s673 + $0x10] sm:$0xf]
      %v677 = vld [vmem:[%s673 + $0x18] sm:$0xf]
      %v678 = vld [vmem:[%s673 + $0x20] sm:$0xf]
      %v679 = vld [vmem:[%s673 + $0x28] sm:$0xf]
      %v680 = vld [vmem:[%s673 + $0x30] sm:$0xf]
      %v681 = vld [vmem:[%s673 + $0x38] sm:$0xf]
      %v690 = vunpack.c.l.b16 %v674
      %v691 = vunpack.c.l.b16 %v675
      %v692 = vunpack.c.l.b16 %v676
      %v693 = vunpack.c.l.b16 %v677
      %v694 = vunpack.c.l.b16 %v678
      %v695 = vunpack.c.l.b16 %v679
      %v696 = vunpack.c.l.b16 %v680
      %v697 = vunpack.c.l.b16 %v681
      %v698 = vpack.c.b16 %v691, %v690
      %v699 = vpack.c.b16 %v693, %v692
      %v700 = vpack.c.b16 %v695, %v694
      %v701 = vpack.c.b16 %v697, %v696
      %706 = vst [vmem:[#allocation2 + $0x18] sm:$0xff] %v698
      %707 = vst [vmem:[#allocation2 + $0x60] sm:$0xff] %v699
      %708 = vst [vmem:[#allocation2 + $0xa8] sm:$0xff] %v700
      %709 = vst [vmem:[#allocation2 + $0xf0] sm:$0xff] %v701
      %v710 = vld [vmem:[%s673] sm:$0xf]
      %v711 = vld [vmem:[%s673 + $0x4] sm:$0x1]
      %v712 = vld [vmem:[%s673 + $0x8] sm:$0xf]
      %v713 = vld [vmem:[%s673 + $0xc] sm:$0x1]
      %v714 = vld [vmem:[%s673 + $0x10] sm:$0xf]
      %v715 = vld [vmem:[%s673 + $0x14] sm:$0x1]
      %v716 = vld [vmem:[%s673 + $0x18] sm:$0xf]
      %v717 = vld [vmem:[%s673 + $0x1c] sm:$0x1]
      %v718 = vld [vmem:[%s673 + $0x20] sm:$0xf]
      %v719 = vld [vmem:[%s673 + $0x24] sm:$0x1]
      %v720 = vld [vmem:[%s673 + $0x28] sm:$0xf]
      %v721 = vld [vmem:[%s673 + $0x2c] sm:$0x1]
      %v722 = vld [vmem:[%s673 + $0x30] sm:$0xf]
      %v723 = vld [vmem:[%s673 + $0x34] sm:$0x1]
      %v724 = vld [vmem:[%s673 + $0x38] sm:$0xf]
      %v725 = vld [vmem:[%s673 + $0x3c] sm:$0x1]
      %v727 = vshrl.u32 %v710, 16
      %v729 = vrot.slane %v727, 4
      %v730 = vshll.u32 %v710, 16
      %v732 = vrot.slane %v730, 5
      %v733 = vor.u32 %v729, %v732
      %v734 = vrot.slane %v733, 4
      %v736 = vshll.u32 %v711, 16
      %v738 = vrot.slane %v736, 5
      %v739 = vsel %vm453, %v734, %v738
      %v741 = vshrl.u32 %v712, 16
      %v743 = vrot.slane %v741, 4
      %v744 = vshll.u32 %v712, 16
      %v746 = vrot.slane %v744, 5
      %v747 = vor.u32 %v743, %v746
      %v748 = vrot.slane %v747, 4
      %v750 = vshll.u32 %v713, 16
      %v752 = vrot.slane %v750, 5
      %v753 = vsel %vm453, %v748, %v752
      %v755 = vshrl.u32 %v714, 16
      %v757 = vrot.slane %v755, 4
      %v758 = vshll.u32 %v714, 16
      %v760 = vrot.slane %v758, 5
      %v761 = vor.u32 %v757, %v760
      %v762 = vrot.slane %v761, 4
      %v764 = vshll.u32 %v715, 16
      %v766 = vrot.slane %v764, 5
      %v767 = vsel %vm453, %v762, %v766
      %v769 = vshrl.u32 %v716, 16
      %v771 = vrot.slane %v769, 4
      %v772 = vshll.u32 %v716, 16
      %v774 = vrot.slane %v772, 5
      %v775 = vor.u32 %v771, %v774
      %v776 = vrot.slane %v775, 4
      %v778 = vshll.u32 %v717, 16
      %v780 = vrot.slane %v778, 5
      %v781 = vsel %vm453, %v776, %v780
      %v783 = vshrl.u32 %v718, 16
      %v785 = vrot.slane %v783, 4
      %v786 = vshll.u32 %v718, 16
      %v788 = vrot.slane %v786, 5
      %v789 = vor.u32 %v785, %v788
      %v790 = vrot.slane %v789, 4
      %v792 = vshll.u32 %v719, 16
      %v794 = vrot.slane %v792, 5
      %v795 = vsel %vm453, %v790, %v794
      %v797 = vshrl.u32 %v720, 16
      %v799 = vrot.slane %v797, 4
      %v800 = vshll.u32 %v720, 16
      %v802 = vrot.slane %v800, 5
      %v803 = vor.u32 %v799, %v802
      %v804 = vrot.slane %v803, 4
      %v806 = vshll.u32 %v721, 16
      %v808 = vrot.slane %v806, 5
      %v809 = vsel %vm453, %v804, %v808
      %v811 = vshrl.u32 %v722, 16
      %v813 = vrot.slane %v811, 4
      %v814 = vshll.u32 %v722, 16
      %v816 = vrot.slane %v814, 5
      %v817 = vor.u32 %v813, %v816
      %v818 = vrot.slane %v817, 4
      %v820 = vshll.u32 %v723, 16
      %v822 = vrot.slane %v820, 5
      %v823 = vsel %vm453, %v818, %v822
      %v825 = vshrl.u32 %v724, 16
      %v827 = vrot.slane %v825, 4
      %v828 = vshll.u32 %v724, 16
      %v830 = vrot.slane %v828, 5
      %v831 = vor.u32 %v827, %v830
      %v832 = vrot.slane %v831, 4
      %v834 = vshll.u32 %v725, 16
      %v836 = vrot.slane %v834, 5
      %v837 = vsel %vm453, %v832, %v836
      %v838 = vunpack.c.l.b16 %v739
      %v839 = vunpack.c.l.b16 %v753
      %v840 = vunpack.c.l.b16 %v767
      %v841 = vunpack.c.l.b16 %v781
      %v842 = vunpack.c.l.b16 %v795
      %v843 = vunpack.c.l.b16 %v809
      %v844 = vunpack.c.l.b16 %v823
      %v845 = vunpack.c.l.b16 %v837
      %v846 = vpack.c.b16 %v839, %v838
      %v847 = vpack.c.b16 %v841, %v840
      %v848 = vpack.c.b16 %v843, %v842
      %v849 = vpack.c.b16 %v845, %v844
      %854 = vst [vmem:[#allocation2 + $0x20] sm:$0xff] %v846
      %855 = vst [vmem:[#allocation2 + $0x68] sm:$0xff] %v847
      %856 = vst [vmem:[#allocation2 + $0xb0] sm:$0xff] %v848
      %857 = vst [vmem:[#allocation2 + $0xf8] sm:$0xff] %v849
      %v858 = vld [vmem:[%s673] sm:$0xe]
      %v859 = vld [vmem:[%s673 + $0x4] sm:$0x1]
      %v860 = vld [vmem:[%s673 + $0x8] sm:$0xe]
      %v861 = vld [vmem:[%s673 + $0xc] sm:$0x1]
      %v862 = vld [vmem:[%s673 + $0x10] sm:$0xe]
      %v863 = vld [vmem:[%s673 + $0x14] sm:$0x1]
      %v864 = vld [vmem:[%s673 + $0x18] sm:$0xe]
      %v865 = vld [vmem:[%s673 + $0x1c] sm:$0x1]
      %v866 = vld [vmem:[%s673 + $0x20] sm:$0xe]
      %v867 = vld [vmem:[%s673 + $0x24] sm:$0x1]
      %v868 = vld [vmem:[%s673 + $0x28] sm:$0xe]
      %v869 = vld [vmem:[%s673 + $0x2c] sm:$0x1]
      %v870 = vld [vmem:[%s673 + $0x30] sm:$0xe]
      %v871 = vld [vmem:[%s673 + $0x34] sm:$0x1]
      %v872 = vld [vmem:[%s673 + $0x38] sm:$0xe]
      %v873 = vld [vmem:[%s673 + $0x3c] sm:$0x1]
      %v890 = vrot.slane %v858, 5
      %v891 = vrot.slane %v890, 4
      %v892 = vrot.slane %v859, 5
      %v893 = vsel %vm620, %v891, %v892
      %v894 = vrot.slane %v860, 5
      %v895 = vrot.slane %v894, 4
      %v896 = vrot.slane %v861, 5
      %v897 = vsel %vm620, %v895, %v896
      %v898 = vrot.slane %v862, 5
      %v899 = vrot.slane %v898, 4
      %v900 = vrot.slane %v863, 5
      %v901 = vsel %vm620, %v899, %v900
      %v902 = vrot.slane %v864, 5
      %v903 = vrot.slane %v902, 4
      %v904 = vrot.slane %v865, 5
      %v905 = vsel %vm620, %v903, %v904
      %v906 = vrot.slane %v866, 5
      %v907 = vrot.slane %v906, 4
      %v908 = vrot.slane %v867, 5
      %v909 = vsel %vm620, %v907, %v908
      %v910 = vrot.slane %v868, 5
      %v911 = vrot.slane %v910, 4
      %v912 = vrot.slane %v869, 5
      %v913 = vsel %vm620, %v911, %v912
      %v914 = vrot.slane %v870, 5
      %v915 = vrot.slane %v914, 4
      %v916 = vrot.slane %v871, 5
      %v917 = vsel %vm620, %v915, %v916
      %v918 = vrot.slane %v872, 5
      %v919 = vrot.slane %v918, 4
      %v920 = vrot.slane %v873, 5
      %v921 = vsel %vm620, %v919, %v920
      %v922 = vunpack.c.l.b16 %v893
      %v923 = vunpack.c.l.b16 %v897
      %v924 = vunpack.c.l.b16 %v901
      %v925 = vunpack.c.l.b16 %v905
      %v926 = vunpack.c.l.b16 %v909
      %v927 = vunpack.c.l.b16 %v913
      %v928 = vunpack.c.l.b16 %v917
      %v929 = vunpack.c.l.b16 %v921
      %v930 = vpack.c.b16 %v923, %v922
      %v931 = vpack.c.b16 %v925, %v924
      %v932 = vpack.c.b16 %v927, %v926
      %v933 = vpack.c.b16 %v929, %v928
      %938 = vst [vmem:[#allocation2 + $0x28] sm:$0xff] %v930
      %939 = vst [vmem:[#allocation2 + $0x70] sm:$0xff] %v931
      %940 = vst [vmem:[#allocation2 + $0xb8] sm:$0xff] %v932
      %941 = vst [vmem:[#allocation2 + $0x100] sm:$0xff] %v933
      %s942 = scalar_lea.vmem %s370, 16
      %v943 = vld [vmem:[%s942] sm:$0xf]
      %v944 = vld [vmem:[%s942 + $0x8] sm:$0xf]
      %v945 = vld [vmem:[%s942 + $0x10] sm:$0xf]
      %v946 = vld [vmem:[%s942 + $0x18] sm:$0xf]
      %v947 = vld [vmem:[%s942 + $0x20] sm:$0xf]
      %v948 = vld [vmem:[%s942 + $0x28] sm:$0xf]
      %v949 = vld [vmem:[%s942 + $0x30] sm:$0xf]
      %v950 = vld [vmem:[%s942 + $0x38] sm:$0xf]
      %v959 = vunpack.c.l.b16 %v943
      %v960 = vunpack.c.l.b16 %v944
      %v961 = vunpack.c.l.b16 %v945
      %v962 = vunpack.c.l.b16 %v946
      %v963 = vunpack.c.l.b16 %v947
      %v964 = vunpack.c.l.b16 %v948
      %v965 = vunpack.c.l.b16 %v949
      %v966 = vunpack.c.l.b16 %v950
      %v967 = vpack.c.b16 %v960, %v959
      %v968 = vpack.c.b16 %v962, %v961
      %v969 = vpack.c.b16 %v964, %v963
      %v970 = vpack.c.b16 %v966, %v965
      %975 = vst [vmem:[#allocation2 + $0x30] sm:$0xff] %v967
      %976 = vst [vmem:[#allocation2 + $0x78] sm:$0xff] %v968
      %977 = vst [vmem:[#allocation2 + $0xc0] sm:$0xff] %v969
      %978 = vst [vmem:[#allocation2 + $0x108] sm:$0xff] %v970
      %v979 = vld [vmem:[%s942] sm:$0xf]
      %v980 = vld [vmem:[%s942 + $0x4] sm:$0x1]
      %v981 = vld [vmem:[%s942 + $0x8] sm:$0xf]
      %v982 = vld [vmem:[%s942 + $0xc] sm:$0x1]
      %v983 = vld [vmem:[%s942 + $0x10] sm:$0xf]
      %v984 = vld [vmem:[%s942 + $0x14] sm:$0x1]
      %v985 = vld [vmem:[%s942 + $0x18] sm:$0xf]
      %v986 = vld [vmem:[%s942 + $0x1c] sm:$0x1]
      %v987 = vld [vmem:[%s942 + $0x20] sm:$0xf]
      %v988 = vld [vmem:[%s942 + $0x24] sm:$0x1]
      %v989 = vld [vmem:[%s942 + $0x28] sm:$0xf]
      %v990 = vld [vmem:[%s942 + $0x2c] sm:$0x1]
      %v991 = vld [vmem:[%s942 + $0x30] sm:$0xf]
      %v992 = vld [vmem:[%s942 + $0x34] sm:$0x1]
      %v993 = vld [vmem:[%s942 + $0x38] sm:$0xf]
      %v994 = vld [vmem:[%s942 + $0x3c] sm:$0x1]
      %v996 = vshrl.u32 %v979, 16
      %v998 = vrot.slane %v996, 4
      %v999 = vshll.u32 %v979, 16
      %v1001 = vrot.slane %v999, 5
      %v1002 = vor.u32 %v998, %v1001
      %v1003 = vrot.slane %v1002, 4
      %v1005 = vshll.u32 %v980, 16
      %v1007 = vrot.slane %v1005, 5
      %v1008 = vsel %vm453, %v1003, %v1007
      %v1010 = vshrl.u32 %v981, 16
      %v1012 = vrot.slane %v1010, 4
      %v1013 = vshll.u32 %v981, 16
      %v1015 = vrot.slane %v1013, 5
      %v1016 = vor.u32 %v1012, %v1015
      %v1017 = vrot.slane %v1016, 4
      %v1019 = vshll.u32 %v982, 16
      %v1021 = vrot.slane %v1019, 5
      %v1022 = vsel %vm453, %v1017, %v1021
      %v1024 = vshrl.u32 %v983, 16
      %v1026 = vrot.slane %v1024, 4
      %v1027 = vshll.u32 %v983, 16
      %v1029 = vrot.slane %v1027, 5
      %v1030 = vor.u32 %v1026, %v1029
      %v1031 = vrot.slane %v1030, 4
      %v1033 = vshll.u32 %v984, 16
      %v1035 = vrot.slane %v1033, 5
      %v1036 = vsel %vm453, %v1031, %v1035
      %v1038 = vshrl.u32 %v985, 16
      %v1040 = vrot.slane %v1038, 4
      %v1041 = vshll.u32 %v985, 16
      %v1043 = vrot.slane %v1041, 5
      %v1044 = vor.u32 %v1040, %v1043
      %v1045 = vrot.slane %v1044, 4
      %v1047 = vshll.u32 %v986, 16
      %v1049 = vrot.slane %v1047, 5
      %v1050 = vsel %vm453, %v1045, %v1049
      %v1052 = vshrl.u32 %v987, 16
      %v1054 = vrot.slane %v1052, 4
      %v1055 = vshll.u32 %v987, 16
      %v1057 = vrot.slane %v1055, 5
      %v1058 = vor.u32 %v1054, %v1057
      %v1059 = vrot.slane %v1058, 4
      %v1061 = vshll.u32 %v988, 16
      %v1063 = vrot.slane %v1061, 5
      %v1064 = vsel %vm453, %v1059, %v1063
      %v1066 = vshrl.u32 %v989, 16
      %v1068 = vrot.slane %v1066, 4
      %v1069 = vshll.u32 %v989, 16
      %v1071 = vrot.slane %v1069, 5
      %v1072 = vor.u32 %v1068, %v1071
      %v1073 = vrot.slane %v1072, 4
      %v1075 = vshll.u32 %v990, 16
      %v1077 = vrot.slane %v1075, 5
      %v1078 = vsel %vm453, %v1073, %v1077
      %v1080 = vshrl.u32 %v991, 16
      %v1082 = vrot.slane %v1080, 4
      %v1083 = vshll.u32 %v991, 16
      %v1085 = vrot.slane %v1083, 5
      %v1086 = vor.u32 %v1082, %v1085
      %v1087 = vrot.slane %v1086, 4
      %v1089 = vshll.u32 %v992, 16
      %v1091 = vrot.slane %v1089, 5
      %v1092 = vsel %vm453, %v1087, %v1091
      %v1094 = vshrl.u32 %v993, 16
      %v1096 = vrot.slane %v1094, 4
      %v1097 = vshll.u32 %v993, 16
      %v1099 = vrot.slane %v1097, 5
      %v1100 = vor.u32 %v1096, %v1099
      %v1101 = vrot.slane %v1100, 4
      %v1103 = vshll.u32 %v994, 16
      %v1105 = vrot.slane %v1103, 5
      %v1106 = vsel %vm453, %v1101, %v1105
      %v1107 = vunpack.c.l.b16 %v1008
      %v1108 = vunpack.c.l.b16 %v1022
      %v1109 = vunpack.c.l.b16 %v1036
      %v1110 = vunpack.c.l.b16 %v1050
      %v1111 = vunpack.c.l.b16 %v1064
      %v1112 = vunpack.c.l.b16 %v1078
      %v1113 = vunpack.c.l.b16 %v1092
      %v1114 = vunpack.c.l.b16 %v1106
      %v1115 = vpack.c.b16 %v1108, %v1107
      %v1116 = vpack.c.b16 %v1110, %v1109
      %v1117 = vpack.c.b16 %v1112, %v1111
      %v1118 = vpack.c.b16 %v1114, %v1113
      %1123 = vst [vmem:[#allocation2 + $0x38] sm:$0xff] %v1115
      %1124 = vst [vmem:[#allocation2 + $0x80] sm:$0xff] %v1116
      %1125 = vst [vmem:[#allocation2 + $0xc8] sm:$0xff] %v1117
      %1126 = vst [vmem:[#allocation2 + $0x110] sm:$0xff] %v1118
      %v1127 = vld [vmem:[%s942] sm:$0xe]
      %v1128 = vld [vmem:[%s942 + $0x4] sm:$0x1]
      %v1129 = vld [vmem:[%s942 + $0x8] sm:$0xe]
      %v1130 = vld [vmem:[%s942 + $0xc] sm:$0x1]
      %v1131 = vld [vmem:[%s942 + $0x10] sm:$0xe]
      %v1132 = vld [vmem:[%s942 + $0x14] sm:$0x1]
      %v1133 = vld [vmem:[%s942 + $0x18] sm:$0xe]
      %v1134 = vld [vmem:[%s942 + $0x1c] sm:$0x1]
      %v1135 = vld [vmem:[%s942 + $0x20] sm:$0xe]
      %v1136 = vld [vmem:[%s942 + $0x24] sm:$0x1]
      %v1137 = vld [vmem:[%s942 + $0x28] sm:$0xe]
      %v1138 = vld [vmem:[%s942 + $0x2c] sm:$0x1]
      %v1139 = vld [vmem:[%s942 + $0x30] sm:$0xe]
      %v1140 = vld [vmem:[%s942 + $0x34] sm:$0x1]
      %v1141 = vld [vmem:[%s942 + $0x38] sm:$0xe]
      %v1142 = vld [vmem:[%s942 + $0x3c] sm:$0x1]
      %v1159 = vrot.slane %v1127, 5
      %v1160 = vrot.slane %v1159, 4
      %v1161 = vrot.slane %v1128, 5
      %v1162 = vsel %vm620, %v1160, %v1161
      %v1163 = vrot.slane %v1129, 5
      %v1164 = vrot.slane %v1163, 4
      %v1165 = vrot.slane %v1130, 5
      %v1166 = vsel %vm620, %v1164, %v1165
      %v1167 = vrot.slane %v1131, 5
      %v1168 = vrot.slane %v1167, 4
      %v1169 = vrot.slane %v1132, 5
      %v1170 = vsel %vm620, %v1168, %v1169
      %v1171 = vrot.slane %v1133, 5
      %v1172 = vrot.slane %v1171, 4
      %v1173 = vrot.slane %v1134, 5
      %v1174 = vsel %vm620, %v1172, %v1173
      %v1175 = vrot.slane %v1135, 5
      %v1176 = vrot.slane %v1175, 4
      %v1177 = vrot.slane %v1136, 5
      %v1178 = vsel %vm620, %v1176, %v1177
      %v1179 = vrot.slane %v1137, 5
      %v1180 = vrot.slane %v1179, 4
      %v1181 = vrot.slane %v1138, 5
      %v1182 = vsel %vm620, %v1180, %v1181
      %v1183 = vrot.slane %v1139, 5
      %v1184 = vrot.slane %v1183, 4
      %v1185 = vrot.slane %v1140, 5
      %v1186 = vsel %vm620, %v1184, %v1185
      %v1187 = vrot.slane %v1141, 5
      %v1188 = vrot.slane %v1187, 4
      %v1189 = vrot.slane %v1142, 5
      %v1190 = vsel %vm620, %v1188, %v1189
      %v1191 = vunpack.c.l.b16 %v1162
      %v1192 = vunpack.c.l.b16 %v1166
      %v1193 = vunpack.c.l.b16 %v1170
      %v1194 = vunpack.c.l.b16 %v1174
      %v1195 = vunpack.c.l.b16 %v1178
      %v1196 = vunpack.c.l.b16 %v1182
      %v1197 = vunpack.c.l.b16 %v1186
      %v1198 = vunpack.c.l.b16 %v1190
      %v1199 = vpack.c.b16 %v1192, %v1191
      %v1200 = vpack.c.b16 %v1194, %v1193
      %v1201 = vpack.c.b16 %v1196, %v1195
      %v1202 = vpack.c.b16 %v1198, %v1197
      %1207 = vst [vmem:[#allocation2 + $0x40] sm:$0xff] %v1199
      %1208 = vst [vmem:[#allocation2 + $0x88] sm:$0xff] %v1200
      %1209 = vst [vmem:[#allocation2 + $0xd0] sm:$0xff] %v1201
      %1210 = vst [vmem:[#allocation2 + $0x118] sm:$0xff] %v1202
      %v1211 = vld [vmem:[#allocation2] sm:$0xff]
      %v1212 = vld [vmem:[#allocation2 + $0x8] sm:$0xff]
      %v1213 = vld [vmem:[#allocation2 + $0x10] sm:$0xff]
      %v1214 = vld [vmem:[#allocation2 + $0x18] sm:$0xff]
      %v1215 = vld [vmem:[#allocation2 + $0x20] sm:$0xff]
      %v1216 = vld [vmem:[#allocation2 + $0x28] sm:$0xff]
      %v1217 = vld [vmem:[#allocation2 + $0x30] sm:$0xff]
      %v1218 = vld [vmem:[#allocation2 + $0x38] sm:$0xff]
      %v1219 = vld [vmem:[#allocation2 + $0x40] sm:$0xff]
      %v1220 = vld [vmem:[#allocation2 + $0x48] sm:$0xff]
      %v1221 = vld [vmem:[#allocation2 + $0x50] sm:$0xff]
      %v1222 = vld [vmem:[#allocation2 + $0x58] sm:$0xff]
      %v1223 = vld [vmem:[#allocation2 + $0x60] sm:$0xff]
      %v1224 = vld [vmem:[#allocation2 + $0x68] sm:$0xff]
      %v1225 = vld [vmem:[#allocation2 + $0x70] sm:$0xff]
      %v1226 = vld [vmem:[#allocation2 + $0x78] sm:$0xff]
      %v1227 = vld [vmem:[#allocation2 + $0x80] sm:$0xff]
      %v1228 = vld [vmem:[#allocation2 + $0x88] sm:$0xff]
      %v1229 = vld [vmem:[#allocation2 + $0x90] sm:$0xff]
      %v1230 = vld [vmem:[#allocation2 + $0x98] sm:$0xff]
      %v1231 = vld [vmem:[#allocation2 + $0xa0] sm:$0xff]
      %v1232 = vld [vmem:[#allocation2 + $0xa8] sm:$0xff]
      %v1233 = vld [vmem:[#allocation2 + $0xb0] sm:$0xff]
      %v1234 = vld [vmem:[#allocation2 + $0xb8] sm:$0xff]
      %v1235 = vld [vmem:[#allocation2 + $0xc0] sm:$0xff]
      %v1236 = vld [vmem:[#allocation2 + $0xc8] sm:$0xff]
      %v1237 = vld [vmem:[#allocation2 + $0xd0] sm:$0xff]
      %v1238 = vld [vmem:[#allocation2 + $0xd8] sm:$0xff]
      %v1239 = vld [vmem:[#allocation2 + $0xe0] sm:$0xff]
      %v1240 = vld [vmem:[#allocation2 + $0xe8] sm:$0xff]
      %v1241 = vld [vmem:[#allocation2 + $0xf0] sm:$0xff]
      %v1242 = vld [vmem:[#allocation2 + $0xf8] sm:$0xff]
      %v1243 = vld [vmem:[#allocation2 + $0x100] sm:$0xff]
      %v1244 = vld [vmem:[#allocation2 + $0x108] sm:$0xff]
      %v1245 = vld [vmem:[#allocation2 + $0x110] sm:$0xff]
      %v1246 = vld [vmem:[#allocation2 + $0x118] sm:$0xff]
      %v1247 = vld [vmem:[%s1] sm:$0xf]
      %v1248 = vld [vmem:[%s1 + $0x4] sm:$0xf]
      %v1249 = vld [vmem:[%s1 + $0x8] sm:$0xf]
      %v1250 = vld [vmem:[%s1 + $0xc] sm:$0xf]
      %v1251 = vld [vmem:[%s1 + $0x10] sm:$0xf]
      %v1252 = vld [vmem:[%s1 + $0x14] sm:$0xf]
      %v1253 = vld [vmem:[%s1 + $0x18] sm:$0xf]
      %v1254 = vld [vmem:[%s1 + $0x1c] sm:$0xf]
      %v1255 = vld [vmem:[%s1 + $0x20] sm:$0xf]
      %v1256 = vld [vmem:[%s1 + $0x24] sm:$0xf]
      %v1257 = vld [vmem:[%s1 + $0x28] sm:$0xf]
      %v1258 = vld [vmem:[%s1 + $0x2c] sm:$0xf]
      %v1259 = vld [vmem:[%s1 + $0x30] sm:$0xf]
      %v1260 = vld [vmem:[%s1 + $0x34] sm:$0xf]
      %v1261 = vld [vmem:[%s1 + $0x38] sm:$0xf]
      %v1262 = vld [vmem:[%s1 + $0x3c] sm:$0xf]
      %v1263 = vld [vmem:[%s1 + $0x40] sm:$0xf]
      %v1264 = vld [vmem:[%s1 + $0x44] sm:$0xf]
      %v1265 = vld [vmem:[%s1 + $0x48] sm:$0xf]
      %v1266 = vld [vmem:[%s1 + $0x4c] sm:$0xf]
      %v1267 = vld [vmem:[%s1 + $0x50] sm:$0xf]
      %v1268 = vld [vmem:[%s1 + $0x54] sm:$0xf]
      %v1269 = vld [vmem:[%s1 + $0x58] sm:$0xf]
      %v1270 = vld [vmem:[%s1 + $0x5c] sm:$0xf]
      %v1271 = vld [vmem:[%s1 + $0x60] sm:$0xf]
      %v1272 = vld [vmem:[%s1 + $0x64] sm:$0xf]
      %v1273 = vld [vmem:[%s1 + $0x68] sm:$0xf]
      %v1274 = vld [vmem:[%s1 + $0x6c] sm:$0xf]
      %v1275 = vld [vmem:[%s1 + $0x70] sm:$0xf]
      %v1276 = vld [vmem:[%s1 + $0x74] sm:$0xf]
      %v1277 = vld [vmem:[%s1 + $0x78] sm:$0xf]
      %v1278 = vld [vmem:[%s1 + $0x7c] sm:$0xf]
      %v1279 = vld [vmem:[%s1 + $0x80] sm:$0xf]
      %v1280 = vld [vmem:[%s1 + $0x84] sm:$0xf]
      %v1281 = vld [vmem:[%s1 + $0x88] sm:$0xf]
      %v1282 = vld [vmem:[%s1 + $0x8c] sm:$0xf]
      %v1283 = vld [vmem:[%s1 + $0x90] sm:$0xf]
      %v1284 = vld [vmem:[%s1 + $0x94] sm:$0xf]
      %v1285 = vld [vmem:[%s1 + $0x98] sm:$0xf]
      %v1286 = vld [vmem:[%s1 + $0x9c] sm:$0xf]
      %v1287 = vld [vmem:[%s1 + $0xa0] sm:$0xf]
      %v1288 = vld [vmem:[%s1 + $0xa4] sm:$0xf]
      %v1289 = vld [vmem:[%s1 + $0xa8] sm:$0xf]
      %v1290 = vld [vmem:[%s1 + $0xac] sm:$0xf]
      %v1291 = vld [vmem:[%s1 + $0xb0] sm:$0xf]
      %v1292 = vld [vmem:[%s1 + $0xb4] sm:$0xf]
      %v1293 = vld [vmem:[%s1 + $0xb8] sm:$0xf]
      %v1294 = vld [vmem:[%s1 + $0xbc] sm:$0xf]
      %v1295 = vld [vmem:[%s1 + $0xc0] sm:$0xf]
      %v1296 = vld [vmem:[%s1 + $0xc4] sm:$0xf]
      %v1297 = vld [vmem:[%s1 + $0xc8] sm:$0xf]
      %v1298 = vld [vmem:[%s1 + $0xcc] sm:$0xf]
      %v1299 = vld [vmem:[%s1 + $0xd0] sm:$0xf]
      %v1300 = vld [vmem:[%s1 + $0xd4] sm:$0xf]
      %v1301 = vld [vmem:[%s1 + $0xd8] sm:$0xf]
      %v1302 = vld [vmem:[%s1 + $0xdc] sm:$0xf]
      %v1303 = vld [vmem:[%s1 + $0xe0] sm:$0xf]
      %v1304 = vld [vmem:[%s1 + $0xe4] sm:$0xf]
      %v1305 = vld [vmem:[%s1 + $0xe8] sm:$0xf]
      %v1306 = vld [vmem:[%s1 + $0xec] sm:$0xf]
      %v1307 = vld [vmem:[%s1 + $0xf0] sm:$0xf]
      %v1308 = vld [vmem:[%s1 + $0xf4] sm:$0xf]
      %v1309 = vld [vmem:[%s1 + $0xf8] sm:$0xf]
      %v1310 = vld [vmem:[%s1 + $0xfc] sm:$0xf]
      %v1311 = vld [vmem:[%s1 + $0x100] sm:$0xf]
      %v1312 = vld [vmem:[%s1 + $0x104] sm:$0xf]
      %v1313 = vld [vmem:[%s1 + $0x108] sm:$0xf]
      %v1314 = vld [vmem:[%s1 + $0x10c] sm:$0xf]
      %v1315 = vld [vmem:[%s1 + $0x110] sm:$0xf]
      %v1316 = vld [vmem:[%s1 + $0x114] sm:$0xf]
      %v1317 = vld [vmem:[%s1 + $0x118] sm:$0xf]
      %v1318 = vld [vmem:[%s1 + $0x11c] sm:$0xf]
      %v1319 = vld [vmem:[%s1 + $0x120] sm:$0xf]
      %v1320 = vld [vmem:[%s1 + $0x124] sm:$0xf]
      %v1321 = vld [vmem:[%s1 + $0x128] sm:$0xf]
      %v1322 = vld [vmem:[%s1 + $0x12c] sm:$0xf]
      %v1323 = vld [vmem:[%s1 + $0x130] sm:$0xf]
      %v1324 = vld [vmem:[%s1 + $0x134] sm:$0xf]
      %v1325 = vld [vmem:[%s1 + $0x138] sm:$0xf]
      %v1326 = vld [vmem:[%s1 + $0x13c] sm:$0xf]
      %v1327 = vld [vmem:[%s1 + $0x140] sm:$0xf]
      %v1328 = vld [vmem:[%s1 + $0x144] sm:$0xf]
      %v1329 = vld [vmem:[%s1 + $0x148] sm:$0xf]
      %v1330 = vld [vmem:[%s1 + $0x14c] sm:$0xf]
      %v1331 = vld [vmem:[%s1 + $0x150] sm:$0xf]
      %v1332 = vld [vmem:[%s1 + $0x154] sm:$0xf]
      %v1333 = vld [vmem:[%s1 + $0x158] sm:$0xf]
      %v1334 = vld [vmem:[%s1 + $0x15c] sm:$0xf]
      %v1335 = vld [vmem:[%s1 + $0x160] sm:$0xf]
      %v1336 = vld [vmem:[%s1 + $0x164] sm:$0xf]
      %v1337 = vld [vmem:[%s1 + $0x168] sm:$0xf]
      %v1338 = vld [vmem:[%s1 + $0x16c] sm:$0xf]
      %v1339 = vld [vmem:[%s1 + $0x170] sm:$0xf]
      %v1340 = vld [vmem:[%s1 + $0x174] sm:$0xf]
      %v1341 = vld [vmem:[%s1 + $0x178] sm:$0xf]
      %v1342 = vld [vmem:[%s1 + $0x17c] sm:$0xf]
      %v1343 = vld [vmem:[%s1 + $0x180] sm:$0xf]
      %v1344 = vld [vmem:[%s1 + $0x184] sm:$0xf]
      %v1345 = vld [vmem:[%s1 + $0x188] sm:$0xf]
      %v1346 = vld [vmem:[%s1 + $0x18c] sm:$0xf]
      %v1347 = vld [vmem:[%s1 + $0x190] sm:$0xf]
      %v1348 = vld [vmem:[%s1 + $0x194] sm:$0xf]
      %v1349 = vld [vmem:[%s1 + $0x198] sm:$0xf]
      %v1350 = vld [vmem:[%s1 + $0x19c] sm:$0xf]
      %v1351 = vld [vmem:[%s1 + $0x1a0] sm:$0xf]
      %v1352 = vld [vmem:[%s1 + $0x1a4] sm:$0xf]
      %v1353 = vld [vmem:[%s1 + $0x1a8] sm:$0xf]
      %v1354 = vld [vmem:[%s1 + $0x1ac] sm:$0xf]
      %v1355 = vld [vmem:[%s1 + $0x1b0] sm:$0xf]
      %v1356 = vld [vmem:[%s1 + $0x1b4] sm:$0xf]
      %v1357 = vld [vmem:[%s1 + $0x1b8] sm:$0xf]
      %v1358 = vld [vmem:[%s1 + $0x1bc] sm:$0xf]
      %v1359 = vld [vmem:[%s1 + $0x1c0] sm:$0xf]
      %v1360 = vld [vmem:[%s1 + $0x1c4] sm:$0xf]
      %v1361 = vld [vmem:[%s1 + $0x1c8] sm:$0xf]
      %v1362 = vld [vmem:[%s1 + $0x1cc] sm:$0xf]
      %v1363 = vld [vmem:[%s1 + $0x1d0] sm:$0xf]
      %v1364 = vld [vmem:[%s1 + $0x1d4] sm:$0xf]
      %v1365 = vld [vmem:[%s1 + $0x1d8] sm:$0xf]
      %v1366 = vld [vmem:[%s1 + $0x1dc] sm:$0xf]
      %v1367 = vld [vmem:[%s1 + $0x1e0] sm:$0xf]
      %v1368 = vld [vmem:[%s1 + $0x1e4] sm:$0xf]
      %v1369 = vld [vmem:[%s1 + $0x1e8] sm:$0xf]
      %v1370 = vld [vmem:[%s1 + $0x1ec] sm:$0xf]
      %v1371 = vld [vmem:[%s1 + $0x1f0] sm:$0xf]
      %v1372 = vld [vmem:[%s1 + $0x1f4] sm:$0xf]
      %v1373 = vld [vmem:[%s1 + $0x1f8] sm:$0xf]
      %v1374 = vld [vmem:[%s1 + $0x1fc] sm:$0xf]
      %v1375 = vld [vmem:[%s1 + $0x200] sm:$0xf]
      %v1376 = vld [vmem:[%s1 + $0x204] sm:$0xf]
      %v1377 = vld [vmem:[%s1 + $0x208] sm:$0xf]
      %v1378 = vld [vmem:[%s1 + $0x20c] sm:$0xf]
      %v1379 = vld [vmem:[%s1 + $0x210] sm:$0xf]
      %v1380 = vld [vmem:[%s1 + $0x214] sm:$0xf]
      %v1381 = vld [vmem:[%s1 + $0x218] sm:$0xf]
      %v1382 = vld [vmem:[%s1 + $0x21c] sm:$0xf]
      %v1383 = vld [vmem:[%s1 + $0x220] sm:$0xf]
      %v1384 = vld [vmem:[%s1 + $0x224] sm:$0xf]
      %v1385 = vld [vmem:[%s1 + $0x228] sm:$0xf]
      %v1386 = vld [vmem:[%s1 + $0x22c] sm:$0xf]
      %v1387 = vld [vmem:[%s1 + $0x230] sm:$0xf]
      %v1388 = vld [vmem:[%s1 + $0x234] sm:$0xf]
      %v1389 = vld [vmem:[%s1 + $0x238] sm:$0xf]
      %v1390 = vld [vmem:[%s1 + $0x23c] sm:$0xf]
      %v1535 = vunpack.c.l.b16 %v1247
      %v1536 = vunpack.c.l.b16 %v1248
      %v1537 = vunpack.c.l.b16 %v1249
      %v1538 = vunpack.c.l.b16 %v1250
      %v1539 = vunpack.c.l.b16 %v1251
      %v1540 = vunpack.c.l.b16 %v1252
      %v1541 = vunpack.c.l.b16 %v1253
      %v1542 = vunpack.c.l.b16 %v1254
      %v1543 = vunpack.c.l.b16 %v1255
      %v1544 = vunpack.c.l.b16 %v1256
      %v1545 = vunpack.c.l.b16 %v1257
      %v1546 = vunpack.c.l.b16 %v1258
      %v1547 = vunpack.c.l.b16 %v1259
      %v1548 = vunpack.c.l.b16 %v1260
      %v1549 = vunpack.c.l.b16 %v1261
      %v1550 = vunpack.c.l.b16 %v1262
      %v1551 = vunpack.c.l.b16 %v1263
      %v1552 = vunpack.c.l.b16 %v1264
      %v1553 = vunpack.c.l.b16 %v1265
      %v1554 = vunpack.c.l.b16 %v1266
      %v1555 = vunpack.c.l.b16 %v1267
      %v1556 = vunpack.c.l.b16 %v1268
      %v1557 = vunpack.c.l.b16 %v1269
      %v1558 = vunpack.c.l.b16 %v1270
      %v1559 = vunpack.c.l.b16 %v1271
      %v1560 = vunpack.c.l.b16 %v1272
      %v1561 = vunpack.c.l.b16 %v1273
      %v1562 = vunpack.c.l.b16 %v1274
      %v1563 = vunpack.c.l.b16 %v1275
      %v1564 = vunpack.c.l.b16 %v1276
      %v1565 = vunpack.c.l.b16 %v1277
      %v1566 = vunpack.c.l.b16 %v1278
      %v1567 = vunpack.c.l.b16 %v1279
      %v1568 = vunpack.c.l.b16 %v1280
      %v1569 = vunpack.c.l.b16 %v1281
      %v1570 = vunpack.c.l.b16 %v1282
      %v1571 = vunpack.c.l.b16 %v1283
      %v1572 = vunpack.c.l.b16 %v1284
      %v1573 = vunpack.c.l.b16 %v1285
      %v1574 = vunpack.c.l.b16 %v1286
      %v1575 = vunpack.c.l.b16 %v1287
      %v1576 = vunpack.c.l.b16 %v1288
      %v1577 = vunpack.c.l.b16 %v1289
      %v1578 = vunpack.c.l.b16 %v1290
      %v1579 = vunpack.c.l.b16 %v1291
      %v1580 = vunpack.c.l.b16 %v1292
      %v1581 = vunpack.c.l.b16 %v1293
      %v1582 = vunpack.c.l.b16 %v1294
      %v1583 = vunpack.c.l.b16 %v1295
      %v1584 = vunpack.c.l.b16 %v1296
      %v1585 = vunpack.c.l.b16 %v1297
      %v1586 = vunpack.c.l.b16 %v1298
      %v1587 = vunpack.c.l.b16 %v1299
      %v1588 = vunpack.c.l.b16 %v1300
      %v1589 = vunpack.c.l.b16 %v1301
      %v1590 = vunpack.c.l.b16 %v1302
      %v1591 = vunpack.c.l.b16 %v1303
      %v1592 = vunpack.c.l.b16 %v1304
      %v1593 = vunpack.c.l.b16 %v1305
      %v1594 = vunpack.c.l.b16 %v1306
      %v1595 = vunpack.c.l.b16 %v1307
      %v1596 = vunpack.c.l.b16 %v1308
      %v1597 = vunpack.c.l.b16 %v1309
      %v1598 = vunpack.c.l.b16 %v1310
      %v1599 = vunpack.c.l.b16 %v1311
      %v1600 = vunpack.c.l.b16 %v1312
      %v1601 = vunpack.c.l.b16 %v1313
      %v1602 = vunpack.c.l.b16 %v1314
      %v1603 = vunpack.c.l.b16 %v1315
      %v1604 = vunpack.c.l.b16 %v1316
      %v1605 = vunpack.c.l.b16 %v1317
      %v1606 = vunpack.c.l.b16 %v1318
      %v1607 = vunpack.c.l.b16 %v1319
      %v1608 = vunpack.c.l.b16 %v1320
      %v1609 = vunpack.c.l.b16 %v1321
      %v1610 = vunpack.c.l.b16 %v1322
      %v1611 = vunpack.c.l.b16 %v1323
      %v1612 = vunpack.c.l.b16 %v1324
      %v1613 = vunpack.c.l.b16 %v1325
      %v1614 = vunpack.c.l.b16 %v1326
      %v1615 = vunpack.c.l.b16 %v1327
      %v1616 = vunpack.c.l.b16 %v1328
      %v1617 = vunpack.c.l.b16 %v1329
      %v1618 = vunpack.c.l.b16 %v1330
      %v1619 = vunpack.c.l.b16 %v1331
      %v1620 = vunpack.c.l.b16 %v1332
      %v1621 = vunpack.c.l.b16 %v1333
      %v1622 = vunpack.c.l.b16 %v1334
      %v1623 = vunpack.c.l.b16 %v1335
      %v1624 = vunpack.c.l.b16 %v1336
      %v1625 = vunpack.c.l.b16 %v1337
      %v1626 = vunpack.c.l.b16 %v1338
      %v1627 = vunpack.c.l.b16 %v1339
      %v1628 = vunpack.c.l.b16 %v1340
      %v1629 = vunpack.c.l.b16 %v1341
      %v1630 = vunpack.c.l.b16 %v1342
      %v1631 = vunpack.c.l.b16 %v1343
      %v1632 = vunpack.c.l.b16 %v1344
      %v1633 = vunpack.c.l.b16 %v1345
      %v1634 = vunpack.c.l.b16 %v1346
      %v1635 = vunpack.c.l.b16 %v1347
      %v1636 = vunpack.c.l.b16 %v1348
      %v1637 = vunpack.c.l.b16 %v1349
      %v1638 = vunpack.c.l.b16 %v1350
      %v1639 = vunpack.c.l.b16 %v1351
      %v1640 = vunpack.c.l.b16 %v1352
      %v1641 = vunpack.c.l.b16 %v1353
      %v1642 = vunpack.c.l.b16 %v1354
      %v1643 = vunpack.c.l.b16 %v1355
      %v1644 = vunpack.c.l.b16 %v1356
      %v1645 = vunpack.c.l.b16 %v1357
      %v1646 = vunpack.c.l.b16 %v1358
      %v1647 = vunpack.c.l.b16 %v1359
      %v1648 = vunpack.c.l.b16 %v1360
      %v1649 = vunpack.c.l.b16 %v1361
      %v1650 = vunpack.c.l.b16 %v1362
      %v1651 = vunpack.c.l.b16 %v1363
      %v1652 = vunpack.c.l.b16 %v1364
      %v1653 = vunpack.c.l.b16 %v1365
      %v1654 = vunpack.c.l.b16 %v1366
      %v1655 = vunpack.c.l.b16 %v1367
      %v1656 = vunpack.c.l.b16 %v1368
      %v1657 = vunpack.c.l.b16 %v1369
      %v1658 = vunpack.c.l.b16 %v1370
      %v1659 = vunpack.c.l.b16 %v1371
      %v1660 = vunpack.c.l.b16 %v1372
      %v1661 = vunpack.c.l.b16 %v1373
      %v1662 = vunpack.c.l.b16 %v1374
      %v1663 = vunpack.c.l.b16 %v1375
      %v1664 = vunpack.c.l.b16 %v1376
      %v1665 = vunpack.c.l.b16 %v1377
      %v1666 = vunpack.c.l.b16 %v1378
      %v1667 = vunpack.c.l.b16 %v1379
      %v1668 = vunpack.c.l.b16 %v1380
      %v1669 = vunpack.c.l.b16 %v1381
      %v1670 = vunpack.c.l.b16 %v1382
      %v1671 = vunpack.c.l.b16 %v1383
      %v1672 = vunpack.c.l.b16 %v1384
      %v1673 = vunpack.c.l.b16 %v1385
      %v1674 = vunpack.c.l.b16 %v1386
      %v1675 = vunpack.c.l.b16 %v1387
      %v1676 = vunpack.c.l.b16 %v1388
      %v1677 = vunpack.c.l.b16 %v1389
      %v1678 = vunpack.c.l.b16 %v1390
      %v1679 = vpack.c.b16 %v1536, %v1535
      %v1680 = vpack.c.b16 %v1538, %v1537
      %v1681 = vpack.c.b16 %v1540, %v1539
      %v1682 = vpack.c.b16 %v1542, %v1541
      %v1683 = vpack.c.b16 %v1544, %v1543
      %v1684 = vpack.c.b16 %v1546, %v1545
      %v1685 = vpack.c.b16 %v1548, %v1547
      %v1686 = vpack.c.b16 %v1550, %v1549
      %v1687 = vpack.c.b16 %v1552, %v1551
      %v1688 = vpack.c.b16 %v1554, %v1553
      %v1689 = vpack.c.b16 %v1556, %v1555
      %v1690 = vpack.c.b16 %v1558, %v1557
      %v1691 = vpack.c.b16 %v1560, %v1559
      %v1692 = vpack.c.b16 %v1562, %v1561
      %v1693 = vpack.c.b16 %v1564, %v1563
      %v1694 = vpack.c.b16 %v1566, %v1565
      %v1695 = vpack.c.b16 %v1568, %v1567
      %v1696 = vpack.c.b16 %v1570, %v1569
      %v1697 = vpack.c.b16 %v1572, %v1571
      %v1698 = vpack.c.b16 %v1574, %v1573
      %v1699 = vpack.c.b16 %v1576, %v1575
      %v1700 = vpack.c.b16 %v1578, %v1577
      %v1701 = vpack.c.b16 %v1580, %v1579
      %v1702 = vpack.c.b16 %v1582, %v1581
      %v1703 = vpack.c.b16 %v1584, %v1583
      %v1704 = vpack.c.b16 %v1586, %v1585
      %v1705 = vpack.c.b16 %v1588, %v1587
      %v1706 = vpack.c.b16 %v1590, %v1589
      %v1707 = vpack.c.b16 %v1592, %v1591
      %v1708 = vpack.c.b16 %v1594, %v1593
      %v1709 = vpack.c.b16 %v1596, %v1595
      %v1710 = vpack.c.b16 %v1598, %v1597
      %v1711 = vpack.c.b16 %v1600, %v1599
      %v1712 = vpack.c.b16 %v1602, %v1601
      %v1713 = vpack.c.b16 %v1604, %v1603
      %v1714 = vpack.c.b16 %v1606, %v1605
      %v1715 = vpack.c.b16 %v1608, %v1607
      %v1716 = vpack.c.b16 %v1610, %v1609
      %v1717 = vpack.c.b16 %v1612, %v1611
      %v1718 = vpack.c.b16 %v1614, %v1613
      %v1719 = vpack.c.b16 %v1616, %v1615
      %v1720 = vpack.c.b16 %v1618, %v1617
      %v1721 = vpack.c.b16 %v1620, %v1619
      %v1722 = vpack.c.b16 %v1622, %v1621
      %v1723 = vpack.c.b16 %v1624, %v1623
      %v1724 = vpack.c.b16 %v1626, %v1625
      %v1725 = vpack.c.b16 %v1628, %v1627
      %v1726 = vpack.c.b16 %v1630, %v1629
      %v1727 = vpack.c.b16 %v1632, %v1631
      %v1728 = vpack.c.b16 %v1634, %v1633
      %v1729 = vpack.c.b16 %v1636, %v1635
      %v1730 = vpack.c.b16 %v1638, %v1637
      %v1731 = vpack.c.b16 %v1640, %v1639
      %v1732 = vpack.c.b16 %v1642, %v1641
      %v1733 = vpack.c.b16 %v1644, %v1643
      %v1734 = vpack.c.b16 %v1646, %v1645
      %v1735 = vpack.c.b16 %v1648, %v1647
      %v1736 = vpack.c.b16 %v1650, %v1649
      %v1737 = vpack.c.b16 %v1652, %v1651
      %v1738 = vpack.c.b16 %v1654, %v1653
      %v1739 = vpack.c.b16 %v1656, %v1655
      %v1740 = vpack.c.b16 %v1658, %v1657
      %v1741 = vpack.c.b16 %v1660, %v1659
      %v1742 = vpack.c.b16 %v1662, %v1661
      %v1743 = vpack.c.b16 %v1664, %v1663
      %v1744 = vpack.c.b16 %v1666, %v1665
      %v1745 = vpack.c.b16 %v1668, %v1667
      %v1746 = vpack.c.b16 %v1670, %v1669
      %v1747 = vpack.c.b16 %v1672, %v1671
      %v1748 = vpack.c.b16 %v1674, %v1673
      %v1749 = vpack.c.b16 %v1676, %v1675
      %v1750 = vpack.c.b16 %v1678, %v1677
      %1823 = vmatprep.subr.bf16.mxu0 0
      %1824 = vmatpush1.bf16.msra.mxu0 %v1679
      %1825 = vmatprep.subr.bf16.mxu0 0
      %1826 = vmatpush1.bf16.msra.mxu0 %v1680
      %1827 = vmatprep.subr.bf16.mxu0 0
      %1828 = vmatpush1.bf16.msra.mxu0 %v1681
      %1829 = vmatprep.subr.bf16.mxu0 0
      %1830 = vmatpush1.bf16.msra.mxu0 %v1682
      %1831 = vmatprep.subr.bf16.mxu0 0
      %1832 = vmatpush1.bf16.msra.mxu0 %v1683
      %1833 = vmatprep.subr.bf16.mxu0 0
      %1834 = vmatpush1.bf16.msra.mxu0 %v1684
      %1835 = vmatprep.subr.bf16.mxu0 0
      %1836 = vmatpush1.bf16.msra.mxu0 %v1685
      %1837 = vmatprep.subr.bf16.mxu0 0
      %1838 = vmatpush1.bf16.msra.mxu0 %v1686
      %1839 = vmatprep.subr.bf16.mxu0 0
      %1840 = vmatpush1.bf16.msra.mxu0 %v1687
      %1841 = vmatprep.subr.bf16.mxu0 0
      %1842 = vmatpush1.bf16.msra.mxu0 %v1688
      %1843 = vmatprep.subr.bf16.mxu0 0
      %1844 = vmatpush1.bf16.msra.mxu0 %v1689
      %1845 = vmatprep.subr.bf16.mxu0 0
      %1846 = vmatpush1.bf16.msra.mxu0 %v1690
      %1847 = vmatprep.subr.bf16.mxu0 0
      %1848 = vmatpush1.bf16.msra.mxu0 %v1691
      %1849 = vmatprep.subr.bf16.mxu0 0
      %1850 = vmatpush1.bf16.msra.mxu0 %v1692
      %1851 = vmatprep.subr.bf16.mxu0 0
      %1852 = vmatpush1.bf16.msra.mxu0 %v1693
      %1853 = vmatprep.subr.bf16.mxu0 0
      %1854 = vmatpush1.bf16.msra.mxu0 %v1694
      %1855 = vmatprep.mubr.bf16.mxu0 %v1212
      %1856 = vmatmul.mubr.bf16.gmra.mrb[0].mxu0 %v1211
      %v1857 = vpop.f32.mrb[0].mxu0
      %v1858 = vadd.f32 0.0, %v1857
      %v1859 = vpop.f32.mrb[0].mxu0
      %v1860 = vpop.f32.mrb[0].mxu0
      %v1861 = vadd.f32 0.0, %v1860
      %v1862 = vpop.f32.mrb[0].mxu0
      %1863 = vmatprep.mubr.bf16.mxu0 %v1221
      %1864 = vmatmul.mubr.bf16.gmra.mrb[0].mxu0 %v1220
      %v1865 = vpop.f32.mrb[0].mxu0
      %v1866 = vadd.f32 0.0, %v1865
      %v1867 = vpop.f32.mrb[0].mxu0
      %v1868 = vpop.f32.mrb[0].mxu0
      %v1869 = vadd.f32 0.0, %v1868
      %v1870 = vpop.f32.mrb[0].mxu0
      %1871 = vmatprep.mubr.bf16.mxu0 %v1230
      %1872 = vmatmul.mubr.bf16.gmra.mrb[0].mxu0 %v1229
      %v1873 = vpop.f32.mrb[0].mxu0
      %v1874 = vadd.f32 0.0, %v1873
      %v1875 = vpop.f32.mrb[0].mxu0
      %v1876 = vpop.f32.mrb[0].mxu0
      %v1877 = vadd.f32 0.0, %v1876
      %v1878 = vpop.f32.mrb[0].mxu0
      %1879 = vmatprep.mubr.bf16.mxu0 %v1239
      %1880 = vmatmul.mubr.bf16.gmra.mrb[0].mxu0 %v1238
      %v1881 = vpop.f32.mrb[0].mxu0
      %v1882 = vadd.f32 0.0, %v1881
      %v1883 = vpop.f32.mrb[0].mxu0
      %v1884 = vpop.f32.mrb[0].mxu0
      %v1885 = vadd.f32 0.0, %v1884
      %v1886 = vpop.f32.mrb[0].mxu0
      %1887 = vdwg.mxu0
      %1888 = vmatprep.subr.bf16.mxu0 0
      %1889 = vmatpush1.bf16.msra.mxu0 %v1695
      %1890 = vmatprep.subr.bf16.mxu0 0
      %1891 = vmatpush1.bf16.msra.mxu0 %v1696
      %1892 = vmatprep.subr.bf16.mxu0 0
      %1893 = vmatpush1.bf16.msra.mxu0 %v1697
      %1894 = vmatprep.subr.bf16.mxu0 0
      %1895 = vmatpush1.bf16.msra.mxu0 %v1698
      %1896 = vmatprep.subr.bf16.mxu0 0
      %1897 = vmatpush1.bf16.msra.mxu0 %v1699
      %1898 = vmatprep.subr.bf16.mxu0 0
      %1899 = vmatpush1.bf16.msra.mxu0 %v1700
      %1900 = vmatprep.subr.bf16.mxu0 0
      %1901 = vmatpush1.bf16.msra.mxu0 %v1701
      %1902 = vmatprep.subr.bf16.mxu0 0
      %1903 = vmatpush1.bf16.msra.mxu0 %v1702
      %1904 = vmatprep.subr.bf16.mxu0 0
      %1905 = vmatpush1.bf16.msra.mxu0 %v1703
      %1906 = vmatprep.subr.bf16.mxu0 0
      %1907 = vmatpush1.bf16.msra.mxu0 %v1704
      %1908 = vmatprep.subr.bf16.mxu0 0
      %1909 = vmatpush1.bf16.msra.mxu0 %v1705
      %1910 = vmatprep.subr.bf16.mxu0 0
      %1911 = vmatpush1.bf16.msra.mxu0 %v1706
      %1912 = vmatprep.subr.bf16.mxu0 0
      %1913 = vmatpush1.bf16.msra.mxu0 %v1707
      %1914 = vmatprep.subr.bf16.mxu0 0
      %1915 = vmatpush1.bf16.msra.mxu0 %v1708
      %1916 = vmatprep.subr.bf16.mxu0 0
      %1917 = vmatpush1.bf16.msra.mxu0 %v1709
      %1918 = vmatprep.subr.bf16.mxu0 0
      %1919 = vmatpush1.bf16.msra.mxu0 %v1710
      %1920 = vmatprep.mubr.bf16.mxu0 %v1214
      %1921 = vmatmul.mubr.bf16.gmra.mrb[0].mxu0 %v1213
      %v1922 = vpop.f32.mrb[0].mxu0
      %v1923 = vadd.f32 %v1858, %v1922
      %v1924 = vpop.f32.mrb[0].mxu0
      %v1925 = vpop.f32.mrb[0].mxu0
      %v1926 = vadd.f32 %v1861, %v1925
      %v1927 = vpop.f32.mrb[0].mxu0
      %1928 = vmatprep.mubr.bf16.mxu0 %v1223
      %1929 = vmatmul.mubr.bf16.gmra.mrb[0].mxu0 %v1222
      %v1930 = vpop.f32.mrb[0].mxu0
      %v1931 = vadd.f32 %v1866, %v1930
      %v1932 = vpop.f32.mrb[0].mxu0
      %v1933 = vpop.f32.mrb[0].mxu0
      %v1934 = vadd.f32 %v1869, %v1933
      %v1935 = vpop.f32.mrb[0].mxu0
      %1936 = vmatprep.mubr.bf16.mxu0 %v1232
      %1937 = vmatmul.mubr.bf16.gmra.mrb[0].mxu0 %v1231
      %v1938 = vpop.f32.mrb[0].mxu0
      %v1939 = vadd.f32 %v1874, %v1938
      %v1940 = vpop.f32.mrb[0].mxu0
      %v1941 = vpop.f32.mrb[0].mxu0
      %v1942 = vadd.f32 %v1877, %v1941
      %v1943 = vpop.f32.mrb[0].mxu0
      %1944 = vmatprep.mubr.bf16.mxu0 %v1241
      %1945 = vmatmul.mubr.bf16.gmra.mrb[0].mxu0 %v1240
      %v1946 = vpop.f32.mrb[0].mxu0
      %v1947 = vadd.f32 %v1882, %v1946
      %v1948 = vpop.f32.mrb[0].mxu0
      %v1949 = vpop.f32.mrb[0].mxu0
      %v1950 = vadd.f32 %v1885, %v1949
      %v1951 = vpop.f32.mrb[0].mxu0
      %1952 = vdwg.mxu0
      %1953 = vmatprep.subr.bf16.mxu0 0
      %1954 = vmatpush1.bf16.msra.mxu0 %v1711
      %1955 = vmatprep.subr.bf16.mxu0 0
      %1956 = vmatpush1.bf16.msra.mxu0 %v1712
      %1957 = vmatprep.subr.bf16.mxu0 0
      %1958 = vmatpush1.bf16.msra.mxu0 %v1713
      %1959 = vmatprep.subr.bf16.mxu0 0
      %1960 = vmatpush1.bf16.msra.mxu0 %v1714
      %1961 = vmatprep.subr.bf16.mxu0 0
      %1962 = vmatpush1.bf16.msra.mxu0 %v1715
      %1963 = vmatprep.subr.bf16.mxu0 0
      %1964 = vmatpush1.bf16.msra.mxu0 %v1716
      %1965 = vmatprep.subr.bf16.mxu0 0
      %1966 = vmatpush1.bf16.msra.mxu0 %v1717
      %1967 = vmatprep.subr.bf16.mxu0 0
      %1968 = vmatpush1.bf16.msra.mxu0 %v1718
      %1969 = vmatprep.subr.bf16.mxu0 0
      %1970 = vmatpush1.bf16.msra.mxu0 %v1719
      %1971 = vmatprep.subr.bf16.mxu0 0
      %1972 = vmatpush1.bf16.msra.mxu0 %v1720
      %1973 = vmatprep.subr.bf16.mxu0 0
      %1974 = vmatpush1.bf16.msra.mxu0 %v1721
      %1975 = vmatprep.subr.bf16.mxu0 0
      %1976 = vmatpush1.bf16.msra.mxu0 %v1722
      %1977 = vmatprep.subr.bf16.mxu0 0
      %1978 = vmatpush1.bf16.msra.mxu0 %v1723
      %1979 = vmatprep.subr.bf16.mxu0 0
      %1980 = vmatpush1.bf16.msra.mxu0 %v1724
      %1981 = vmatprep.subr.bf16.mxu0 0
      %1982 = vmatpush1.bf16.msra.mxu0 %v1725
      %1983 = vmatprep.subr.bf16.mxu0 0
      %1984 = vmatpush1.bf16.msra.mxu0 %v1726
      %1985 = vmatprep.mubr.bf16.mxu0 %v1216
      %1986 = vmatmul.mubr.bf16.gmra.mrb[0].mxu0 %v1215
      %v1987 = vpop.f32.mrb[0].mxu0
      %v1988 = vadd.f32 %v1923, %v1987
      %v1989 = vpop.f32.mrb[0].mxu0
      %v1990 = vpop.f32.mrb[0].mxu0
      %v1991 = vadd.f32 %v1926, %v1990
      %v1992 = vpop.f32.mrb[0].mxu0
      %1993 = vmatprep.mubr.bf16.mxu0 %v1225
      %1994 = vmatmul.mubr.bf16.gmra.mrb[0].mxu0 %v1224
      %v1995 = vpop.f32.mrb[0].mxu0
      %v1996 = vadd.f32 %v1931, %v1995
      %v1997 = vpop.f32.mrb[0].mxu0
      %v1998 = vpop.f32.mrb[0].mxu0
      %v1999 = vadd.f32 %v1934, %v1998
      %v2000 = vpop.f32.mrb[0].mxu0
      %2001 = vmatprep.mubr.bf16.mxu0 %v1234
      %2002 = vmatmul.mubr.bf16.gmra.mrb[0].mxu0 %v1233
      %v2003 = vpop.f32.mrb[0].mxu0
      %v2004 = vadd.f32 %v1939, %v2003
      %v2005 = vpop.f32.mrb[0].mxu0
      %v2006 = vpop.f32.mrb[0].mxu0
      %v2007 = vadd.f32 %v1942, %v2006
      %v2008 = vpop.f32.mrb[0].mxu0
      %2009 = vmatprep.mubr.bf16.mxu0 %v1243
      %2010 = vmatmul.mubr.bf16.gmra.mrb[0].mxu0 %v1242
      %v2011 = vpop.f32.mrb[0].mxu0
      %v2012 = vadd.f32 %v1947, %v2011
      %v2013 = vpop.f32.mrb[0].mxu0
      %v2014 = vpop.f32.mrb[0].mxu0
      %v2015 = vadd.f32 %v1950, %v2014
      %v2016 = vpop.f32.mrb[0].mxu0
      %2017 = vdwg.mxu0
      %2018 = vmatprep.subr.bf16.mxu0 0
      %2019 = vmatpush1.bf16.msra.mxu0 %v1727
      %2020 = vmatprep.subr.bf16.mxu0 0
      %2021 = vmatpush1.bf16.msra.mxu0 %v1728
      %2022 = vmatprep.subr.bf16.mxu0 0
      %2023 = vmatpush1.bf16.msra.mxu0 %v1729
      %2024 = vmatprep.subr.bf16.mxu0 0
      %2025 = vmatpush1.bf16.msra.mxu0 %v1730
      %2026 = vmatprep.subr.bf16.mxu0 0
      %2027 = vmatpush1.bf16.msra.mxu0 %v1731
      %2028 = vmatprep.subr.bf16.mxu0 0
      %2029 = vmatpush1.bf16.msra.mxu0 %v1732
      %2030 = vmatprep.subr.bf16.mxu0 0
      %2031 = vmatpush1.bf16.msra.mxu0 %v1733
      %2032 = vmatprep.subr.bf16.mxu0 0
      %2033 = vmatpush1.bf16.msra.mxu0 %v1734
      %2034 = vmatprep.subr.bf16.mxu0 0
      %2035 = vmatpush1.bf16.msra.mxu0 %v1735
      %2036 = vmatprep.subr.bf16.mxu0 0
      %2037 = vmatpush1.bf16.msra.mxu0 %v1736
      %2038 = vmatprep.subr.bf16.mxu0 0
      %2039 = vmatpush1.bf16.msra.mxu0 %v1737
      %2040 = vmatprep.subr.bf16.mxu0 0
      %2041 = vmatpush1.bf16.msra.mxu0 %v1738
      %2042 = vmatprep.subr.bf16.mxu0 0
      %2043 = vmatpush1.bf16.msra.mxu0 %v1739
      %2044 = vmatprep.subr.bf16.mxu0 0
      %2045 = vmatpush1.bf16.msra.mxu0 %v1740
      %2046 = vmatprep.subr.bf16.mxu0 0
      %2047 = vmatpush1.bf16.msra.mxu0 %v1741
      %2048 = vmatprep.subr.bf16.mxu0 0
      %2049 = vmatpush1.bf16.msra.mxu0 %v1742
      %2050 = vmatprep.mubr.bf16.mxu0 %v1218
      %2051 = vmatmul.mubr.bf16.gmra.mrb[0].mxu0 %v1217
      %v2052 = vpop.f32.mrb[0].mxu0
      %v2053 = vadd.f32 %v1988, %v2052
      %v2054 = vpop.f32.mrb[0].mxu0
      %v2055 = vpop.f32.mrb[0].mxu0
      %v2056 = vadd.f32 %v1991, %v2055
      %v2057 = vpop.f32.mrb[0].mxu0
      %2058 = vmatprep.mubr.bf16.mxu0 %v1227
      %2059 = vmatmul.mubr.bf16.gmra.mrb[0].mxu0 %v1226
      %v2060 = vpop.f32.mrb[0].mxu0
      %v2061 = vadd.f32 %v1996, %v2060
      %v2062 = vpop.f32.mrb[0].mxu0
      %v2063 = vpop.f32.mrb[0].mxu0
      %v2064 = vadd.f32 %v1999, %v2063
      %v2065 = vpop.f32.mrb[0].mxu0
      %2066 = vmatprep.mubr.bf16.mxu0 %v1236
      %2067 = vmatmul.mubr.bf16.gmra.mrb[0].mxu0 %v1235
      %v2068 = vpop.f32.mrb[0].mxu0
      %v2069 = vadd.f32 %v2004, %v2068
      %v2070 = vpop.f32.mrb[0].mxu0
      %v2071 = vpop.f32.mrb[0].mxu0
      %v2072 = vadd.f32 %v2007, %v2071
      %v2073 = vpop.f32.mrb[0].mxu0
      %2074 = vmatprep.mubr.bf16.mxu0 %v1245
      %2075 = vmatmul.mubr.bf16.gmra.mrb[0].mxu0 %v1244
      %v2076 = vpop.f32.mrb[0].mxu0
      %v2077 = vadd.f32 %v2012, %v2076
      %v2078 = vpop.f32.mrb[0].mxu0
      %v2079 = vpop.f32.mrb[0].mxu0
      %v2080 = vadd.f32 %v2015, %v2079
      %v2081 = vpop.f32.mrb[0].mxu0
      %2082 = vdwg.mxu0
      %2083 = vmatprep.subr.bf16.mxu0 0
      %2084 = vmatpush1.bf16.msra.mxu0 %v1743
      %2085 = vmatprep.subr.bf16.mxu0 0
      %2086 = vmatpush1.bf16.msra.mxu0 %v1744
      %2087 = vmatprep.subr.bf16.mxu0 0
      %2088 = vmatpush1.bf16.msra.mxu0 %v1745
      %2089 = vmatprep.subr.bf16.mxu0 0
      %2090 = vmatpush1.bf16.msra.mxu0 %v1746
      %2091 = vmatprep.subr.bf16.mxu0 0
      %2092 = vmatpush1.bf16.msra.mxu0 %v1747
      %2093 = vmatprep.subr.bf16.mxu0 0
      %2094 = vmatpush1.bf16.msra.mxu0 %v1748
      %2095 = vmatprep.subr.bf16.mxu0 0
      %2096 = vmatpush1.bf16.msra.mxu0 %v1749
      %2097 = vmatprep.subr.bf16.mxu0 0
      %2098 = vmatpush1.bf16.msra.mxu0 %v1750
      %2099 = vmatprep.subr.bf16.mxu0 0
      %2100 = vmatpush1.bf16.msra.mxu0 0
      %2101 = vmatprep.subr.bf16.mxu0 0
      %2102 = vmatpush1.bf16.msra.mxu0 0
      %2103 = vmatprep.subr.bf16.mxu0 0
      %2104 = vmatpush1.bf16.msra.mxu0 0
      %2105 = vmatprep.subr.bf16.mxu0 0
      %2106 = vmatpush1.bf16.msra.mxu0 0
      %2107 = vmatprep.subr.bf16.mxu0 0
      %2108 = vmatpush1.bf16.msra.mxu0 0
      %2109 = vmatprep.subr.bf16.mxu0 0
      %2110 = vmatpush1.bf16.msra.mxu0 0
      %2111 = vmatprep.subr.bf16.mxu0 0
      %2112 = vmatpush1.bf16.msra.mxu0 0
      %2113 = vmatprep.subr.bf16.mxu0 0
      %2114 = vmatpush1.bf16.msra.mxu0 0
      %2115 = vmatprep.mubr.bf16.mxu0 0
      %2116 = vmatmul.mubr.bf16.gmra.mrb[0].mxu0 %v1219
      %v2117 = vpop.f32.mrb[0].mxu0
      %v2118 = vadd.f32 %v2053, %v2117
      %v2119 = vpop.f32.mrb[0].mxu0
      %v2120 = vpop.f32.mrb[0].mxu0
      %v2121 = vadd.f32 %v2056, %v2120
      %v2122 = vpop.f32.mrb[0].mxu0
      %2123 = vmatprep.mubr.bf16.mxu0 0
      %2124 = vmatmul.mubr.bf16.gmra.mrb[0].mxu0 %v1228
      %v2125 = vpop.f32.mrb[0].mxu0
      %v2126 = vadd.f32 %v2061, %v2125
      %v2127 = vpop.f32.mrb[0].mxu0
      %v2128 = vpop.f32.mrb[0].mxu0
      %v2129 = vadd.f32 %v2064, %v2128
      %v2130 = vpop.f32.mrb[0].mxu0
      %2131 = vmatprep.mubr.bf16.mxu0 0
      %2132 = vmatmul.mubr.bf16.gmra.mrb[0].mxu0 %v1237
      %v2133 = vpop.f32.mrb[0].mxu0
      %v2134 = vadd.f32 %v2069, %v2133
      %v2135 = vpop.f32.mrb[0].mxu0
      %v2136 = vpop.f32.mrb[0].mxu0
      %v2137 = vadd.f32 %v2072, %v2136
      %v2138 = vpop.f32.mrb[0].mxu0
      %2139 = vmatprep.mubr.bf16.mxu0 0
      %2140 = vmatmul.mubr.bf16.gmra.mrb[0].mxu0 %v1246
      %v2141 = vpop.f32.mrb[0].mxu0
      %v2142 = vadd.f32 %v2077, %v2141
      %v2143 = vpop.f32.mrb[0].mxu0
      %v2144 = vpop.f32.mrb[0].mxu0
      %v2145 = vadd.f32 %v2080, %v2144
      %v2146 = vpop.f32.mrb[0].mxu0
      %2147 = vdwg.mxu0
      %v2148 = vld [vmem:[%s375] sm:$0xf]
      %v2149 = vld [vmem:[%s375 + $0x4] sm:$0xf]
      %v2150 = vld [vmem:[%s375 + $0x8] sm:$0xf]
      %v2151 = vld [vmem:[%s375 + $0xc] sm:$0xf]
      %v2152 = vld [vmem:[%s375 + $0x10] sm:$0xf]
      %v2153 = vld [vmem:[%s375 + $0x14] sm:$0xf]
      %v2154 = vld [vmem:[%s375 + $0x18] sm:$0xf]
      %v2155 = vld [vmem:[%s375 + $0x1c] sm:$0xf]
      %v2156 = vld [vmem:[%s3] sm:$0x3]
      %v2165 = vunpack.c.l.b16 %v2148
      %v2166 = vunpack.c.l.b16 %v2149
      %v2167 = vunpack.c.l.b16 %v2150
      %v2168 = vunpack.c.l.b16 %v2151
      %v2169 = vunpack.c.l.b16 %v2152
      %v2170 = vunpack.c.l.b16 %v2153
      %v2171 = vunpack.c.l.b16 %v2154
      %v2172 = vunpack.c.l.b16 %v2155
      %v2173 = vpack.c.b16 %v2166, %v2165
      %v2174 = vpack.c.b16 %v2168, %v2167
      %v2175 = vpack.c.b16 %v2170, %v2169
      %v2176 = vpack.c.b16 %v2172, %v2171
      %vm2177 = vcmask 31744
      %v2179 = vsel %vm2177, %v2173, 0
      %v2182 = vsel %vm2177, %v2174, 0
      %v2185 = vsel %vm2177, %v2175, 0
      %v2188 = vsel %vm2177, %v2176, 0
      %vm2190 = vcmask 1041408
      %v2192 = vsel %vm2190, %v2156, 0
      %2194 = vmatprep.subr.bf16.mxu0 0
      %2195 = vmatpush1.bf16.msra.mxu0 %v2192
      %2196 = vmatprep.subr.bf16.mxu0 0
      %2197 = vmatpush1.bf16.msra.mxu0 0
      %2198 = vmatprep.subr.bf16.mxu0 0
      %2199 = vmatpush1.bf16.msra.mxu0 0
      %2200 = vmatprep.subr.bf16.mxu0 0
      %2201 = vmatpush1.bf16.msra.mxu0 0
      %2202 = vmatprep.subr.bf16.mxu0 0
      %2203 = vmatpush1.bf16.msra.mxu0 0
      %2204 = vmatprep.subr.bf16.mxu0 0
      %2205 = vmatpush1.bf16.msra.mxu0 0
      %2206 = vmatprep.subr.bf16.mxu0 0
      %2207 = vmatpush1.bf16.msra.mxu0 0
      %2208 = vmatprep.subr.bf16.mxu0 0
      %2209 = vmatpush1.bf16.msra.mxu0 0
      %2210 = vmatprep.subr.bf16.mxu0 0
      %2211 = vmatpush1.bf16.msra.mxu0 0
      %2212 = vmatprep.subr.bf16.mxu0 0
      %2213 = vmatpush1.bf16.msra.mxu0 0
      %2214 = vmatprep.subr.bf16.mxu0 0
      %2215 = vmatpush1.bf16.msra.mxu0 0
      %2216 = vmatprep.subr.bf16.mxu0 0
      %2217 = vmatpush1.bf16.msra.mxu0 0
      %2218 = vmatprep.subr.bf16.mxu0 0
      %2219 = vmatpush1.bf16.msra.mxu0 0
      %2220 = vmatprep.subr.bf16.mxu0 0
      %2221 = vmatpush1.bf16.msra.mxu0 0
      %2222 = vmatprep.subr.bf16.mxu0 0
      %2223 = vmatpush1.bf16.msra.mxu0 0
      %2224 = vmatprep.subr.bf16.mxu0 0
      %2225 = vmatpush1.bf16.msra.mxu0 0
      %2226 = vmatprep.mubr.bf16.mxu0 0
      %2227 = vmatmul.mubr.bf16.gmra.mrb[0].mxu0 %v2179
      %v2228 = vpop.f32.mrb[0].mxu0
      %v2229 = vadd.f32 0.0, %v2228
      %v2230 = vpop.f32.mrb[0].mxu0
      %v2231 = vpop.f32.mrb[0].mxu0
      %v2232 = vadd.f32 0.0, %v2231
      %v2233 = vpop.f32.mrb[0].mxu0
      %2234 = vmatprep.mubr.bf16.mxu0 0
      %2235 = vmatmul.mubr.bf16.gmra.mrb[0].mxu0 %v2182
      %v2236 = vpop.f32.mrb[0].mxu0
      %v2237 = vadd.f32 0.0, %v2236
      %v2238 = vpop.f32.mrb[0].mxu0
      %v2239 = vpop.f32.mrb[0].mxu0
      %v2240 = vadd.f32 0.0, %v2239
      %v2241 = vpop.f32.mrb[0].mxu0
      %2242 = vmatprep.mubr.bf16.mxu0 0
      %2243 = vmatmul.mubr.bf16.gmra.mrb[0].mxu0 %v2185
      %v2244 = vpop.f32.mrb[0].mxu0
      %v2245 = vadd.f32 0.0, %v2244
      %v2246 = vpop.f32.mrb[0].mxu0
      %v2247 = vpop.f32.mrb[0].mxu0
      %v2248 = vadd.f32 0.0, %v2247
      %v2249 = vpop.f32.mrb[0].mxu0
      %2250 = vmatprep.mubr.bf16.mxu0 0
      %2251 = vmatmul.mubr.bf16.gmra.mrb[0].mxu0 %v2188
      %v2252 = vpop.f32.mrb[0].mxu0
      %v2253 = vadd.f32 0.0, %v2252
      %v2254 = vpop.f32.mrb[0].mxu0
      %v2255 = vpop.f32.mrb[0].mxu0
      %v2256 = vadd.f32 0.0, %v2255
      %v2257 = vpop.f32.mrb[0].mxu0
      %2258 = vdwg.mxu0
      %v2259 = vpack.c.bf16 %v2121, %v2118
      %v2260 = vpack.c.bf16 %v2129, %v2126
      %v2261 = vpack.c.bf16 %v2137, %v2134
      %v2262 = vpack.c.bf16 %v2145, %v2142
      %v2267 = vunpack.c.l.b16 %v2259
      %v2268 = vunpack.c.h.b16 %v2259
      %v2269 = vunpack.c.l.b16 %v2260
      %v2270 = vunpack.c.h.b16 %v2260
      %v2271 = vunpack.c.l.b16 %v2261
      %v2272 = vunpack.c.h.b16 %v2261
      %v2273 = vunpack.c.l.b16 %v2262
      %v2274 = vunpack.c.h.b16 %v2262
      %v2275 = vpack.c.b16 %v2267, %v2267
      %v2276 = vpack.c.b16 %v2268, %v2268
      %v2277 = vpack.c.b16 %v2269, %v2269
      %v2278 = vpack.c.b16 %v2270, %v2270
      %v2279 = vpack.c.b16 %v2271, %v2271
      %v2280 = vpack.c.b16 %v2272, %v2272
      %v2281 = vpack.c.b16 %v2273, %v2273
      %v2282 = vpack.c.b16 %v2274, %v2274
      %2291 = vst [vmem:[%s380] sm:$0xf] %v2275
      %2292 = vst [vmem:[%s380 + $0x4] sm:$0xf] %v2276
      %2293 = vst [vmem:[%s380 + $0x8] sm:$0xf] %v2277
      %2294 = vst [vmem:[%s380 + $0xc] sm:$0xf] %v2278
      %2295 = vst [vmem:[%s380 + $0x10] sm:$0xf] %v2279
      %2296 = vst [vmem:[%s380 + $0x14] sm:$0xf] %v2280
      %2297 = vst [vmem:[%s380 + $0x18] sm:$0xf] %v2281
      %2298 = vst [vmem:[%s380 + $0x1c] sm:$0xf] %v2282
      %v2299 = vpack.c.bf16 %v2232, %v2229
      %v2300 = vpack.c.bf16 %v2240, %v2237
      %v2301 = vpack.c.bf16 %v2248, %v2245
      %v2302 = vpack.c.bf16 %v2256, %v2253
      %v2307 = vunpack.c.l.b16 %v2299
      %v2308 = vunpack.c.h.b16 %v2299
      %v2309 = vunpack.c.l.b16 %v2300
      %v2310 = vunpack.c.h.b16 %v2300
      %v2311 = vunpack.c.l.b16 %v2301
      %v2312 = vunpack.c.h.b16 %v2301
      %v2313 = vunpack.c.l.b16 %v2302
      %v2314 = vunpack.c.h.b16 %v2302
      %v2315 = vpack.c.b16 %v2307, %v2307
      %v2316 = vpack.c.b16 %v2308, %v2308
      %v2317 = vpack.c.b16 %v2309, %v2309
      %v2318 = vpack.c.b16 %v2310, %v2310
      %v2319 = vpack.c.b16 %v2311, %v2311
      %v2320 = vpack.c.b16 %v2312, %v2312
      %v2321 = vpack.c.b16 %v2313, %v2313
      %v2322 = vpack.c.b16 %v2314, %v2314
      %2331 = vst [vmem:[%s385] sm:$0xf] %v2315
      %2332 = vst [vmem:[%s385 + $0x4] sm:$0xf] %v2316
      %2333 = vst [vmem:[%s385 + $0x8] sm:$0xf] %v2317
      %2334 = vst [vmem:[%s385 + $0xc] sm:$0xf] %v2318
      %2335 = vst [vmem:[%s385 + $0x10] sm:$0xf] %v2319
      %2336 = vst [vmem:[%s385 + $0x14] sm:$0xf] %v2320
      %2337 = vst [vmem:[%s385 + $0x18] sm:$0xf] %v2321
      %2338 = vst [vmem:[%s385 + $0x1c] sm:$0xf] %v2322
      %v2339 = vadd.f32 %v2118, %v2121
      %v2340 = vadd.f32 %v2339, %v2126
      %v2341 = vadd.f32 %v2340, %v2129
      %v2342 = vadd.f32 %v2341, %v2134
      %v2343 = vadd.f32 %v2342, %v2137
      %v2344 = vadd.f32 %v2343, %v2142
      %v2345 = vadd.f32 %v2344, %v2145
      %v2346 = vrot.slane %v2345, 4
      %v2347 = vadd.f32 %v2345, %v2346
      %v2348 = vrot.slane %v2347, 2
      %v2349 = vadd.f32 %v2347, %v2348
      %v2350 = vrot.slane %v2349, 1
      %v2351 = vadd.f32 %v2349, %v2350
      %2352 = vst [vmem:[%s388] sm:$0x1] %v2351
      %v2353 = vmul.f32 %v2118, %v2118
      %v2354 = vmul.f32 %v2121, %v2121
      %v2355 = vmul.f32 %v2126, %v2126
      %v2356 = vmul.f32 %v2129, %v2129
      %v2357 = vmul.f32 %v2134, %v2134
      %v2358 = vmul.f32 %v2137, %v2137
      %v2359 = vmul.f32 %v2142, %v2142
      %v2360 = vmul.f32 %v2145, %v2145
      %v2361 = vadd.f32 %v2353, %v2354
      %v2362 = vadd.f32 %v2361, %v2355
      %v2363 = vadd.f32 %v2362, %v2356
      %v2364 = vadd.f32 %v2363, %v2357
      %v2365 = vadd.f32 %v2364, %v2358
      %v2366 = vadd.f32 %v2365, %v2359
      %v2367 = vadd.f32 %v2366, %v2360
      %v2368 = vrot.slane %v2367, 4
      %v2369 = vadd.f32 %v2367, %v2368
      %v2370 = vrot.slane %v2369, 2
      %v2371 = vadd.f32 %v2369, %v2370
      %v2372 = vrot.slane %v2371, 1
      %v2373 = vadd.f32 %v2371, %v2372
      %2374 = vst [vmem:[%s391] sm:$0x1] %v2373
      %v2375 = vadd.f32 %v2229, %v2232
      %v2376 = vadd.f32 %v2375, %v2237
      %v2377 = vadd.f32 %v2376, %v2240
      %v2378 = vadd.f32 %v2377, %v2245
      %v2379 = vadd.f32 %v2378, %v2248
      %v2380 = vadd.f32 %v2379, %v2253
      %v2381 = vadd.f32 %v2380, %v2256
      %v2382 = vrot.slane %v2381, 4
      %v2383 = vadd.f32 %v2381, %v2382
      %v2384 = vrot.slane %v2383, 2
      %v2385 = vadd.f32 %v2383, %v2384
      %v2386 = vrot.slane %v2385, 1
      %v2387 = vadd.f32 %v2385, %v2386
      %2388 = vst [vmem:[%s394] sm:$0x1] %v2387
      %v2389 = vmul.f32 %v2229, %v2229
      %v2390 = vmul.f32 %v2232, %v2232
      %v2391 = vmul.f32 %v2237, %v2237
      %v2392 = vmul.f32 %v2240, %v2240
      %v2393 = vmul.f32 %v2245, %v2245
      %v2394 = vmul.f32 %v2248, %v2248
      %v2395 = vmul.f32 %v2253, %v2253
      %v2396 = vmul.f32 %v2256, %v2256
      %v2397 = vadd.f32 %v2389, %v2390
      %v2398 = vadd.f32 %v2397, %v2391
      %v2399 = vadd.f32 %v2398, %v2392
      %v2400 = vadd.f32 %v2399, %v2393
      %v2401 = vadd.f32 %v2400, %v2394
      %v2402 = vadd.f32 %v2401, %v2395
      %v2403 = vadd.f32 %v2402, %v2396
      %v2404 = vrot.slane %v2403, 4
      %v2405 = vadd.f32 %v2403, %v2404
      %v2406 = vrot.slane %v2405, 2
      %v2407 = vadd.f32 %v2405, %v2406
      %v2408 = vrot.slane %v2407, 1
      %v2409 = vadd.f32 %v2407, %v2408
      %2410 = vst [vmem:[%s397] sm:$0x1] %v2409
      %p2411 = scmp.lt.s32.totalorder %s21, 1
      %s2412 = scalar_select %p2411, %s21, 1
      %s2413 = smul.addr %s2412, 8
      %s2414 = smul.addr %s2413, 4
      %s2415 = scalar_lea.vmem %s4, %s2414
      %p2416 = scmp.lt.s32.totalorder %s21, 1
      %s2417 = scalar_select %p2416, %s21, 1
      %s2418 = smul.addr %s2417, 8
      %s2419 = smul.addr %s2418, 4
      %s2420 = scalar_lea.vmem %s5, %s2419
      %p2421 = scmp.lt.s32.totalorder %s21, 1
      %s2422 = scalar_select %p2421, %s21, 1
      %s2423 = scalar_lea.vmem %s6, %s2422
      %p2424 = scmp.lt.s32.totalorder %s21, 1
      %s2425 = scalar_select %p2424, %s21, 1
      %s2426 = scalar_lea.vmem %s7, %s2425
      %p2427 = scmp.lt.s32.totalorder %s21, 1
      %s2428 = scalar_select %p2427, %s21, 1
      %s2429 = scalar_lea.vmem %s8, %s2428
      %p2430 = scmp.lt.s32.totalorder %s21, 1
      %s2431 = scalar_select %p2430, %s21, 1
      %s2432 = scalar_lea.vmem %s9, %s2431
      // Predicated region
      $region37: #{basic_block_forward.6} parent=35 // pred_check
        %p2433 = pneg %p133
      $region38: #{basic_block_forward.6} parent=35 // pred_check_branch
        %2435 = sbr.rel (%p2433) target = $region40
      $region39: #{basic_block_forward.6} parent=35 // pred_region
        _
      $region40: #{basic_block_forward.6} parent=35 // pred_fallthru
        _
      // Predicated region
      $region41: #{basic_block_forward.6} parent=35 // pred_check
        %p2436 = pneg %p159
      $region42: #{basic_block_forward.6} parent=35 // pred_check_branch
        %2438 = sbr.rel (%p2436) target = $region44
      $region43: #{basic_block_forward.6} parent=35 // pred_region
        _
      $region44: #{basic_block_forward.6} parent=35 // pred_fallthru
        _
      // Predicated region
      $region45: #{basic_block_forward.6} parent=35 // pred_check
        %p2439 = pneg %p185
      $region46: #{basic_block_forward.6} parent=35 // pred_check_branch
        %2441 = sbr.rel (%p2439) target = $region48
      $region47: #{basic_block_forward.6} parent=35 // pred_region
        _
      $region48: #{basic_block_forward.6} parent=35 // pred_fallthru
        _
      // Predicated region
      $region49: #{basic_block_forward.6} parent=35 // pred_check
        %p2442 = pneg %p211
      $region50: #{basic_block_forward.6} parent=35 // pred_check_branch
        %2444 = sbr.rel (%p2442) target = $region52
      $region51: #{basic_block_forward.6} parent=35 // pred_region
        _
      $region52: #{basic_block_forward.6} parent=35 // pred_fallthru
        _
      // Predicated region
      $region53: #{basic_block_forward.6} parent=35 // pred_check
        %p2445 = pneg %p237
      $region54: #{basic_block_forward.6} parent=35 // pred_check_branch
        %2447 = sbr.rel (%p2445) target = $region56
      $region55: #{basic_block_forward.6} parent=35 // pred_region
        _
      $region56: #{basic_block_forward.6} parent=35 // pred_fallthru
        _
      // Predicated region
      $region57: #{basic_block_forward.6} parent=35 // pred_check
        %p2448 = pneg %p263
      $region58: #{basic_block_forward.6} parent=35 // pred_check_branch
        %2450 = sbr.rel (%p2448) target = $region60
      $region59: #{basic_block_forward.6} parent=35 // pred_region
        _
      $region60: #{basic_block_forward.6} parent=35 // pred_fallthru
        _
    $region36: #{basic_block_forward.6} parent=5 // pred_fallthru
      _
    %p2451 = scmp.le.s32.totalorder 2, %s16
    // Predicated region
    $region61: #{basic_block_forward.6} parent=5 // pred_check
      %p2452 = pneg %p2451
    $region62: #{basic_block_forward.6} parent=5 // pred_check_branch
      %2454 = sbr.rel (%p2452) target = $region64
    $region63: #{basic_block_forward.6} parent=5 // pred_region
      %s2455 = ssub.s32 %s16, 2
      // Predicated region
      $region65: #{basic_block_forward.6} parent=63 // pred_check
        %p2456 = pneg %p139
      $region66: #{basic_block_forward.6} parent=63 // pred_check_branch
        %2458 = sbr.rel (%p2456) target = $region68
      $region67: #{basic_block_forward.6} parent=63 // pred_region
        %p2459 = scmp.lt.s32.totalorder %s22, 1
        %s2460 = scalar_select %p2459, %s22, 1
        %s2461 = smul.addr %s2460, 8
        %s2462 = smul.addr %s2461, 4
        %s2463 = scalar_lea.vmem %s4, %s2462
      $region68: #{basic_block_forward.6} parent=63 // pred_fallthru
        _
      // Predicated region
      $region69: #{basic_block_forward.6} parent=63 // pred_check
        %p2464 = pneg %p165
      $region70: #{basic_block_forward.6} parent=63 // pred_check_branch
        %2466 = sbr.rel (%p2464) target = $region72
      $region71: #{basic_block_forward.6} parent=63 // pred_region
        %p2467 = scmp.lt.s32.totalorder %s22, 1
        %s2468 = scalar_select %p2467, %s22, 1
        %s2469 = smul.addr %s2468, 8
        %s2470 = smul.addr %s2469, 4
        %s2471 = scalar_lea.vmem %s5, %s2470
      $region72: #{basic_block_forward.6} parent=63 // pred_fallthru
        _
      // Predicated region
      $region73: #{basic_block_forward.6} parent=63 // pred_check
        %p2472 = pneg %p191
      $region74: #{basic_block_forward.6} parent=63 // pred_check_branch
        %2474 = sbr.rel (%p2472) target = $region76
      $region75: #{basic_block_forward.6} parent=63 // pred_region
        %p2475 = scmp.lt.s32.totalorder %s22, 1
        %s2476 = scalar_select %p2475, %s22, 1
        %s2477 = scalar_lea.vmem %s6, %s2476
      $region76: #{basic_block_forward.6} parent=63 // pred_fallthru
        _
      // Predicated region
      $region77: #{basic_block_forward.6} parent=63 // pred_check
        %p2478 = pneg %p217
      $region78: #{basic_block_forward.6} parent=63 // pred_check_branch
        %2480 = sbr.rel (%p2478) target = $region80
      $region79: #{basic_block_forward.6} parent=63 // pred_region
        %p2481 = scmp.lt.s32.totalorder %s22, 1
        %s2482 = scalar_select %p2481, %s22, 1
        %s2483 = scalar_lea.vmem %s7, %s2482
      $region80: #{basic_block_forward.6} parent=63 // pred_fallthru
        _
      // Predicated region
      $region81: #{basic_block_forward.6} parent=63 // pred_check
        %p2484 = pneg %p243
      $region82: #{basic_block_forward.6} parent=63 // pred_check_branch
        %2486 = sbr.rel (%p2484) target = $region84
      $region83: #{basic_block_forward.6} parent=63 // pred_region
        %p2487 = scmp.lt.s32.totalorder %s22, 1
        %s2488 = scalar_select %p2487, %s22, 1
        %s2489 = scalar_lea.vmem %s8, %s2488
      $region84: #{basic_block_forward.6} parent=63 // pred_fallthru
        _
      // Predicated region
      $region85: #{basic_block_forward.6} parent=63 // pred_check
        %p2490 = pneg %p269
      $region86: #{basic_block_forward.6} parent=63 // pred_check_branch
        %2492 = sbr.rel (%p2490) target = $region88
      $region87: #{basic_block_forward.6} parent=63 // pred_region
        %p2493 = scmp.lt.s32.totalorder %s22, 1
        %s2494 = scalar_select %p2493, %s22, 1
        %s2495 = scalar_lea.vmem %s9, %s2494
      $region88: #{basic_block_forward.6} parent=63 // pred_fallthru
        _
    $region64: #{basic_block_forward.6} parent=5 // pred_fallthru
      _
  $region6: #{basic_block_forward.6} parent=0 // loop_footer
    %s20 = sadd.s32 1, %s16
  $region7: #{basic_block_forward.6} parent=0 // loop_footer_branch
    %15 = sbr.rel target = $region3
  $region8: #{basic_block_forward.6} parent=0 // loop_exit
    _

</llo_original>
